<compile_context>
chip_gen: v5e
topology: v5e:2x2
jax: 0.10.0
libtpu: 0.0.40
codegen_flags: <defaults>
</compile_context>

<pallas_src>
from collections import OrderedDict
import math

import jax
import jax.numpy as jnp
from jax.experimental import pallas as pl
from jax.experimental.pallas import tpu as pltpu

# ---------------- problem sizes (small but consistent with the module) -------
NUM_EMBED = 8          # number of client embeddings
E = 32                 # embedding_dim
H = 32                 # hidden_dim
CHANNELS = 4           # channels
IN_CHANNELS = 1        # in_channels
OUTDIM = 10            # outdim

# per-head output segments: (name, target_shape)   -- matches the .view() calls
SEGMENTS = [
    ("conv1.weight", (CHANNELS, IN_CHANNELS, 5, 5)),
    ("conv1.bias",   (CHANNELS,)),
    ("conv2.weight", (2 * CHANNELS, CHANNELS, 5, 5)),
    ("conv2.bias",   (2 * CHANNELS,)),
    ("fc1.weight",   (128, 2 * CHANNELS * 7 * 7)),
    ("fc1.bias",     (128,)),
    ("fc2.weight",   (OUTDIM, 128)),
    ("fc2.bias",     (OUTDIM,)),
]
SEG_SIZES = [math.prod(s) for _, s in SEGMENTS]
TOTAL = sum(SEG_SIZES)                            # 52506
TOTAL_PAD = pl.cdiv(TOTAL, 13312) * 13312         # 53248 = 416 * 128 lanes


def _pick_tile():
    """2 grid steps on single-TC v5e/v6e, 4 on dual-TC v7x (2 per core)."""
    try:
        kind = jax.devices()[0].device_kind.lower()
    except Exception:
        kind = ""
    if "v7" in kind:
        return 13312   # 4 steps -> 2 per TensorCore, each still double-buffered
    return 26624       # 2 steps -> halves per-step overhead on a single TC


TILE = _pick_tile()
assert TOTAL_PAD % TILE == 0
NUM_TILES = TOTAL_PAD // TILE


# ---------------- fused Pallas kernel ----------------------------------------
def fused_hyper_kernel(cid_ref, emb_ref, w1_ref, b1_ref, w2_ref, b2_ref,
                       wh_ref, bh_ref, out_ref):
    # cid_ref (scalar prefetch) is already consumed by the index_maps.
    del cid_ref
    # --- tiny feature MLP (recomputed each step; hidden under weight DMA) ----
    emb = emb_ref[...]                                                  # (1, E)
    h = jnp.dot(emb, w1_ref[...], preferred_element_type=jnp.float32) + b1_ref[...]
    h = jnp.maximum(h, 0.0)
    f = jnp.dot(h, w2_ref[...], preferred_element_type=jnp.float32) + b2_ref[...]
    f = f.astype(jnp.bfloat16)                                          # (1, H)
    # --- one lane-dense tile of the fused head projection ---------------------
    out_ref[...] = (jnp.dot(f, wh_ref[...], preferred_element_type=jnp.float32)
                    + bh_ref[...])


def mnist_hyper_forward(cid, embed_3d, w1, b1, w2, b2, wh_tiled, bh_pad):
    num_tiles, _, tile = wh_tiled.shape
    flat_pad = pl.pallas_call(
        fused_hyper_kernel,
        out_shape=jax.ShapeDtypeStruct((1, num_tiles * tile), jnp.float32),
        grid_spec=pltpu.PrefetchScalarGridSpec(
            num_scalar_prefetch=1,                      # cid -> SMEM
            grid=(num_tiles,),
            in_specs=[
                # embedding row gathered via the prefetched client id
                pl.BlockSpec((None, 1, E), lambda j, cid: (cid[0], 0, 0)),
                # tiny MLP params, full extent (<10 KB total), resident
                pl.BlockSpec((E, H), lambda j, cid: (0, 0)),
                pl.BlockSpec((1, H), lambda j, cid: (0, 0)),
                pl.BlockSpec((H, H), lambda j, cid: (0, 0)),
                pl.BlockSpec((1, H), lambda j, cid: (0, 0)),
                # pre-tiled bf16 fused head weights: one contiguous DMA/step
                pl.BlockSpec((None, H, tile), lambda j, cid: (j, 0, 0)),
                # f32 fused head bias
                pl.BlockSpec((1, tile), lambda j, cid: (0, j)),
            ],
            out_specs=pl.BlockSpec((1, tile), lambda j, cid: (0, j)),
        ),
        compiler_params=pltpu.CompilerParams(
            dimension_semantics=("parallel",)),         # scratch-free grid
    )(cid, embed_3d, w1, b1, w2, b2, wh_tiled, bh_pad)

    flat = flat_pad[:, :TOTAL]      # drop zero padding; never exposed downstream
    weights = OrderedDict()
    off = 0
    for (name, shape), size in zip(SEGMENTS, SEG_SIZES):
        weights[name] = flat[0, off:off + size].reshape(shape)
        off += size
    return weights, flat


# ---------------- deterministic parameter construction ------------------------
def make_params(key):
    ks = jax.random.split(key, 5 + 2 * len(SEGMENTS))
    scale = 0.05
    embed_table = scale * jax.random.normal(ks[0], (NUM_EMBED, E), jnp.float32)
    w1 = scale * jax.random.normal(ks[1], (E, H), jnp.float32)
    b1 = scale * jax.random.normal(ks[2], (1, H), jnp.float32)
    w2 = scale * jax.random.normal(ks[3], (H, H), jnp.float32)
    b2 = scale * jax.random.normal(ks[4], (1, H), jnp.float32)

    head_ws, head_bs = [], []
    for i, size in enumerate(SEG_SIZES):
        head_ws.append(scale * jax.random.normal(ks[5 + 2 * i], (H, size), jnp.float32))
        head_bs.append(scale * jax.random.normal(ks[6 + 2 * i], (1, size), jnp.float32))
    wh = jnp.concatenate(head_ws, axis=1)          # (H, TOTAL)  f32
    bh = jnp.concatenate(head_bs, axis=1)          # (1, TOTAL)  f32

    # kernel copies: bf16 head weights (halve HBM traffic), pre-tiled so each
    # grid step's weight DMA is one contiguous ~0.85-1.7 MB stretch.
    wh_bf16 = wh.astype(jnp.bfloat16)
    wh_pad = jnp.zeros((H, TOTAL_PAD), jnp.bfloat16).at[:, :TOTAL].set(wh_bf16)
    wh_tiled = wh_pad.reshape(H, NUM_TILES, TILE).transpose(1, 0, 2)  # (nt,H,TILE)
    bh_pad = jnp.zeros((1, TOTAL_PAD), jnp.float32).at[:, :TOTAL].set(bh)
    embed_3d = embed_table.reshape(NUM_EMBED, 1, E)
    return (embed_table, w1, b1, w2, b2, wh_bf16, bh,
            embed_3d, wh_tiled, bh_pad)


def reference_forward(cid, embed_table, w1, b1, w2, b2, wh_bf16, bh):
    """Pure-JAX reference with the SAME bf16 head-weight quantization."""
    emb = embed_table[cid[0]][None, :]
    h = jnp.maximum(
        jnp.dot(emb, w1, preferred_element_type=jnp.float32,
                precision=jax.lax.Precision.HIGHEST) + b1, 0.0)
    f = (jnp.dot(h, w2, preferred_element_type=jnp.float32,
                 precision=jax.lax.Precision.HIGHEST) + b2).astype(jnp.bfloat16)
    return jnp.dot(f, wh_bf16, preferred_element_type=jnp.float32) + bh


if __name__ == "__main__":
    key = jax.random.PRNGKey(0)
    (embed_table, w1, b1, w2, b2, wh_bf16, bh,
     embed_3d, wh_tiled, bh_pad) = make_params(key)
    cid = jnp.array([3], dtype=jnp.int32)           # client id

    weights, flat = mnist_hyper_forward(cid, embed_3d, w1, b1, w2, b2,
                                        wh_tiled, bh_pad)
    jax.block_until_ready(flat)

    ref = reference_forward(cid, embed_table, w1, b1, w2, b2, wh_bf16, bh)
    # bf16 head weights are matched in the reference, so tolerance is tight;
    # residual slack only covers f32-MLP multi-pass precision and the feature
    # bf16 cast landing on a rounding boundary.
    max_err = jnp.max(jnp.abs(flat - ref))
    assert jnp.allclose(flat, ref, rtol=2e-3, atol=2e-4), (
        f"mismatch vs JAX reference: max abs err = {max_err}")

    # sanity: output dict shapes match the PyTorch module's .view targets
    expected = dict(SEGMENTS)
    for name, arr in weights.items():
        assert tuple(arr.shape) == tuple(expected[name]), (name, arr.shape)

    print("KERNEL_OK")
</pallas_src>

<mosaic_0001>
module attributes {stable_mosaic.version = 11 : i64} {
  func.func @fused_hyper_kernel(%arg0: i32, %arg1: memref<1xi32, #tpu.memory_space<smem>>, %arg2: memref<1x1x32xf32, #tpu.memory_space<vmem>>, %arg3: memref<32x32xf32, #tpu.memory_space<vmem>>, %arg4: memref<1x32xf32, #tpu.memory_space<vmem>>, %arg5: memref<32x32xf32, #tpu.memory_space<vmem>>, %arg6: memref<1x32xf32, #tpu.memory_space<vmem>>, %arg7: memref<1x32x26624xbf16, #tpu.memory_space<vmem>>, %arg8: memref<1x26624xf32, #tpu.memory_space<vmem>>, %arg9: memref<1x26624xf32, #tpu.memory_space<vmem>>) attributes {dimension_semantics = [#tpu.dimension_semantics<parallel>], iteration_bounds = array<i64: 2>, scalar_prefetch = 1 : i64, scratch_operands = 0 : i64, tpu.core_type = #tpu.core_type<tc>, window_params = [{transform_indices = @transform_0, window_bounds = array<i64: 1, 1, 32>}, {pipeline_mode = #tpu.pipeline_mode<synchronous>, transform_indices = @transform_1, window_bounds = array<i64: 32, 32>}, {pipeline_mode = #tpu.pipeline_mode<synchronous>, transform_indices = @transform_2, window_bounds = array<i64: 1, 32>}, {pipeline_mode = #tpu.pipeline_mode<synchronous>, transform_indices = @transform_3, window_bounds = array<i64: 32, 32>}, {pipeline_mode = #tpu.pipeline_mode<synchronous>, transform_indices = @transform_4, window_bounds = array<i64: 1, 32>}, {transform_indices = @transform_5, window_bounds = array<i64: 1, 32, 26624>}, {transform_indices = @transform_6, window_bounds = array<i64: 1, 26624>}, {transform_indices = @transform_7, window_bounds = array<i64: 1, 26624>}]} {
    %c0 = arith.constant 0 : index
    %c0_0 = arith.constant 0 : index
    %c0_1 = arith.constant 0 : index
    %0 = vector.load %arg2[%c0, %c0_0, %c0_1] : memref<1x1x32xf32, #tpu.memory_space<vmem>>, vector<1x1x32xf32>
    %1 = vector.shape_cast %0 : vector<1x1x32xf32> to vector<1x32xf32>
    %c0_2 = arith.constant 0 : index
    %c0_3 = arith.constant 0 : index
    %2 = vector.load %arg3[%c0_2, %c0_3] : memref<32x32xf32, #tpu.memory_space<vmem>>, vector<32x32xf32>
    %cst = arith.constant dense<0.000000e+00> : vector<1x32xf32>
    %3 = tpu.matmul %1, %2, %cst {dimension_numbers = #tpu.dot_dimension_numbers<[1], [0], [0], [1], [0, 0, 1, 1], [], []>} : vector<1x32xf32>, vector<32x32xf32>, vector<1x32xf32> -> vector<1x32xf32>
    %c0_4 = arith.constant 0 : index
    %c0_5 = arith.constant 0 : index
    %4 = vector.load %arg4[%c0_4, %c0_5] : memref<1x32xf32, #tpu.memory_space<vmem>>, vector<1x32xf32>
    %5 = arith.addf %3, %4 : vector<1x32xf32>
    %cst_6 = arith.constant 0.000000e+00 : f32
    %6 = vector.broadcast %cst_6 : f32 to vector<1x32xf32>
    %7 = arith.maximumf %5, %6 : vector<1x32xf32>
    %c0_7 = arith.constant 0 : index
    %c0_8 = arith.constant 0 : index
    %8 = vector.load %arg5[%c0_7, %c0_8] : memref<32x32xf32, #tpu.memory_space<vmem>>, vector<32x32xf32>
    %cst_9 = arith.constant dense<0.000000e+00> : vector<1x32xf32>
    %9 = tpu.matmul %7, %8, %cst_9 {dimension_numbers = #tpu.dot_dimension_numbers<[1], [0], [0], [1], [0, 0, 1, 1], [], []>} : vector<1x32xf32>, vector<32x32xf32>, vector<1x32xf32> -> vector<1x32xf32>
    %c0_10 = arith.constant 0 : index
    %c0_11 = arith.constant 0 : index
    %10 = vector.load %arg6[%c0_10, %c0_11] : memref<1x32xf32, #tpu.memory_space<vmem>>, vector<1x32xf32>
    %11 = arith.addf %9, %10 : vector<1x32xf32>
    %12 = arith.truncf %11 : vector<1x32xf32> to vector<1x32xbf16>
    %c0_12 = arith.constant 0 : index
    %c0_13 = arith.constant 0 : index
    %c0_14 = arith.constant 0 : index
    %13 = vector.load %arg7[%c0_12, %c0_13, %c0_14] : memref<1x32x26624xbf16, #tpu.memory_space<vmem>>, vector<1x32x26624xbf16>
    %14 = vector.shape_cast %13 : vector<1x32x26624xbf16> to vector<32x26624xbf16>
    %cst_15 = arith.constant dense<0.000000e+00> : vector<1x26624xf32>
    %15 = tpu.matmul %12, %14, %cst_15 {dimension_numbers = #tpu.dot_dimension_numbers<[1], [0], [0], [1], [0, 0, 1, 1], [], []>} : vector<1x32xbf16>, vector<32x26624xbf16>, vector<1x26624xf32> -> vector<1x26624xf32>
    %c0_16 = arith.constant 0 : index
    %c0_17 = arith.constant 0 : index
    %16 = vector.load %arg8[%c0_16, %c0_17] : memref<1x26624xf32, #tpu.memory_space<vmem>>, vector<1x26624xf32>
    %17 = arith.addf %15, %16 : vector<1x26624xf32>
    %c0_18 = arith.constant 0 : index
    %c0_19 = arith.constant 0 : index
    %18 = vector.load %arg9[%c0_18, %c0_19] : memref<1x26624xf32, #tpu.memory_space<vmem>>, vector<1x26624xf32>
    tpu.vector_store %arg9[%c0_18, %c0_19], %17 {strides = array<i32>} : memref<1x26624xf32, #tpu.memory_space<vmem>>, vector<1x26624xf32>,
    return
  }
  func.func @transform_0(%arg0: i32, %arg1: memref<1xi32, #tpu.memory_space<smem>>) -> (i32, i32, i32) {
    %c0 = arith.constant 0 : index
    %0 = memref.load %arg1[%c0] : memref<1xi32, #tpu.memory_space<smem>>
    %c0_i32 = arith.constant 0 : i32
    %c0_i32_0 = arith.constant 0 : i32
    %c0_i32_1 = arith.constant 0 : i32
    return %0, %c0_i32, %c0_i32_0 : i32, i32, i32
  }
  func.func @transform_1(%arg0: i32, %arg1: memref<1xi32, #tpu.memory_space<smem>>) -> (i32, i32) {
    %c0_i32 = arith.constant 0 : i32
    %c0_i32_0 = arith.constant 0 : i32
    %c0_i32_1 = arith.constant 0 : i32
    return %c0_i32, %c0_i32_0 : i32, i32
  }
  func.func @transform_2(%arg0: i32, %arg1: memref<1xi32, #tpu.memory_space<smem>>) -> (i32, i32) {
    %c0_i32 = arith.constant 0 : i32
    %c0_i32_0 = arith.constant 0 : i32
    %c0_i32_1 = arith.constant 0 : i32
    return %c0_i32, %c0_i32_0 : i32, i32
  }
  func.func @transform_3(%arg0: i32, %arg1: memref<1xi32, #tpu.memory_space<smem>>) -> (i32, i32) {
    %c0_i32 = arith.constant 0 : i32
    %c0_i32_0 = arith.constant 0 : i32
    %c0_i32_1 = arith.constant 0 : i32
    return %c0_i32, %c0_i32_0 : i32, i32
  }
  func.func @transform_4(%arg0: i32, %arg1: memref<1xi32, #tpu.memory_space<smem>>) -> (i32, i32) {
    %c0_i32 = arith.constant 0 : i32
    %c0_i32_0 = arith.constant 0 : i32
    %c0_i32_1 = arith.constant 0 : i32
    return %c0_i32, %c0_i32_0 : i32, i32
  }
  func.func @transform_5(%arg0: i32, %arg1: memref<1xi32, #tpu.memory_space<smem>>) -> (i32, i32, i32) {
    %c0_i32 = arith.constant 0 : i32
    %c0_i32_0 = arith.constant 0 : i32
    %c0_i32_1 = arith.constant 0 : i32
    return %arg0, %c0_i32, %c0_i32_0 : i32, i32, i32
  }
  func.func @transform_6(%arg0: i32, %arg1: memref<1xi32, #tpu.memory_space<smem>>) -> (i32, i32) {
    %c0_i32 = arith.constant 0 : i32
    %c0_i32_0 = arith.constant 0 : i32
    return %c0_i32, %arg0 : i32, i32
  }
  func.func @transform_7(%arg0: i32, %arg1: memref<1xi32, #tpu.memory_space<smem>>) -> (i32, i32) {
    %c0_i32 = arith.constant 0 : i32
    %c0_i32_0 = arith.constant 0 : i32
    return %c0_i32, %arg0 : i32, i32
  }
}

</mosaic_0001>

<llo_original>
// kernel: tpu_custom_call.1
$region0: #{tpu_custom_call.1}
  #allocation0 [shape = 'u32[]', space=smem, size = 0x4, offset = 0x4, fixed_abs, tag = 'smem constant byte address 0x4 - core index']
  #allocation1 [shape = 'u32[72,128]{1,0:T(1,128)}', space=vmem, size = 0x9000, scoped, tag = 'internal scratch']
  #allocation2 [shape = 's32[1]{0}', space=sflag, size = 0x4, scoped, tag = 'scoped memory for tpu_custom_call.1']
  #allocation3 [shape = 's32[1]{0:T(128)S(6)}', space=smem, size = 0x200, scoped, tag = 'prefetched SMEM operand 0']
  %s0 = inlined_call_operand.<no memory space> [shape: s32[1], index: 0, kind: input, shape index: {}]
  %s1 = inlined_call_operand.hbm [shape: f32[8,1,32], index: 1, kind: input, shape index: {}]
  %s2 = inlined_call_operand.hbm [shape: f32[32,32], index: 2, kind: input, shape index: {}]
  %s3 = inlined_call_operand.hbm [shape: f32[1,32], index: 3, kind: input, shape index: {}]
  %s4 = inlined_call_operand.hbm [shape: f32[32,32], index: 4, kind: input, shape index: {}]
  %s5 = inlined_call_operand.hbm [shape: f32[1,32], index: 5, kind: input, shape index: {}]
  %s6 = inlined_call_operand.hbm [shape: bf16[2,32,26624], index: 6, kind: input, shape index: {}]
  %s7 = inlined_call_operand.hbm [shape: f32[1,53248], index: 7, kind: input, shape index: {}]
  %s8 = inlined_call_operand.hbm [shape: f32[1,53248], index: 8, kind: output, shape index: {}]
  %s9 = sld [smem:[#allocation0]]
  $region89: #{tpu_custom_call.1} parent=0
    _
  %s11 = ssub.s32 1, %s9
  %s12 = scalar_select 0, %s11, %s9
  %13 = sst [smem:[#allocation3]] %s0
  $region1: #{tpu_custom_call.1} parent=0
    #allocation4 [shape = 'u8[512]{0}', space=vmem, size = 0x400, scoped, tag = 'input window, operand 1, single buffered']
    #allocation5 [shape = 's32[2]{0}', space=sflag, size = 0x8, scoped, tag = 'scoped memory for tpu_custom_call.1']
    #allocation6 [shape = 's32[2]{0}', space=sflag, size = 0x8, scoped, tag = 'scoped memory for tpu_custom_call.1']
    #allocation7 [shape = 'u8[16384]{0}', space=vmem, size = 0x4000, scoped, tag = 'input window, operand 2, single buffered']
    #allocation8 [shape = 's32[1]{0}', space=sflag, size = 0x4, scoped, tag = 'scoped memory for tpu_custom_call.1']
    #allocation9 [shape = 'u8[512]{0}', space=vmem, size = 0x400, scoped, tag = 'input window, operand 3, single buffered']
    #allocation10 [shape = 'u8[16384]{0}', space=vmem, size = 0x4000, scoped, tag = 'input window, operand 4, single buffered']
    #allocation11 [shape = 's32[1]{0}', space=sflag, size = 0x4, scoped, tag = 'scoped memory for tpu_custom_call.1']
    #allocation12 [shape = 'u8[512]{0}', space=vmem, size = 0x400, scoped, tag = 'input window, operand 5, single buffered']
    #allocation13 [shape = 'u8[3407872]{0}', space=vmem, size = 0x340000, scoped, tag = 'input window, operand 6']
    #allocation14 [shape = 's32[2]{0}', space=sflag, size = 0x8, scoped, tag = 'scoped memory for tpu_custom_call.1']
    #allocation15 [shape = 'u8[212992]{0}', space=vmem, size = 0x34000, scoped, tag = 'input window, operand 7']
    #allocation16 [shape = 'u8[212992]{0}', space=vmem, size = 0x34000, scoped, tag = 'output window, operand 0']
    %14 = vsyncpa [#allocation5], 0
    %15 = vsyncpa [#allocation8], 0
    %16 = vsyncpa [#allocation11], 0
    %17 = vsyncpa [#allocation14], 0
    %s18 = scalar_lea.sflag [#allocation14], 1
    %19 = vsyncpa %s18, 0
    %20 = vsyncpa [#allocation6], 0
    %s21 = scalar_lea.sflag [#allocation6], 1
    %22 = vsyncpa %s21, 0
    loop: start=0, step=1, limit=4
    $region2: #{tpu_custom_call.1} parent=1 // loop_pre_header
      _
    $region3: #{tpu_custom_call.1} parent=1 // loop_header
      %s24 = sphi 0, %s28
      %p25 = scmp.ge.s32.totalorder %s24, 4
      %s36 = sphi 0, %s38
      %s39 = sphi 0, %s36
      %s40 = sphi 0, %s39
      %s56 = sphi 0, %s40
      %s60 = sphi 0, %s60
      %s62 = sphi 0, %s60
      %s63 = sphi 0, %s62
      %s77 = sphi 0, %s63
      %s81 = sphi 0, %s81
      %s83 = sphi 0, %s81
      %s84 = sphi 0, %s83
      %s98 = sphi 0, %s84
      %s102 = sphi 0, %s102
      %s104 = sphi 0, %s102
      %s105 = sphi 0, %s104
      %s119 = sphi 0, %s105
      %s123 = sphi 0, %s123
      %s125 = sphi 0, %s123
      %s126 = sphi 0, %s125
      %s140 = sphi 0, %s126
      %s146 = sphi 0, %s148
      %s149 = sphi 0, %s146
      %s150 = sphi 0, %s149
      %s166 = sphi 0, %s150
      %s172 = sphi 0, %s174
      %s175 = sphi 0, %s172
      %s176 = sphi 0, %s175
      %s192 = sphi 0, %s176
      %s198 = sphi 0, %s200
      %s201 = sphi 0, %s198
      %s202 = sphi 0, %s201
      %s218 = sphi 0, %s202
    $region4: #{tpu_custom_call.1} parent=1 // loop_header_branch
      %27 = sbr.rel (%p25) target = $region8
    $region5: #{tpu_custom_call.1} parent=1 // loop_body
      %s29 = ssub.s32 %s24, 1
      %s30 = ssub.s32 %s24, 2
      %s31 = sadd.s32 %s24, 1
      %s32 = sld [smem:[#allocation3]]
      %s33 = sld [smem:[#allocation3]]
      %s34 = ssub.s32 %s32, %s33
      %p35 = scmp.eq.s32.totalorder %s34, 0
      %s37 = sadd.s32 %s36, 1
      %s38 = scalar_select %p35, %s36, %s37
      %p41 = pneg %p35
      %p42 = scmp.eq.s32.totalorder %s24, 1
      %p43 = por %p41, %p42
      %p44 = scmp.ne.s32.totalorder %s36, %s39
      %p45 = scmp.eq.s32.totalorder %s24, 0
      %p46 = por %p44, %p45
      %p47 = scmp.ne.s32.totalorder %s36, %s39
      %p48 = scmp.eq.s32.totalorder %s29, 1
      %p49 = por %p47, %p48
      %p50 = scmp.ne.s32.totalorder %s39, %s40
      %p51 = scmp.eq.s32.totalorder %s29, 0
      %p52 = por %p50, %p51
      %p53 = scmp.ne.s32.totalorder %s39, %s40
      %p54 = scmp.eq.s32.totalorder %s30, 1
      %p55 = por %p53, %p54
      %p57 = scmp.ne.s32.totalorder %s40, %s56
      %p58 = scmp.eq.s32.totalorder %s30, 0
      %p59 = por %p57, %p58
      %s61 = sadd.s32 %s60, 1
      %p64 = scmp.eq.s32.totalorder %s24, 1
      %p65 = scmp.ne.s32.totalorder %s60, %s62
      %p66 = scmp.eq.s32.totalorder %s24, 0
      %p67 = por %p65, %p66
      %p68 = scmp.ne.s32.totalorder %s60, %s62
      %p69 = scmp.eq.s32.totalorder %s29, 1
      %p70 = por %p68, %p69
      %p71 = scmp.ne.s32.totalorder %s62, %s63
      %p72 = scmp.eq.s32.totalorder %s29, 0
      %p73 = por %p71, %p72
      %p74 = scmp.ne.s32.totalorder %s62, %s63
      %p75 = scmp.eq.s32.totalorder %s30, 1
      %p76 = por %p74, %p75
      %p78 = scmp.ne.s32.totalorder %s63, %s77
      %p79 = scmp.eq.s32.totalorder %s30, 0
      %p80 = por %p78, %p79
      %s82 = sadd.s32 %s81, 1
      %p85 = scmp.eq.s32.totalorder %s24, 1
      %p86 = scmp.ne.s32.totalorder %s81, %s83
      %p87 = scmp.eq.s32.totalorder %s24, 0
      %p88 = por %p86, %p87
      %p89 = scmp.ne.s32.totalorder %s81, %s83
      %p90 = scmp.eq.s32.totalorder %s29, 1
      %p91 = por %p89, %p90
      %p92 = scmp.ne.s32.totalorder %s83, %s84
      %p93 = scmp.eq.s32.totalorder %s29, 0
      %p94 = por %p92, %p93
      %p95 = scmp.ne.s32.totalorder %s83, %s84
      %p96 = scmp.eq.s32.totalorder %s30, 1
      %p97 = por %p95, %p96
      %p99 = scmp.ne.s32.totalorder %s84, %s98
      %p100 = scmp.eq.s32.totalorder %s30, 0
      %p101 = por %p99, %p100
      %s103 = sadd.s32 %s102, 1
      %p106 = scmp.eq.s32.totalorder %s24, 1
      %p107 = scmp.ne.s32.totalorder %s102, %s104
      %p108 = scmp.eq.s32.totalorder %s24, 0
      %p109 = por %p107, %p108
      %p110 = scmp.ne.s32.totalorder %s102, %s104
      %p111 = scmp.eq.s32.totalorder %s29, 1
      %p112 = por %p110, %p111
      %p113 = scmp.ne.s32.totalorder %s104, %s105
      %p114 = scmp.eq.s32.totalorder %s29, 0
      %p115 = por %p113, %p114
      %p116 = scmp.ne.s32.totalorder %s104, %s105
      %p117 = scmp.eq.s32.totalorder %s30, 1
      %p118 = por %p116, %p117
      %p120 = scmp.ne.s32.totalorder %s105, %s119
      %p121 = scmp.eq.s32.totalorder %s30, 0
      %p122 = por %p120, %p121
      %s124 = sadd.s32 %s123, 1
      %p127 = scmp.eq.s32.totalorder %s24, 1
      %p128 = scmp.ne.s32.totalorder %s123, %s125
      %p129 = scmp.eq.s32.totalorder %s24, 0
      %p130 = por %p128, %p129
      %p131 = scmp.ne.s32.totalorder %s123, %s125
      %p132 = scmp.eq.s32.totalorder %s29, 1
      %p133 = por %p131, %p132
      %p134 = scmp.ne.s32.totalorder %s125, %s126
      %p135 = scmp.eq.s32.totalorder %s29, 0
      %p136 = por %p134, %p135
      %p137 = scmp.ne.s32.totalorder %s125, %s126
      %p138 = scmp.eq.s32.totalorder %s30, 1
      %p139 = por %p137, %p138
      %p141 = scmp.ne.s32.totalorder %s126, %s140
      %p142 = scmp.eq.s32.totalorder %s30, 0
      %p143 = por %p141, %p142
      %s144 = ssub.s32 %s24, %s31
      %p145 = scmp.eq.s32.totalorder %s144, 0
      %s147 = sadd.s32 %s146, 1
      %s148 = scalar_select %p145, %s146, %s147
      %p151 = pneg %p145
      %p152 = scmp.eq.s32.totalorder %s24, 1
      %p153 = por %p151, %p152
      %p154 = scmp.ne.s32.totalorder %s146, %s149
      %p155 = scmp.eq.s32.totalorder %s24, 0
      %p156 = por %p154, %p155
      %p157 = scmp.ne.s32.totalorder %s146, %s149
      %p158 = scmp.eq.s32.totalorder %s29, 1
      %p159 = por %p157, %p158
      %p160 = scmp.ne.s32.totalorder %s149, %s150
      %p161 = scmp.eq.s32.totalorder %s29, 0
      %p162 = por %p160, %p161
      %p163 = scmp.ne.s32.totalorder %s149, %s150
      %p164 = scmp.eq.s32.totalorder %s30, 1
      %p165 = por %p163, %p164
      %p167 = scmp.ne.s32.totalorder %s150, %s166
      %p168 = scmp.eq.s32.totalorder %s30, 0
      %p169 = por %p167, %p168
      %s170 = ssub.s32 %s24, %s31
      %p171 = scmp.eq.s32.totalorder %s170, 0
      %s173 = sadd.s32 %s172, 1
      %s174 = scalar_select %p171, %s172, %s173
      %p177 = pneg %p171
      %p178 = scmp.eq.s32.totalorder %s24, 1
      %p179 = por %p177, %p178
      %p180 = scmp.ne.s32.totalorder %s172, %s175
      %p181 = scmp.eq.s32.totalorder %s24, 0
      %p182 = por %p180, %p181
      %p183 = scmp.ne.s32.totalorder %s172, %s175
      %p184 = scmp.eq.s32.totalorder %s29, 1
      %p185 = por %p183, %p184
      %p186 = scmp.ne.s32.totalorder %s175, %s176
      %p187 = scmp.eq.s32.totalorder %s29, 0
      %p188 = por %p186, %p187
      %p189 = scmp.ne.s32.totalorder %s175, %s176
      %p190 = scmp.eq.s32.totalorder %s30, 1
      %p191 = por %p189, %p190
      %p193 = scmp.ne.s32.totalorder %s176, %s192
      %p194 = scmp.eq.s32.totalorder %s30, 0
      %p195 = por %p193, %p194
      %s196 = ssub.s32 %s24, %s31
      %p197 = scmp.eq.s32.totalorder %s196, 0
      %s199 = sadd.s32 %s198, 1
      %s200 = scalar_select %p197, %s198, %s199
      %p203 = pneg %p197
      %p204 = scmp.eq.s32.totalorder %s24, 1
      %p205 = por %p203, %p204
      %p206 = scmp.ne.s32.totalorder %s198, %s201
      %p207 = scmp.eq.s32.totalorder %s24, 0
      %p208 = por %p206, %p207
      %p209 = scmp.ne.s32.totalorder %s198, %s201
      %p210 = scmp.eq.s32.totalorder %s29, 1
      %p211 = por %p209, %p210
      %p212 = scmp.ne.s32.totalorder %s201, %s202
      %p213 = scmp.eq.s32.totalorder %s29, 0
      %p214 = por %p212, %p213
      %p215 = scmp.ne.s32.totalorder %s201, %s202
      %p216 = scmp.eq.s32.totalorder %s30, 1
      %p217 = por %p215, %p216
      %p219 = scmp.ne.s32.totalorder %s202, %s218
      %p220 = scmp.eq.s32.totalorder %s30, 0
      %p221 = por %p219, %p220
      %p222 = scmp.le.s32.totalorder 1, %s24
      %p223 = scmp.lt.s32.totalorder %s24, 3
      %p224 = pnand %p222, %p223
      %p225 = pneg %p224
      // Predicated region
      $region9: #{tpu_custom_call.1} parent=5 // pred_check
        _
      $region10: #{tpu_custom_call.1} parent=5 // pred_check_branch
        %227 = sbr.rel (%p224) target = $region12
      $region11: #{tpu_custom_call.1} parent=5 // pred_region
        %s228 = ssub.s32 %s24, 1
        // Predicated region
        $region13: #{tpu_custom_call.1} parent=11 // pred_check
          %p229 = pneg %p52
        $region14: #{tpu_custom_call.1} parent=11 // pred_check_branch
          %231 = sbr.rel (%p229) target = $region16
        $region15: #{tpu_custom_call.1} parent=11 // pred_region
          %s232 = sld [smem:[#allocation3]]
          %234 = vsyncadd [#allocation5], 0
          %s235 = scalar_lea.hbm %s1, %s232
          %s237 = sshll.u32 %s235, 4
          %s238 = int_to_ptr.hbm [resolvable:$true] %s237
          %s239 = sshll.u32 [#allocation4], 4
          %s240 = int_to_ptr.vmem [resolvable:$true] %s239
          %242 = dma.hbm_to_vmem [thread:$0]  %s238, 16, %s240, [#allocation5]
        $region16: #{tpu_custom_call.1} parent=11 // pred_fallthru
          _
        // Predicated region
        $region17: #{tpu_custom_call.1} parent=11 // pred_check
          %p243 = pneg %p73
        $region18: #{tpu_custom_call.1} parent=11 // pred_check_branch
          %245 = sbr.rel (%p243) target = $region20
        $region19: #{tpu_custom_call.1} parent=11 // pred_region
          %247 = vsyncadd [#allocation8], 0
          %s248 = sshll.u32 %s2, 4
          %s249 = int_to_ptr.hbm [resolvable:$true] %s248
          %s250 = sshll.u32 [#allocation7], 4
          %s251 = int_to_ptr.vmem [resolvable:$true] %s250
          %256 = dma.hbm_to_vmem [thread:$0]  %s249, 512, %s251, [#allocation8], 128, 128, 8
        $region20: #{tpu_custom_call.1} parent=11 // pred_fallthru
          _
        // Predicated region
        $region21: #{tpu_custom_call.1} parent=11 // pred_check
          %p257 = pneg %p94
        $region22: #{tpu_custom_call.1} parent=11 // pred_check_branch
          %259 = sbr.rel (%p257) target = $region24
        $region23: #{tpu_custom_call.1} parent=11 // pred_region
          %261 = vsyncadd [#allocation8], 0
          %s263 = sshll.u32 %s3, 4
          %s264 = int_to_ptr.hbm [resolvable:$true] %s263
          %s265 = sshll.u32 [#allocation9], 4
          %s266 = int_to_ptr.vmem [resolvable:$true] %s265
          %268 = dma.hbm_to_vmem [thread:$0]  %s264, 16, %s266, [#allocation8]
        $region24: #{tpu_custom_call.1} parent=11 // pred_fallthru
          _
        // Predicated region
        $region25: #{tpu_custom_call.1} parent=11 // pred_check
          %p269 = pneg %p115
        $region26: #{tpu_custom_call.1} parent=11 // pred_check_branch
          %271 = sbr.rel (%p269) target = $region28
        $region27: #{tpu_custom_call.1} parent=11 // pred_region
          %273 = vsyncadd [#allocation11], 0
          %s274 = sshll.u32 %s4, 4
          %s275 = int_to_ptr.hbm [resolvable:$true] %s274
          %s276 = sshll.u32 [#allocation10], 4
          %s277 = int_to_ptr.vmem [resolvable:$true] %s276
          %282 = dma.hbm_to_vmem [thread:$0]  %s275, 512, %s277, [#allocation11], 128, 128, 8
        $region28: #{tpu_custom_call.1} parent=11 // pred_fallthru
          _
        // Predicated region
        $region29: #{tpu_custom_call.1} parent=11 // pred_check
          %p283 = pneg %p136
        $region30: #{tpu_custom_call.1} parent=11 // pred_check_branch
          %285 = sbr.rel (%p283) target = $region32
        $region31: #{tpu_custom_call.1} parent=11 // pred_region
          %287 = vsyncadd [#allocation11], 0
          %s289 = sshll.u32 %s5, 4
          %s290 = int_to_ptr.hbm [resolvable:$true] %s289
          %s291 = sshll.u32 [#allocation12], 4
          %s292 = int_to_ptr.vmem [resolvable:$true] %s291
          %294 = dma.hbm_to_vmem [thread:$0]  %s290, 16, %s292, [#allocation11]
        $region32: #{tpu_custom_call.1} parent=11 // pred_fallthru
          _
      $region12: #{tpu_custom_call.1} parent=5 // pred_fallthru
        _
      %p295 = scmp.lt.s32.totalorder %s24, 2
      // Predicated region
      $region33: #{tpu_custom_call.1} parent=5 // pred_check
        %p296 = pneg %p295
      $region34: #{tpu_custom_call.1} parent=5 // pred_check_branch
        %298 = sbr.rel (%p296) target = $region36
      $region35: #{tpu_custom_call.1} parent=5 // pred_region
        // Predicated region
        $region37: #{tpu_custom_call.1} parent=35 // pred_check
          %p299 = pneg %p156
        $region38: #{tpu_custom_call.1} parent=35 // pred_check_branch
          %301 = sbr.rel (%p299) target = $region40
        $region39: #{tpu_custom_call.1} parent=35 // pred_region
          %s302 = sand.u32 %s24, 1
          %s303 = scalar_lea.sflag [#allocation14], %s302
          %s304 = sand.u32 %s146, 1
          %s305 = smul.addr %s304, 3328
          %s306 = scalar_lea.vmem [#allocation13], %s305
          %308 = vsyncadd %s303, 0
          %s309 = smul.addr %s24, 832
          %s310 = smul.addr %s309, 4
          %s311 = scalar_lea.hbm %s6, %s310
          %s312 = sshll.u32 %s311, 4
          %s313 = int_to_ptr.hbm [resolvable:$true] %s312
          %s314 = sshll.u32 %s306, 4
          %s315 = int_to_ptr.vmem [resolvable:$true] %s314
          %320 = dma.hbm_to_vmem [thread:$0]  %s313, 53248, %s315, %s303, 13312, 13312, 832
        $region40: #{tpu_custom_call.1} parent=35 // pred_fallthru
          _
        // Predicated region
        $region41: #{tpu_custom_call.1} parent=35 // pred_check
          %p321 = pneg %p182
        $region42: #{tpu_custom_call.1} parent=35 // pred_check_branch
          %323 = sbr.rel (%p321) target = $region44
        $region43: #{tpu_custom_call.1} parent=35 // pred_region
          %s324 = sand.u32 %s24, 1
          %s325 = scalar_lea.sflag [#allocation14], %s324
          %s326 = sand.u32 %s172, 1
          %s327 = smul.addr %s326, 208
          %s328 = scalar_lea.vmem [#allocation15], %s327
          %s329 = smul.u32 208, %s24
          %331 = vsyncadd %s325, 0
          %s332 = scalar_lea.hbm %s7, %s329
          %s334 = sshll.u32 %s332, 4
          %s335 = int_to_ptr.hbm [resolvable:$true] %s334
          %s336 = sshll.u32 %s328, 4
          %s337 = int_to_ptr.vmem [resolvable:$true] %s336
          %339 = dma.hbm_to_vmem [thread:$0]  %s335, 3328, %s337, %s325
        $region44: #{tpu_custom_call.1} parent=35 // pred_fallthru
          _
      $region36: #{tpu_custom_call.1} parent=5 // pred_fallthru
        _
      %p340 = scmp.le.s32.totalorder 1, %s24
      %p341 = scmp.lt.s32.totalorder %s24, 3
      %p342 = pnand %p340, %p341
      %p343 = pneg %p342
      // Predicated region
      $region45: #{tpu_custom_call.1} parent=5 // pred_check
        _
      $region46: #{tpu_custom_call.1} parent=5 // pred_check_branch
        %345 = sbr.rel (%p342) target = $region48
      $region47: #{tpu_custom_call.1} parent=5 // pred_region
        %s346 = ssub.s32 %s24, 1
        // Predicated region
        $region49: #{tpu_custom_call.1} parent=47 // pred_check
          %p347 = pneg %p52
        $region50: #{tpu_custom_call.1} parent=47 // pred_check_branch
          %349 = sbr.rel (%p347) target = $region52
        $region51: #{tpu_custom_call.1} parent=47 // pred_region
          %351 = dma.done [#allocation5], 16
        $region52: #{tpu_custom_call.1} parent=47 // pred_fallthru
          _
        // Predicated region
        $region53: #{tpu_custom_call.1} parent=47 // pred_check
          %p352 = pneg %p73
        $region54: #{tpu_custom_call.1} parent=47 // pred_check_branch
          %354 = sbr.rel (%p352) target = $region56
        $region55: #{tpu_custom_call.1} parent=47 // pred_region
          %356 = dma.done [#allocation8], 512
        $region56: #{tpu_custom_call.1} parent=47 // pred_fallthru
          _
        // Predicated region
        $region57: #{tpu_custom_call.1} parent=47 // pred_check
          %p357 = pneg %p94
        $region58: #{tpu_custom_call.1} parent=47 // pred_check_branch
          %359 = sbr.rel (%p357) target = $region60
        $region59: #{tpu_custom_call.1} parent=47 // pred_region
          %361 = dma.done [#allocation8], 16
        $region60: #{tpu_custom_call.1} parent=47 // pred_fallthru
          _
        // Predicated region
        $region61: #{tpu_custom_call.1} parent=47 // pred_check
          %p362 = pneg %p115
        $region62: #{tpu_custom_call.1} parent=47 // pred_check_branch
          %364 = sbr.rel (%p362) target = $region64
        $region63: #{tpu_custom_call.1} parent=47 // pred_region
          %366 = dma.done [#allocation11], 512
        $region64: #{tpu_custom_call.1} parent=47 // pred_fallthru
          _
        // Predicated region
        $region65: #{tpu_custom_call.1} parent=47 // pred_check
          %p367 = pneg %p136
        $region66: #{tpu_custom_call.1} parent=47 // pred_check_branch
          %369 = sbr.rel (%p367) target = $region68
        $region67: #{tpu_custom_call.1} parent=47 // pred_region
          %371 = dma.done [#allocation11], 16
        $region68: #{tpu_custom_call.1} parent=47 // pred_fallthru
          _
        %s372 = sand.u32 %s29, 1
        %s373 = scalar_lea.sflag [#allocation14], %s372
        %s374 = sand.u32 %s149, 1
        %s375 = smul.addr %s374, 3328
        %s376 = scalar_lea.vmem [#allocation13], %s375
        // Predicated region
        $region69: #{tpu_custom_call.1} parent=47 // pred_check
          %p377 = pneg %p162
        $region70: #{tpu_custom_call.1} parent=47 // pred_check_branch
          %379 = sbr.rel (%p377) target = $region72
        $region71: #{tpu_custom_call.1} parent=47 // pred_region
          %381 = dma.done %s373, 53248
        $region72: #{tpu_custom_call.1} parent=47 // pred_fallthru
          _
        %s382 = sand.u32 %s29, 1
        %s383 = scalar_lea.sflag [#allocation14], %s382
        %s384 = sand.u32 %s175, 1
        %s385 = smul.addr %s384, 208
        %s386 = scalar_lea.vmem [#allocation15], %s385
        // Predicated region
        $region73: #{tpu_custom_call.1} parent=47 // pred_check
          %p387 = pneg %p188
        $region74: #{tpu_custom_call.1} parent=47 // pred_check_branch
          %389 = sbr.rel (%p387) target = $region76
        $region75: #{tpu_custom_call.1} parent=47 // pred_region
          %391 = dma.done %s383, 3328
        $region76: #{tpu_custom_call.1} parent=47 // pred_fallthru
          _
        %p392 = pneg %p52
        %p393 = pneg %p49
        %p394 = pneg %p73
        %p395 = pneg %p70
        %p396 = pneg %p94
        %p397 = pneg %p91
        %p398 = pneg %p115
        %p399 = pneg %p112
        %p400 = pneg %p136
        %p401 = pneg %p133
        %s402 = sand.u32 %s29, 1
        %s403 = scalar_lea.sflag [#allocation14], %s402
        %s404 = sand.u32 %s149, 1
        %s405 = smul.addr %s404, 3328
        %s406 = scalar_lea.vmem [#allocation13], %s405
        %p407 = pneg %p162
        %p408 = pneg %p159
        %s409 = sand.u32 %s29, 1
        %s410 = scalar_lea.sflag [#allocation14], %s409
        %s411 = sand.u32 %s175, 1
        %s412 = smul.addr %s411, 208
        %s413 = scalar_lea.vmem [#allocation15], %s412
        %p414 = pneg %p188
        %p415 = pneg %p185
        %p416 = pneg %p214
        %p417 = pneg %p211
        %s418 = sand.u32 %s201, 1
        %s419 = scalar_lea.sflag [#allocation6], %s418
        %s420 = sand.u32 %s201, 1
        %s421 = smul.addr %s420, 208
        %s422 = scalar_lea.vmem [#allocation16], %s421
        %s423 = sld [smem:[#allocation3]]
        %s424 = smul.u32 208, %s29
        %s425 = smul.u32 208, %s29
        %v427 = vld [vmem:[#allocation4] sm:$0x1]
        %v428 = vld [vmem:[#allocation7] sm:$0xff]
        %v429 = vld [vmem:[#allocation7 + $0x8] sm:$0xff]
        %v430 = vld [vmem:[#allocation7 + $0x10] sm:$0xff]
        %v431 = vld [vmem:[#allocation7 + $0x18] sm:$0xff]
        %v432 = vld [vmem:[#allocation9] sm:$0x1]
        %vm433 = vcmask 261120
        %v435 = vsel %vm433, %v427, 0
        %437 = vmatpush.msra.mxu0 0.0
        %438 = vmatpush.msra.mxu0 0.0
        %439 = vmatpush.msra.mxu0 0.0
        %440 = vmatpush.msra.mxu0 0.0
        %441 = vmatpush.msra.mxu0 0.0
        %442 = vmatpush.msra.mxu0 0.0
        %443 = vmatpush.msra.mxu0 0.0
        %444 = vmatpush.msra.mxu0 0.0
        %445 = vmatpush.msra.mxu0 0.0
        %446 = vmatpush.msra.mxu0 0.0
        %447 = vmatpush.msra.mxu0 0.0
        %448 = vmatpush.msra.mxu0 0.0
        %449 = vmatpush.msra.mxu0 %v431
        %450 = vmatpush.msra.mxu0 %v430
        %451 = vmatpush.msra.mxu0 %v429
        %452 = vmatpush.msra.mxu0 %v428
        %453 = vmatmul.f32.gmra.mxu0 %v435
        %v454 = vpop.f32.mrf.mxu0
        %v455 = vadd.f32 %v432, %v454
        %456 = vdwg.mxu0
        %v457 = vmax.f32 %v455, 0.0
        %v458 = vld [vmem:[#allocation10] sm:$0xff]
        %v459 = vld [vmem:[#allocation10 + $0x8] sm:$0xff]
        %v460 = vld [vmem:[#allocation10 + $0x10] sm:$0xff]
        %v461 = vld [vmem:[#allocation10 + $0x18] sm:$0xff]
        %v462 = vld [vmem:[#allocation12] sm:$0x1]
        %v464 = vsel %vm433, %v457, 0
        %466 = vmatpush.msra.mxu0 0.0
        %467 = vmatpush.msra.mxu0 0.0
        %468 = vmatpush.msra.mxu0 0.0
        %469 = vmatpush.msra.mxu0 0.0
        %470 = vmatpush.msra.mxu0 0.0
        %471 = vmatpush.msra.mxu0 0.0
        %472 = vmatpush.msra.mxu0 0.0
        %473 = vmatpush.msra.mxu0 0.0
        %474 = vmatpush.msra.mxu0 0.0
        %475 = vmatpush.msra.mxu0 0.0
        %476 = vmatpush.msra.mxu0 0.0
        %477 = vmatpush.msra.mxu0 0.0
        %478 = vmatpush.msra.mxu0 %v461
        %479 = vmatpush.msra.mxu0 %v460
        %480 = vmatpush.msra.mxu0 %v459
        %481 = vmatpush.msra.mxu0 %v458
        %482 = vmatmul.f32.gmra.mxu0 %v464
        %v483 = vpop.f32.mrf.mxu0
        %v484 = vadd.f32 %v462, %v483
        %485 = vdwg.mxu0
        %v486 = vpack.c.bf16 %v484, %v484
        %v487 = vld [vmem:[%s376] sm:$0xff]
        %v488 = vld [vmem:[%s376 + $0x8] sm:$0xff]
        %v489 = vld [vmem:[%s376 + $0x10] sm:$0xff]
        %v490 = vld [vmem:[%s376 + $0x18] sm:$0xff]
        %v491 = vld [vmem:[%s376 + $0x20] sm:$0xff]
        %v492 = vld [vmem:[%s376 + $0x28] sm:$0xff]
        %v493 = vld [vmem:[%s376 + $0x30] sm:$0xff]
        %v494 = vld [vmem:[%s376 + $0x38] sm:$0xff]
        %v495 = vld [vmem:[%s376 + $0x40] sm:$0xff]
        %v496 = vld [vmem:[%s376 + $0x48] sm:$0xff]
        %v497 = vld [vmem:[%s376 + $0x50] sm:$0xff]
        %v498 = vld [vmem:[%s376 + $0x58] sm:$0xff]
        %v499 = vld [vmem:[%s376 + $0x60] sm:$0xff]
        %v500 = vld [vmem:[%s376 + $0x68] sm:$0xff]
        %v501 = vld [vmem:[%s376 + $0x70] sm:$0xff]
        %v502 = vld [vmem:[%s376 + $0x78] sm:$0xff]
        %v503 = vld [vmem:[%s376 + $0x80] sm:$0xff]
        %v504 = vld [vmem:[%s376 + $0x88] sm:$0xff]
        %v505 = vld [vmem:[%s376 + $0x90] sm:$0xff]
        %v506 = vld [vmem:[%s376 + $0x98] sm:$0xff]
        %v507 = vld [vmem:[%s376 + $0xa0] sm:$0xff]
        %v508 = vld [vmem:[%s376 + $0xa8] sm:$0xff]
        %v509 = vld [vmem:[%s376 + $0xb0] sm:$0xff]
        %v510 = vld [vmem:[%s376 + $0xb8] sm:$0xff]
        %v511 = vld [vmem:[%s376 + $0xc0] sm:$0xff]
        %v512 = vld [vmem:[%s376 + $0xc8] sm:$0xff]
        %v513 = vld [vmem:[%s376 + $0xd0] sm:$0xff]
        %v514 = vld [vmem:[%s376 + $0xd8] sm:$0xff]
        %v515 = vld [vmem:[%s376 + $0xe0] sm:$0xff]
        %v516 = vld [vmem:[%s376 + $0xe8] sm:$0xff]
        %v517 = vld [vmem:[%s376 + $0xf0] sm:$0xff]
        %v518 = vld [vmem:[%s376 + $0xf8] sm:$0xff]
        %v519 = vld [vmem:[%s376 + $0x100] sm:$0xff]
        %v520 = vld [vmem:[%s376 + $0x108] sm:$0xff]
        %v521 = vld [vmem:[%s376 + $0x110] sm:$0xff]
        %v522 = vld [vmem:[%s376 + $0x118] sm:$0xff]
        %v523 = vld [vmem:[%s376 + $0x120] sm:$0xff]
        %v524 = vld [vmem:[%s376 + $0x128] sm:$0xff]
        %v525 = vld [vmem:[%s376 + $0x130] sm:$0xff]
        %v526 = vld [vmem:[%s376 + $0x138] sm:$0xff]
        %v527 = vld [vmem:[%s376 + $0x140] sm:$0xff]
        %v528 = vld [vmem:[%s376 + $0x148] sm:$0xff]
        %v529 = vld [vmem:[%s376 + $0x150] sm:$0xff]
        %v530 = vld [vmem:[%s376 + $0x158] sm:$0xff]
        %v531 = vld [vmem:[%s376 + $0x160] sm:$0xff]
        %v532 = vld [vmem:[%s376 + $0x168] sm:$0xff]
        %v533 = vld [vmem:[%s376 + $0x170] sm:$0xff]
        %v534 = vld [vmem:[%s376 + $0x178] sm:$0xff]
        %v535 = vld [vmem:[%s376 + $0x180] sm:$0xff]
        %v536 = vld [vmem:[%s376 + $0x188] sm:$0xff]
        %v537 = vld [vmem:[%s376 + $0x190] sm:$0xff]
        %v538 = vld [vmem:[%s376 + $0x198] sm:$0xff]
        %v539 = vld [vmem:[%s376 + $0x1a0] sm:$0xff]
        %v540 = vld [vmem:[%s376 + $0x1a8] sm:$0xff]
        %v541 = vld [vmem:[%s376 + $0x1b0] sm:$0xff]
        %v542 = vld [vmem:[%s376 + $0x1b8] sm:$0xff]
        %v543 = vld [vmem:[%s376 + $0x1c0] sm:$0xff]
        %v544 = vld [vmem:[%s376 + $0x1c8] sm:$0xff]
        %v545 = vld [vmem:[%s376 + $0x1d0] sm:$0xff]
        %v546 = vld [vmem:[%s376 + $0x1d8] sm:$0xff]
        %v547 = vld [vmem:[%s376 + $0x1e0] sm:$0xff]
        %v548 = vld [vmem:[%s376 + $0x1e8] sm:$0xff]
        %v549 = vld [vmem:[%s376 + $0x1f0] sm:$0xff]
        %v550 = vld [vmem:[%s376 + $0x1f8] sm:$0xff]
        %v551 = vld [vmem:[%s376 + $0x200] sm:$0xff]
        %v552 = vld [vmem:[%s376 + $0x208] sm:$0xff]
        %v553 = vld [vmem:[%s376 + $0x210] sm:$0xff]
        %v554 = vld [vmem:[%s376 + $0x218] sm:$0xff]
        %v555 = vld [vmem:[%s376 + $0x220] sm:$0xff]
        %v556 = vld [vmem:[%s376 + $0x228] sm:$0xff]
        %v557 = vld [vmem:[%s376 + $0x230] sm:$0xff]
        %v558 = vld [vmem:[%s376 + $0x238] sm:$0xff]
        %v559 = vld [vmem:[%s376 + $0x240] sm:$0xff]
        %v560 = vld [vmem:[%s376 + $0x248] sm:$0xff]
        %v561 = vld [vmem:[%s376 + $0x250] sm:$0xff]
        %v562 = vld [vmem:[%s376 + $0x258] sm:$0xff]
        %v563 = vld [vmem:[%s376 + $0x260] sm:$0xff]
        %v564 = vld [vmem:[%s376 + $0x268] sm:$0xff]
        %v565 = vld [vmem:[%s376 + $0x270] sm:$0xff]
        %v566 = vld [vmem:[%s376 + $0x278] sm:$0xff]
        %v567 = vld [vmem:[%s376 + $0x280] sm:$0xff]
        %v568 = vld [vmem:[%s376 + $0x288] sm:$0xff]
        %v569 = vld [vmem:[%s376 + $0x290] sm:$0xff]
        %v570 = vld [vmem:[%s376 + $0x298] sm:$0xff]
        %v571 = vld [vmem:[%s376 + $0x2a0] sm:$0xff]
        %v572 = vld [vmem:[%s376 + $0x2a8] sm:$0xff]
        %v573 = vld [vmem:[%s376 + $0x2b0] sm:$0xff]
        %v574 = vld [vmem:[%s376 + $0x2b8] sm:$0xff]
        %v575 = vld [vmem:[%s376 + $0x2c0] sm:$0xff]
        %v576 = vld [vmem:[%s376 + $0x2c8] sm:$0xff]
        %v577 = vld [vmem:[%s376 + $0x2d0] sm:$0xff]
        %v578 = vld [vmem:[%s376 + $0x2d8] sm:$0xff]
        %v579 = vld [vmem:[%s376 + $0x2e0] sm:$0xff]
        %v580 = vld [vmem:[%s376 + $0x2e8] sm:$0xff]
        %v581 = vld [vmem:[%s376 + $0x2f0] sm:$0xff]
        %v582 = vld [vmem:[%s376 + $0x2f8] sm:$0xff]
        %v583 = vld [vmem:[%s376 + $0x300] sm:$0xff]
        %v584 = vld [vmem:[%s376 + $0x308] sm:$0xff]
        %v585 = vld [vmem:[%s376 + $0x310] sm:$0xff]
        %v586 = vld [vmem:[%s376 + $0x318] sm:$0xff]
        %v587 = vld [vmem:[%s376 + $0x320] sm:$0xff]
        %v588 = vld [vmem:[%s376 + $0x328] sm:$0xff]
        %v589 = vld [vmem:[%s376 + $0x330] sm:$0xff]
        %v590 = vld [vmem:[%s376 + $0x338] sm:$0xff]
        %v591 = vld [vmem:[%s376 + $0x340] sm:$0xff]
        %v592 = vld [vmem:[%s376 + $0x348] sm:$0xff]
        %v593 = vld [vmem:[%s376 + $0x350] sm:$0xff]
        %v594 = vld [vmem:[%s376 + $0x358] sm:$0xff]
        %v595 = vld [vmem:[%s376 + $0x360] sm:$0xff]
        %v596 = vld [vmem:[%s376 + $0x368] sm:$0xff]
        %v597 = vld [vmem:[%s376 + $0x370] sm:$0xff]
        %v598 = vld [vmem:[%s376 + $0x378] sm:$0xff]
        %v599 = vld [vmem:[%s376 + $0x380] sm:$0xff]
        %v600 = vld [vmem:[%s376 + $0x388] sm:$0xff]
        %v601 = vld [vmem:[%s376 + $0x390] sm:$0xff]
        %v602 = vld [vmem:[%s376 + $0x398] sm:$0xff]
        %v603 = vld [vmem:[%s376 + $0x3a0] sm:$0xff]
        %v604 = vld [vmem:[%s376 + $0x3a8] sm:$0xff]
        %v605 = vld [vmem:[%s376 + $0x3b0] sm:$0xff]
        %v606 = vld [vmem:[%s376 + $0x3b8] sm:$0xff]
        %v607 = vld [vmem:[%s376 + $0x3c0] sm:$0xff]
        %v608 = vld [vmem:[%s376 + $0x3c8] sm:$0xff]
        %v609 = vld [vmem:[%s376 + $0x3d0] sm:$0xff]
        %v610 = vld [vmem:[%s376 + $0x3d8] sm:$0xff]
        %v611 = vld [vmem:[%s376 + $0x3e0] sm:$0xff]
        %v612 = vld [vmem:[%s376 + $0x3e8] sm:$0xff]
        %v613 = vld [vmem:[%s376 + $0x3f0] sm:$0xff]
        %v614 = vld [vmem:[%s376 + $0x3f8] sm:$0xff]
        %v615 = vld [vmem:[%s376 + $0x400] sm:$0xff]
        %v616 = vld [vmem:[%s376 + $0x408] sm:$0xff]
        %v617 = vld [vmem:[%s376 + $0x410] sm:$0xff]
        %v618 = vld [vmem:[%s376 + $0x418] sm:$0xff]
        %v619 = vld [vmem:[%s376 + $0x420] sm:$0xff]
        %v620 = vld [vmem:[%s376 + $0x428] sm:$0xff]
        %v621 = vld [vmem:[%s376 + $0x430] sm:$0xff]
        %v622 = vld [vmem:[%s376 + $0x438] sm:$0xff]
        %v623 = vld [vmem:[%s376 + $0x440] sm:$0xff]
        %v624 = vld [vmem:[%s376 + $0x448] sm:$0xff]
        %v625 = vld [vmem:[%s376 + $0x450] sm:$0xff]
        %v626 = vld [vmem:[%s376 + $0x458] sm:$0xff]
        %v627 = vld [vmem:[%s376 + $0x460] sm:$0xff]
        %v628 = vld [vmem:[%s376 + $0x468] sm:$0xff]
        %v629 = vld [vmem:[%s376 + $0x470] sm:$0xff]
        %v630 = vld [vmem:[%s376 + $0x478] sm:$0xff]
        %v631 = vld [vmem:[%s376 + $0x480] sm:$0xff]
        %v632 = vld [vmem:[%s376 + $0x488] sm:$0xff]
        %v633 = vld [vmem:[%s376 + $0x490] sm:$0xff]
        %v634 = vld [vmem:[%s376 + $0x498] sm:$0xff]
        %v635 = vld [vmem:[%s376 + $0x4a0] sm:$0xff]
        %v636 = vld [vmem:[%s376 + $0x4a8] sm:$0xff]
        %v637 = vld [vmem:[%s376 + $0x4b0] sm:$0xff]
        %v638 = vld [vmem:[%s376 + $0x4b8] sm:$0xff]
        %v639 = vld [vmem:[%s376 + $0x4c0] sm:$0xff]
        %v640 = vld [vmem:[%s376 + $0x4c8] sm:$0xff]
        %v641 = vld [vmem:[%s376 + $0x4d0] sm:$0xff]
        %v642 = vld [vmem:[%s376 + $0x4d8] sm:$0xff]
        %v643 = vld [vmem:[%s376 + $0x4e0] sm:$0xff]
        %v644 = vld [vmem:[%s376 + $0x4e8] sm:$0xff]
        %v645 = vld [vmem:[%s376 + $0x4f0] sm:$0xff]
        %v646 = vld [vmem:[%s376 + $0x4f8] sm:$0xff]
        %v647 = vld [vmem:[%s376 + $0x500] sm:$0xff]
        %v648 = vld [vmem:[%s376 + $0x508] sm:$0xff]
        %v649 = vld [vmem:[%s376 + $0x510] sm:$0xff]
        %v650 = vld [vmem:[%s376 + $0x518] sm:$0xff]
        %v651 = vld [vmem:[%s376 + $0x520] sm:$0xff]
        %v652 = vld [vmem:[%s376 + $0x528] sm:$0xff]
        %v653 = vld [vmem:[%s376 + $0x530] sm:$0xff]
        %v654 = vld [vmem:[%s376 + $0x538] sm:$0xff]
        %v655 = vld [vmem:[%s376 + $0x540] sm:$0xff]
        %v656 = vld [vmem:[%s376 + $0x548] sm:$0xff]
        %v657 = vld [vmem:[%s376 + $0x550] sm:$0xff]
        %v658 = vld [vmem:[%s376 + $0x558] sm:$0xff]
        %v659 = vld [vmem:[%s376 + $0x560] sm:$0xff]
        %v660 = vld [vmem:[%s376 + $0x568] sm:$0xff]
        %v661 = vld [vmem:[%s376 + $0x570] sm:$0xff]
        %v662 = vld [vmem:[%s376 + $0x578] sm:$0xff]
        %v663 = vld [vmem:[%s376 + $0x580] sm:$0xff]
        %v664 = vld [vmem:[%s376 + $0x588] sm:$0xff]
        %v665 = vld [vmem:[%s376 + $0x590] sm:$0xff]
        %v666 = vld [vmem:[%s376 + $0x598] sm:$0xff]
        %v667 = vld [vmem:[%s376 + $0x5a0] sm:$0xff]
        %v668 = vld [vmem:[%s376 + $0x5a8] sm:$0xff]
        %v669 = vld [vmem:[%s376 + $0x5b0] sm:$0xff]
        %v670 = vld [vmem:[%s376 + $0x5b8] sm:$0xff]
        %v671 = vld [vmem:[%s376 + $0x5c0] sm:$0xff]
        %v672 = vld [vmem:[%s376 + $0x5c8] sm:$0xff]
        %v673 = vld [vmem:[%s376 + $0x5d0] sm:$0xff]
        %v674 = vld [vmem:[%s376 + $0x5d8] sm:$0xff]
        %v675 = vld [vmem:[%s376 + $0x5e0] sm:$0xff]
        %v676 = vld [vmem:[%s376 + $0x5e8] sm:$0xff]
        %v677 = vld [vmem:[%s376 + $0x5f0] sm:$0xff]
        %v678 = vld [vmem:[%s376 + $0x5f8] sm:$0xff]
        %v679 = vld [vmem:[%s376 + $0x600] sm:$0xff]
        %v680 = vld [vmem:[%s376 + $0x608] sm:$0xff]
        %v681 = vld [vmem:[%s376 + $0x610] sm:$0xff]
        %v682 = vld [vmem:[%s376 + $0x618] sm:$0xff]
        %v683 = vld [vmem:[%s376 + $0x620] sm:$0xff]
        %v684 = vld [vmem:[%s376 + $0x628] sm:$0xff]
        %v685 = vld [vmem:[%s376 + $0x630] sm:$0xff]
        %v686 = vld [vmem:[%s376 + $0x638] sm:$0xff]
        %v687 = vld [vmem:[%s376 + $0x640] sm:$0xff]
        %v688 = vld [vmem:[%s376 + $0x648] sm:$0xff]
        %v689 = vld [vmem:[%s376 + $0x650] sm:$0xff]
        %v690 = vld [vmem:[%s376 + $0x658] sm:$0xff]
        %v691 = vld [vmem:[%s376 + $0x660] sm:$0xff]
        %v692 = vld [vmem:[%s376 + $0x668] sm:$0xff]
        %v693 = vld [vmem:[%s376 + $0x670] sm:$0xff]
        %v694 = vld [vmem:[%s376 + $0x678] sm:$0xff]
        %v695 = vld [vmem:[%s376 + $0x680] sm:$0xff]
        %v696 = vld [vmem:[%s376 + $0x688] sm:$0xff]
        %v697 = vld [vmem:[%s376 + $0x690] sm:$0xff]
        %v698 = vld [vmem:[%s376 + $0x698] sm:$0xff]
        %v699 = vld [vmem:[%s376 + $0x6a0] sm:$0xff]
        %v700 = vld [vmem:[%s376 + $0x6a8] sm:$0xff]
        %v701 = vld [vmem:[%s376 + $0x6b0] sm:$0xff]
        %v702 = vld [vmem:[%s376 + $0x6b8] sm:$0xff]
        %v703 = vld [vmem:[%s376 + $0x6c0] sm:$0xff]
        %v704 = vld [vmem:[%s376 + $0x6c8] sm:$0xff]
        %v705 = vld [vmem:[%s376 + $0x6d0] sm:$0xff]
        %v706 = vld [vmem:[%s376 + $0x6d8] sm:$0xff]
        %v707 = vld [vmem:[%s376 + $0x6e0] sm:$0xff]
        %v708 = vld [vmem:[%s376 + $0x6e8] sm:$0xff]
        %v709 = vld [vmem:[%s376 + $0x6f0] sm:$0xff]
        %v710 = vld [vmem:[%s376 + $0x6f8] sm:$0xff]
        %v711 = vld [vmem:[%s376 + $0x700] sm:$0xff]
        %v712 = vld [vmem:[%s376 + $0x708] sm:$0xff]
        %v713 = vld [vmem:[%s376 + $0x710] sm:$0xff]
        %v714 = vld [vmem:[%s376 + $0x718] sm:$0xff]
        %v715 = vld [vmem:[%s376 + $0x720] sm:$0xff]
        %v716 = vld [vmem:[%s376 + $0x728] sm:$0xff]
        %v717 = vld [vmem:[%s376 + $0x730] sm:$0xff]
        %v718 = vld [vmem:[%s376 + $0x738] sm:$0xff]
        %v719 = vld [vmem:[%s376 + $0x740] sm:$0xff]
        %v720 = vld [vmem:[%s376 + $0x748] sm:$0xff]
        %v721 = vld [vmem:[%s376 + $0x750] sm:$0xff]
        %v722 = vld [vmem:[%s376 + $0x758] sm:$0xff]
        %v723 = vld [vmem:[%s376 + $0x760] sm:$0xff]
        %v724 = vld [vmem:[%s376 + $0x768] sm:$0xff]
        %v725 = vld [vmem:[%s376 + $0x770] sm:$0xff]
        %v726 = vld [vmem:[%s376 + $0x778] sm:$0xff]
        %v727 = vld [vmem:[%s376 + $0x780] sm:$0xff]
        %v728 = vld [vmem:[%s376 + $0x788] sm:$0xff]
        %v729 = vld [vmem:[%s376 + $0x790] sm:$0xff]
        %v730 = vld [vmem:[%s376 + $0x798] sm:$0xff]
        %v731 = vld [vmem:[%s376 + $0x7a0] sm:$0xff]
        %v732 = vld [vmem:[%s376 + $0x7a8] sm:$0xff]
        %v733 = vld [vmem:[%s376 + $0x7b0] sm:$0xff]
        %v734 = vld [vmem:[%s376 + $0x7b8] sm:$0xff]
        %v735 = vld [vmem:[%s376 + $0x7c0] sm:$0xff]
        %v736 = vld [vmem:[%s376 + $0x7c8] sm:$0xff]
        %v737 = vld [vmem:[%s376 + $0x7d0] sm:$0xff]
        %v738 = vld [vmem:[%s376 + $0x7d8] sm:$0xff]
        %v739 = vld [vmem:[%s376 + $0x7e0] sm:$0xff]
        %v740 = vld [vmem:[%s376 + $0x7e8] sm:$0xff]
        %v741 = vld [vmem:[%s376 + $0x7f0] sm:$0xff]
        %v742 = vld [vmem:[%s376 + $0x7f8] sm:$0xff]
        %v743 = vld [vmem:[%s376 + $0x800] sm:$0xff]
        %v744 = vld [vmem:[%s376 + $0x808] sm:$0xff]
        %v745 = vld [vmem:[%s376 + $0x810] sm:$0xff]
        %v746 = vld [vmem:[%s376 + $0x818] sm:$0xff]
        %v747 = vld [vmem:[%s376 + $0x820] sm:$0xff]
        %v748 = vld [vmem:[%s376 + $0x828] sm:$0xff]
        %v749 = vld [vmem:[%s376 + $0x830] sm:$0xff]
        %v750 = vld [vmem:[%s376 + $0x838] sm:$0xff]
        %v751 = vld [vmem:[%s376 + $0x840] sm:$0xff]
        %v752 = vld [vmem:[%s376 + $0x848] sm:$0xff]
        %v753 = vld [vmem:[%s376 + $0x850] sm:$0xff]
        %v754 = vld [vmem:[%s376 + $0x858] sm:$0xff]
        %v755 = vld [vmem:[%s376 + $0x860] sm:$0xff]
        %v756 = vld [vmem:[%s376 + $0x868] sm:$0xff]
        %v757 = vld [vmem:[%s376 + $0x870] sm:$0xff]
        %v758 = vld [vmem:[%s376 + $0x878] sm:$0xff]
        %v759 = vld [vmem:[%s376 + $0x880] sm:$0xff]
        %v760 = vld [vmem:[%s376 + $0x888] sm:$0xff]
        %v761 = vld [vmem:[%s376 + $0x890] sm:$0xff]
        %v762 = vld [vmem:[%s376 + $0x898] sm:$0xff]
        %v763 = vld [vmem:[%s376 + $0x8a0] sm:$0xff]
        %v764 = vld [vmem:[%s376 + $0x8a8] sm:$0xff]
        %v765 = vld [vmem:[%s376 + $0x8b0] sm:$0xff]
        %v766 = vld [vmem:[%s376 + $0x8b8] sm:$0xff]
        %v767 = vld [vmem:[%s376 + $0x8c0] sm:$0xff]
        %v768 = vld [vmem:[%s376 + $0x8c8] sm:$0xff]
        %v769 = vld [vmem:[%s376 + $0x8d0] sm:$0xff]
        %v770 = vld [vmem:[%s376 + $0x8d8] sm:$0xff]
        %v771 = vld [vmem:[%s376 + $0x8e0] sm:$0xff]
        %v772 = vld [vmem:[%s376 + $0x8e8] sm:$0xff]
        %v773 = vld [vmem:[%s376 + $0x8f0] sm:$0xff]
        %v774 = vld [vmem:[%s376 + $0x8f8] sm:$0xff]
        %v775 = vld [vmem:[%s376 + $0x900] sm:$0xff]
        %v776 = vld [vmem:[%s376 + $0x908] sm:$0xff]
        %v777 = vld [vmem:[%s376 + $0x910] sm:$0xff]
        %v778 = vld [vmem:[%s376 + $0x918] sm:$0xff]
        %v779 = vld [vmem:[%s376 + $0x920] sm:$0xff]
        %v780 = vld [vmem:[%s376 + $0x928] sm:$0xff]
        %v781 = vld [vmem:[%s376 + $0x930] sm:$0xff]
        %v782 = vld [vmem:[%s376 + $0x938] sm:$0xff]
        %v783 = vld [vmem:[%s376 + $0x940] sm:$0xff]
        %v784 = vld [vmem:[%s376 + $0x948] sm:$0xff]
        %v785 = vld [vmem:[%s376 + $0x950] sm:$0xff]
        %v786 = vld [vmem:[%s376 + $0x958] sm:$0xff]
        %v787 = vld [vmem:[%s376 + $0x960] sm:$0xff]
        %v788 = vld [vmem:[%s376 + $0x968] sm:$0xff]
        %v789 = vld [vmem:[%s376 + $0x970] sm:$0xff]
        %v790 = vld [vmem:[%s376 + $0x978] sm:$0xff]
        %v791 = vld [vmem:[%s376 + $0x980] sm:$0xff]
        %v792 = vld [vmem:[%s376 + $0x988] sm:$0xff]
        %v793 = vld [vmem:[%s376 + $0x990] sm:$0xff]
        %v794 = vld [vmem:[%s376 + $0x998] sm:$0xff]
        %v795 = vld [vmem:[%s376 + $0x9a0] sm:$0xff]
        %v796 = vld [vmem:[%s376 + $0x9a8] sm:$0xff]
        %v797 = vld [vmem:[%s376 + $0x9b0] sm:$0xff]
        %v798 = vld [vmem:[%s376 + $0x9b8] sm:$0xff]
        %v799 = vld [vmem:[%s376 + $0x9c0] sm:$0xff]
        %v800 = vld [vmem:[%s376 + $0x9c8] sm:$0xff]
        %v801 = vld [vmem:[%s376 + $0x9d0] sm:$0xff]
        %v802 = vld [vmem:[%s376 + $0x9d8] sm:$0xff]
        %v803 = vld [vmem:[%s376 + $0x9e0] sm:$0xff]
        %v804 = vld [vmem:[%s376 + $0x9e8] sm:$0xff]
        %v805 = vld [vmem:[%s376 + $0x9f0] sm:$0xff]
        %v806 = vld [vmem:[%s376 + $0x9f8] sm:$0xff]
        %v807 = vld [vmem:[%s376 + $0xa00] sm:$0xff]
        %v808 = vld [vmem:[%s376 + $0xa08] sm:$0xff]
        %v809 = vld [vmem:[%s376 + $0xa10] sm:$0xff]
        %v810 = vld [vmem:[%s376 + $0xa18] sm:$0xff]
        %v811 = vld [vmem:[%s376 + $0xa20] sm:$0xff]
        %v812 = vld [vmem:[%s376 + $0xa28] sm:$0xff]
        %v813 = vld [vmem:[%s376 + $0xa30] sm:$0xff]
        %v814 = vld [vmem:[%s376 + $0xa38] sm:$0xff]
        %v815 = vld [vmem:[%s376 + $0xa40] sm:$0xff]
        %v816 = vld [vmem:[%s376 + $0xa48] sm:$0xff]
        %v817 = vld [vmem:[%s376 + $0xa50] sm:$0xff]
        %v818 = vld [vmem:[%s376 + $0xa58] sm:$0xff]
        %v819 = vld [vmem:[%s376 + $0xa60] sm:$0xff]
        %v820 = vld [vmem:[%s376 + $0xa68] sm:$0xff]
        %v821 = vld [vmem:[%s376 + $0xa70] sm:$0xff]
        %v822 = vld [vmem:[%s376 + $0xa78] sm:$0xff]
        %v823 = vld [vmem:[%s376 + $0xa80] sm:$0xff]
        %v824 = vld [vmem:[%s376 + $0xa88] sm:$0xff]
        %v825 = vld [vmem:[%s376 + $0xa90] sm:$0xff]
        %v826 = vld [vmem:[%s376 + $0xa98] sm:$0xff]
        %v827 = vld [vmem:[%s376 + $0xaa0] sm:$0xff]
        %v828 = vld [vmem:[%s376 + $0xaa8] sm:$0xff]
        %v829 = vld [vmem:[%s376 + $0xab0] sm:$0xff]
        %v830 = vld [vmem:[%s376 + $0xab8] sm:$0xff]
        %v831 = vld [vmem:[%s376 + $0xac0] sm:$0xff]
        %v832 = vld [vmem:[%s376 + $0xac8] sm:$0xff]
        %v833 = vld [vmem:[%s376 + $0xad0] sm:$0xff]
        %v834 = vld [vmem:[%s376 + $0xad8] sm:$0xff]
        %v835 = vld [vmem:[%s376 + $0xae0] sm:$0xff]
        %v836 = vld [vmem:[%s376 + $0xae8] sm:$0xff]
        %v837 = vld [vmem:[%s376 + $0xaf0] sm:$0xff]
        %v838 = vld [vmem:[%s376 + $0xaf8] sm:$0xff]
        %v839 = vld [vmem:[%s376 + $0xb00] sm:$0xff]
        %v840 = vld [vmem:[%s376 + $0xb08] sm:$0xff]
        %v841 = vld [vmem:[%s376 + $0xb10] sm:$0xff]
        %v842 = vld [vmem:[%s376 + $0xb18] sm:$0xff]
        %v843 = vld [vmem:[%s376 + $0xb20] sm:$0xff]
        %v844 = vld [vmem:[%s376 + $0xb28] sm:$0xff]
        %v845 = vld [vmem:[%s376 + $0xb30] sm:$0xff]
        %v846 = vld [vmem:[%s376 + $0xb38] sm:$0xff]
        %v847 = vld [vmem:[%s376 + $0xb40] sm:$0xff]
        %v848 = vld [vmem:[%s376 + $0xb48] sm:$0xff]
        %v849 = vld [vmem:[%s376 + $0xb50] sm:$0xff]
        %v850 = vld [vmem:[%s376 + $0xb58] sm:$0xff]
        %v851 = vld [vmem:[%s376 + $0xb60] sm:$0xff]
        %v852 = vld [vmem:[%s376 + $0xb68] sm:$0xff]
        %v853 = vld [vmem:[%s376 + $0xb70] sm:$0xff]
        %v854 = vld [vmem:[%s376 + $0xb78] sm:$0xff]
        %v855 = vld [vmem:[%s376 + $0xb80] sm:$0xff]
        %v856 = vld [vmem:[%s376 + $0xb88] sm:$0xff]
        %v857 = vld [vmem:[%s376 + $0xb90] sm:$0xff]
        %v858 = vld [vmem:[%s376 + $0xb98] sm:$0xff]
        %v859 = vld [vmem:[%s376 + $0xba0] sm:$0xff]
        %v860 = vld [vmem:[%s376 + $0xba8] sm:$0xff]
        %v861 = vld [vmem:[%s376 + $0xbb0] sm:$0xff]
        %v862 = vld [vmem:[%s376 + $0xbb8] sm:$0xff]
        %v863 = vld [vmem:[%s376 + $0xbc0] sm:$0xff]
        %v864 = vld [vmem:[%s376 + $0xbc8] sm:$0xff]
        %v865 = vld [vmem:[%s376 + $0xbd0] sm:$0xff]
        %v866 = vld [vmem:[%s376 + $0xbd8] sm:$0xff]
        %v867 = vld [vmem:[%s376 + $0xbe0] sm:$0xff]
        %v868 = vld [vmem:[%s376 + $0xbe8] sm:$0xff]
        %v869 = vld [vmem:[%s376 + $0xbf0] sm:$0xff]
        %v870 = vld [vmem:[%s376 + $0xbf8] sm:$0xff]
        %v871 = vld [vmem:[%s376 + $0xc00] sm:$0xff]
        %v872 = vld [vmem:[%s376 + $0xc08] sm:$0xff]
        %v873 = vld [vmem:[%s376 + $0xc10] sm:$0xff]
        %v874 = vld [vmem:[%s376 + $0xc18] sm:$0xff]
        %v875 = vld [vmem:[%s376 + $0xc20] sm:$0xff]
        %v876 = vld [vmem:[%s376 + $0xc28] sm:$0xff]
        %v877 = vld [vmem:[%s376 + $0xc30] sm:$0xff]
        %v878 = vld [vmem:[%s376 + $0xc38] sm:$0xff]
        %v879 = vld [vmem:[%s376 + $0xc40] sm:$0xff]
        %v880 = vld [vmem:[%s376 + $0xc48] sm:$0xff]
        %v881 = vld [vmem:[%s376 + $0xc50] sm:$0xff]
        %v882 = vld [vmem:[%s376 + $0xc58] sm:$0xff]
        %v883 = vld [vmem:[%s376 + $0xc60] sm:$0xff]
        %v884 = vld [vmem:[%s376 + $0xc68] sm:$0xff]
        %v885 = vld [vmem:[%s376 + $0xc70] sm:$0xff]
        %v886 = vld [vmem:[%s376 + $0xc78] sm:$0xff]
        %v887 = vld [vmem:[%s376 + $0xc80] sm:$0xff]
        %v888 = vld [vmem:[%s376 + $0xc88] sm:$0xff]
        %v889 = vld [vmem:[%s376 + $0xc90] sm:$0xff]
        %v890 = vld [vmem:[%s376 + $0xc98] sm:$0xff]
        %v891 = vld [vmem:[%s376 + $0xca0] sm:$0xff]
        %v892 = vld [vmem:[%s376 + $0xca8] sm:$0xff]
        %v893 = vld [vmem:[%s376 + $0xcb0] sm:$0xff]
        %v894 = vld [vmem:[%s376 + $0xcb8] sm:$0xff]
        %v895 = vld [vmem:[%s376 + $0xcc0] sm:$0xff]
        %v896 = vld [vmem:[%s376 + $0xcc8] sm:$0xff]
        %v897 = vld [vmem:[%s376 + $0xcd0] sm:$0xff]
        %v898 = vld [vmem:[%s376 + $0xcd8] sm:$0xff]
        %v899 = vld [vmem:[%s376 + $0xce0] sm:$0xff]
        %v900 = vld [vmem:[%s376 + $0xce8] sm:$0xff]
        %v901 = vld [vmem:[%s376 + $0xcf0] sm:$0xff]
        %v902 = vld [vmem:[%s376 + $0xcf8] sm:$0xff]
        %v903 = vld [vmem:[%s386] sm:$0xff]
        %v904 = vld [vmem:[%s386 + $0x8] sm:$0xff]
        %v905 = vld [vmem:[%s386 + $0x10] sm:$0xff]
        %v906 = vld [vmem:[%s386 + $0x18] sm:$0xff]
        %v907 = vld [vmem:[%s386 + $0x20] sm:$0xff]
        %v908 = vld [vmem:[%s386 + $0x28] sm:$0xff]
        %v909 = vld [vmem:[%s386 + $0x30] sm:$0xff]
        %v910 = vld [vmem:[%s386 + $0x38] sm:$0xff]
        %v911 = vld [vmem:[%s386 + $0x40] sm:$0xff]
        %v912 = vld [vmem:[%s386 + $0x48] sm:$0xff]
        %v913 = vld [vmem:[%s386 + $0x50] sm:$0xff]
        %v914 = vld [vmem:[%s386 + $0x58] sm:$0xff]
        %v915 = vld [vmem:[%s386 + $0x60] sm:$0xff]
        %v916 = vld [vmem:[%s386 + $0x68] sm:$0xff]
        %v917 = vld [vmem:[%s386 + $0x70] sm:$0xff]
        %v918 = vld [vmem:[%s386 + $0x78] sm:$0xff]
        %v919 = vld [vmem:[%s386 + $0x80] sm:$0xff]
        %v920 = vld [vmem:[%s386 + $0x88] sm:$0xff]
        %v921 = vld [vmem:[%s386 + $0x90] sm:$0xff]
        %v922 = vld [vmem:[%s386 + $0x98] sm:$0xff]
        %v923 = vld [vmem:[%s386 + $0xa0] sm:$0xff]
        %v924 = vld [vmem:[%s386 + $0xa8] sm:$0xff]
        %v925 = vld [vmem:[%s386 + $0xb0] sm:$0xff]
        %v926 = vld [vmem:[%s386 + $0xb8] sm:$0xff]
        %v927 = vld [vmem:[%s386 + $0xc0] sm:$0xff]
        %v928 = vld [vmem:[%s386 + $0xc8] sm:$0xff]
        %v1345 = vunpack.c.l.b16 %v487
        %v1346 = vunpack.c.h.b16 %v487
        %v1347 = vunpack.c.l.b16 %v488
        %v1348 = vunpack.c.h.b16 %v488
        %v1349 = vunpack.c.l.b16 %v489
        %v1350 = vunpack.c.h.b16 %v489
        %v1351 = vunpack.c.l.b16 %v490
        %v1352 = vunpack.c.h.b16 %v490
        %v1353 = vunpack.c.l.b16 %v491
        %v1354 = vunpack.c.h.b16 %v491
        %v1355 = vunpack.c.l.b16 %v492
        %v1356 = vunpack.c.h.b16 %v492
        %v1357 = vunpack.c.l.b16 %v493
        %v1358 = vunpack.c.h.b16 %v493
        %v1359 = vunpack.c.l.b16 %v494
        %v1360 = vunpack.c.h.b16 %v494
        %v1361 = vunpack.c.l.b16 %v495
        %v1362 = vunpack.c.h.b16 %v495
        %v1363 = vunpack.c.l.b16 %v496
        %v1364 = vunpack.c.h.b16 %v496
        %v1365 = vunpack.c.l.b16 %v497
        %v1366 = vunpack.c.h.b16 %v497
        %v1367 = vunpack.c.l.b16 %v498
        %v1368 = vunpack.c.h.b16 %v498
        %v1369 = vunpack.c.l.b16 %v499
        %v1370 = vunpack.c.h.b16 %v499
        %v1371 = vunpack.c.l.b16 %v500
        %v1372 = vunpack.c.h.b16 %v500
        %v1373 = vunpack.c.l.b16 %v501
        %v1374 = vunpack.c.h.b16 %v501
        %v1375 = vunpack.c.l.b16 %v502
        %v1376 = vunpack.c.h.b16 %v502
        %v1377 = vunpack.c.l.b16 %v503
        %v1378 = vunpack.c.h.b16 %v503
        %v1379 = vunpack.c.l.b16 %v504
        %v1380 = vunpack.c.h.b16 %v504
        %v1381 = vunpack.c.l.b16 %v505
        %v1382 = vunpack.c.h.b16 %v505
        %v1383 = vunpack.c.l.b16 %v506
        %v1384 = vunpack.c.h.b16 %v506
        %v1385 = vunpack.c.l.b16 %v507
        %v1386 = vunpack.c.h.b16 %v507
        %v1387 = vunpack.c.l.b16 %v508
        %v1388 = vunpack.c.h.b16 %v508
        %v1389 = vunpack.c.l.b16 %v509
        %v1390 = vunpack.c.h.b16 %v509
        %v1391 = vunpack.c.l.b16 %v510
        %v1392 = vunpack.c.h.b16 %v510
        %v1393 = vunpack.c.l.b16 %v511
        %v1394 = vunpack.c.h.b16 %v511
        %v1395 = vunpack.c.l.b16 %v512
        %v1396 = vunpack.c.h.b16 %v512
        %v1397 = vunpack.c.l.b16 %v513
        %v1398 = vunpack.c.h.b16 %v513
        %v1399 = vunpack.c.l.b16 %v514
        %v1400 = vunpack.c.h.b16 %v514
        %v1401 = vunpack.c.l.b16 %v515
        %v1402 = vunpack.c.h.b16 %v515
        %v1403 = vunpack.c.l.b16 %v516
        %v1404 = vunpack.c.h.b16 %v516
        %v1405 = vunpack.c.l.b16 %v517
        %v1406 = vunpack.c.h.b16 %v517
        %v1407 = vunpack.c.l.b16 %v518
        %v1408 = vunpack.c.h.b16 %v518
        %v1409 = vunpack.c.l.b16 %v519
        %v1410 = vunpack.c.h.b16 %v519
        %v1411 = vunpack.c.l.b16 %v520
        %v1412 = vunpack.c.h.b16 %v520
        %v1413 = vunpack.c.l.b16 %v521
        %v1414 = vunpack.c.h.b16 %v521
        %v1415 = vunpack.c.l.b16 %v522
        %v1416 = vunpack.c.h.b16 %v522
        %v1417 = vunpack.c.l.b16 %v523
        %v1418 = vunpack.c.h.b16 %v523
        %v1419 = vunpack.c.l.b16 %v524
        %v1420 = vunpack.c.h.b16 %v524
        %v1421 = vunpack.c.l.b16 %v525
        %v1422 = vunpack.c.h.b16 %v525
        %v1423 = vunpack.c.l.b16 %v526
        %v1424 = vunpack.c.h.b16 %v526
        %v1425 = vunpack.c.l.b16 %v527
        %v1426 = vunpack.c.h.b16 %v527
        %v1427 = vunpack.c.l.b16 %v528
        %v1428 = vunpack.c.h.b16 %v528
        %v1429 = vunpack.c.l.b16 %v529
        %v1430 = vunpack.c.h.b16 %v529
        %v1431 = vunpack.c.l.b16 %v530
        %v1432 = vunpack.c.h.b16 %v530
        %v1433 = vunpack.c.l.b16 %v531
        %v1434 = vunpack.c.h.b16 %v531
        %v1435 = vunpack.c.l.b16 %v532
        %v1436 = vunpack.c.h.b16 %v532
        %v1437 = vunpack.c.l.b16 %v533
        %v1438 = vunpack.c.h.b16 %v533
        %v1439 = vunpack.c.l.b16 %v534
        %v1440 = vunpack.c.h.b16 %v534
        %v1441 = vunpack.c.l.b16 %v535
        %v1442 = vunpack.c.h.b16 %v535
        %v1443 = vunpack.c.l.b16 %v536
        %v1444 = vunpack.c.h.b16 %v536
        %v1445 = vunpack.c.l.b16 %v537
        %v1446 = vunpack.c.h.b16 %v537
        %v1447 = vunpack.c.l.b16 %v538
        %v1448 = vunpack.c.h.b16 %v538
        %v1449 = vunpack.c.l.b16 %v539
        %v1450 = vunpack.c.h.b16 %v539
        %v1451 = vunpack.c.l.b16 %v540
        %v1452 = vunpack.c.h.b16 %v540
        %v1453 = vunpack.c.l.b16 %v541
        %v1454 = vunpack.c.h.b16 %v541
        %v1455 = vunpack.c.l.b16 %v542
        %v1456 = vunpack.c.h.b16 %v542
        %v1457 = vunpack.c.l.b16 %v543
        %v1458 = vunpack.c.h.b16 %v543
        %v1459 = vunpack.c.l.b16 %v544
        %v1460 = vunpack.c.h.b16 %v544
        %v1461 = vunpack.c.l.b16 %v545
        %v1462 = vunpack.c.h.b16 %v545
        %v1463 = vunpack.c.l.b16 %v546
        %v1464 = vunpack.c.h.b16 %v546
        %v1465 = vunpack.c.l.b16 %v547
        %v1466 = vunpack.c.h.b16 %v547
        %v1467 = vunpack.c.l.b16 %v548
        %v1468 = vunpack.c.h.b16 %v548
        %v1469 = vunpack.c.l.b16 %v549
        %v1470 = vunpack.c.h.b16 %v549
        %v1471 = vunpack.c.l.b16 %v550
        %v1472 = vunpack.c.h.b16 %v550
        %v1473 = vunpack.c.l.b16 %v551
        %v1474 = vunpack.c.h.b16 %v551
        %v1475 = vunpack.c.l.b16 %v552
        %v1476 = vunpack.c.h.b16 %v552
        %v1477 = vunpack.c.l.b16 %v553
        %v1478 = vunpack.c.h.b16 %v553
        %v1479 = vunpack.c.l.b16 %v554
        %v1480 = vunpack.c.h.b16 %v554
        %v1481 = vunpack.c.l.b16 %v555
        %v1482 = vunpack.c.h.b16 %v555
        %v1483 = vunpack.c.l.b16 %v556
        %v1484 = vunpack.c.h.b16 %v556
        %v1485 = vunpack.c.l.b16 %v557
        %v1486 = vunpack.c.h.b16 %v557
        %v1487 = vunpack.c.l.b16 %v558
        %v1488 = vunpack.c.h.b16 %v558
        %v1489 = vunpack.c.l.b16 %v559
        %v1490 = vunpack.c.h.b16 %v559
        %v1491 = vunpack.c.l.b16 %v560
        %v1492 = vunpack.c.h.b16 %v560
        %v1493 = vunpack.c.l.b16 %v561
        %v1494 = vunpack.c.h.b16 %v561
        %v1495 = vunpack.c.l.b16 %v562
        %v1496 = vunpack.c.h.b16 %v562
        %v1497 = vunpack.c.l.b16 %v563
        %v1498 = vunpack.c.h.b16 %v563
        %v1499 = vunpack.c.l.b16 %v564
        %v1500 = vunpack.c.h.b16 %v564
        %v1501 = vunpack.c.l.b16 %v565
        %v1502 = vunpack.c.h.b16 %v565
        %v1503 = vunpack.c.l.b16 %v566
        %v1504 = vunpack.c.h.b16 %v566
        %v1505 = vunpack.c.l.b16 %v567
        %v1506 = vunpack.c.h.b16 %v567
        %v1507 = vunpack.c.l.b16 %v568
        %v1508 = vunpack.c.h.b16 %v568
        %v1509 = vunpack.c.l.b16 %v569
        %v1510 = vunpack.c.h.b16 %v569
        %v1511 = vunpack.c.l.b16 %v570
        %v1512 = vunpack.c.h.b16 %v570
        %v1513 = vunpack.c.l.b16 %v571
        %v1514 = vunpack.c.h.b16 %v571
        %v1515 = vunpack.c.l.b16 %v572
        %v1516 = vunpack.c.h.b16 %v572
        %v1517 = vunpack.c.l.b16 %v573
        %v1518 = vunpack.c.h.b16 %v573
        %v1519 = vunpack.c.l.b16 %v574
        %v1520 = vunpack.c.h.b16 %v574
        %v1521 = vunpack.c.l.b16 %v575
        %v1522 = vunpack.c.h.b16 %v575
        %v1523 = vunpack.c.l.b16 %v576
        %v1524 = vunpack.c.h.b16 %v576
        %v1525 = vunpack.c.l.b16 %v577
        %v1526 = vunpack.c.h.b16 %v577
        %v1527 = vunpack.c.l.b16 %v578
        %v1528 = vunpack.c.h.b16 %v578
        %v1529 = vunpack.c.l.b16 %v579
        %v1530 = vunpack.c.h.b16 %v579
        %v1531 = vunpack.c.l.b16 %v580
        %v1532 = vunpack.c.h.b16 %v580
        %v1533 = vunpack.c.l.b16 %v581
        %v1534 = vunpack.c.h.b16 %v581
        %v1535 = vunpack.c.l.b16 %v582
        %v1536 = vunpack.c.h.b16 %v582
        %v1537 = vunpack.c.l.b16 %v583
        %v1538 = vunpack.c.h.b16 %v583
        %v1539 = vunpack.c.l.b16 %v584
        %v1540 = vunpack.c.h.b16 %v584
        %v1541 = vunpack.c.l.b16 %v585
        %v1542 = vunpack.c.h.b16 %v585
        %v1543 = vunpack.c.l.b16 %v586
        %v1544 = vunpack.c.h.b16 %v586
        %v1545 = vunpack.c.l.b16 %v587
        %v1546 = vunpack.c.h.b16 %v587
        %v1547 = vunpack.c.l.b16 %v588
        %v1548 = vunpack.c.h.b16 %v588
        %v1549 = vunpack.c.l.b16 %v589
        %v1550 = vunpack.c.h.b16 %v589
        %v1551 = vunpack.c.l.b16 %v590
        %v1552 = vunpack.c.h.b16 %v590
        %v1553 = vunpack.c.l.b16 %v591
        %v1554 = vunpack.c.h.b16 %v591
        %v1555 = vunpack.c.l.b16 %v592
        %v1556 = vunpack.c.h.b16 %v592
        %v1557 = vunpack.c.l.b16 %v593
        %v1558 = vunpack.c.h.b16 %v593
        %v1559 = vunpack.c.l.b16 %v594
        %v1560 = vunpack.c.h.b16 %v594
        %v1561 = vunpack.c.l.b16 %v595
        %v1562 = vunpack.c.h.b16 %v595
        %v1563 = vunpack.c.l.b16 %v596
        %v1564 = vunpack.c.h.b16 %v596
        %v1565 = vunpack.c.l.b16 %v597
        %v1566 = vunpack.c.h.b16 %v597
        %v1567 = vunpack.c.l.b16 %v598
        %v1568 = vunpack.c.h.b16 %v598
        %v1569 = vunpack.c.l.b16 %v599
        %v1570 = vunpack.c.h.b16 %v599
        %v1571 = vunpack.c.l.b16 %v600
        %v1572 = vunpack.c.h.b16 %v600
        %v1573 = vunpack.c.l.b16 %v601
        %v1574 = vunpack.c.h.b16 %v601
        %v1575 = vunpack.c.l.b16 %v602
        %v1576 = vunpack.c.h.b16 %v602
        %v1577 = vunpack.c.l.b16 %v603
        %v1578 = vunpack.c.h.b16 %v603
        %v1579 = vunpack.c.l.b16 %v604
        %v1580 = vunpack.c.h.b16 %v604
        %v1581 = vunpack.c.l.b16 %v605
        %v1582 = vunpack.c.h.b16 %v605
        %v1583 = vunpack.c.l.b16 %v606
        %v1584 = vunpack.c.h.b16 %v606
        %v1585 = vunpack.c.l.b16 %v607
        %v1586 = vunpack.c.h.b16 %v607
        %v1587 = vunpack.c.l.b16 %v608
        %v1588 = vunpack.c.h.b16 %v608
        %v1589 = vunpack.c.l.b16 %v609
        %v1590 = vunpack.c.h.b16 %v609
        %v1591 = vunpack.c.l.b16 %v610
        %v1592 = vunpack.c.h.b16 %v610
        %v1593 = vunpack.c.l.b16 %v611
        %v1594 = vunpack.c.h.b16 %v611
        %v1595 = vunpack.c.l.b16 %v612
        %v1596 = vunpack.c.h.b16 %v612
        %v1597 = vunpack.c.l.b16 %v613
        %v1598 = vunpack.c.h.b16 %v613
        %v1599 = vunpack.c.l.b16 %v614
        %v1600 = vunpack.c.h.b16 %v614
        %v1601 = vunpack.c.l.b16 %v615
        %v1602 = vunpack.c.h.b16 %v615
        %v1603 = vunpack.c.l.b16 %v616
        %v1604 = vunpack.c.h.b16 %v616
        %v1605 = vunpack.c.l.b16 %v617
        %v1606 = vunpack.c.h.b16 %v617
        %v1607 = vunpack.c.l.b16 %v618
        %v1608 = vunpack.c.h.b16 %v618
        %v1609 = vunpack.c.l.b16 %v619
        %v1610 = vunpack.c.h.b16 %v619
        %v1611 = vunpack.c.l.b16 %v620
        %v1612 = vunpack.c.h.b16 %v620
        %v1613 = vunpack.c.l.b16 %v621
        %v1614 = vunpack.c.h.b16 %v621
        %v1615 = vunpack.c.l.b16 %v622
        %v1616 = vunpack.c.h.b16 %v622
        %v1617 = vunpack.c.l.b16 %v623
        %v1618 = vunpack.c.h.b16 %v623
        %v1619 = vunpack.c.l.b16 %v624
        %v1620 = vunpack.c.h.b16 %v624
        %v1621 = vunpack.c.l.b16 %v625
        %v1622 = vunpack.c.h.b16 %v625
        %v1623 = vunpack.c.l.b16 %v626
        %v1624 = vunpack.c.h.b16 %v626
        %v1625 = vunpack.c.l.b16 %v627
        %v1626 = vunpack.c.h.b16 %v627
        %v1627 = vunpack.c.l.b16 %v628
        %v1628 = vunpack.c.h.b16 %v628
        %v1629 = vunpack.c.l.b16 %v629
        %v1630 = vunpack.c.h.b16 %v629
        %v1631 = vunpack.c.l.b16 %v630
        %v1632 = vunpack.c.h.b16 %v630
        %v1633 = vunpack.c.l.b16 %v631
        %v1634 = vunpack.c.h.b16 %v631
        %v1635 = vunpack.c.l.b16 %v632
        %v1636 = vunpack.c.h.b16 %v632
        %v1637 = vunpack.c.l.b16 %v633
        %v1638 = vunpack.c.h.b16 %v633
        %v1639 = vunpack.c.l.b16 %v634
        %v1640 = vunpack.c.h.b16 %v634
        %v1641 = vunpack.c.l.b16 %v635
        %v1642 = vunpack.c.h.b16 %v635
        %v1643 = vunpack.c.l.b16 %v636
        %v1644 = vunpack.c.h.b16 %v636
        %v1645 = vunpack.c.l.b16 %v637
        %v1646 = vunpack.c.h.b16 %v637
        %v1647 = vunpack.c.l.b16 %v638
        %v1648 = vunpack.c.h.b16 %v638
        %v1649 = vunpack.c.l.b16 %v639
        %v1650 = vunpack.c.h.b16 %v639
        %v1651 = vunpack.c.l.b16 %v640
        %v1652 = vunpack.c.h.b16 %v640
        %v1653 = vunpack.c.l.b16 %v641
        %v1654 = vunpack.c.h.b16 %v641
        %v1655 = vunpack.c.l.b16 %v642
        %v1656 = vunpack.c.h.b16 %v642
        %v1657 = vunpack.c.l.b16 %v643
        %v1658 = vunpack.c.h.b16 %v643
        %v1659 = vunpack.c.l.b16 %v644
        %v1660 = vunpack.c.h.b16 %v644
        %v1661 = vunpack.c.l.b16 %v645
        %v1662 = vunpack.c.h.b16 %v645
        %v1663 = vunpack.c.l.b16 %v646
        %v1664 = vunpack.c.h.b16 %v646
        %v1665 = vunpack.c.l.b16 %v647
        %v1666 = vunpack.c.h.b16 %v647
        %v1667 = vunpack.c.l.b16 %v648
        %v1668 = vunpack.c.h.b16 %v648
        %v1669 = vunpack.c.l.b16 %v649
        %v1670 = vunpack.c.h.b16 %v649
        %v1671 = vunpack.c.l.b16 %v650
        %v1672 = vunpack.c.h.b16 %v650
        %v1673 = vunpack.c.l.b16 %v651
        %v1674 = vunpack.c.h.b16 %v651
        %v1675 = vunpack.c.l.b16 %v652
        %v1676 = vunpack.c.h.b16 %v652
        %v1677 = vunpack.c.l.b16 %v653
        %v1678 = vunpack.c.h.b16 %v653
        %v1679 = vunpack.c.l.b16 %v654
        %v1680 = vunpack.c.h.b16 %v654
        %v1681 = vunpack.c.l.b16 %v655
        %v1682 = vunpack.c.h.b16 %v655
        %v1683 = vunpack.c.l.b16 %v656
        %v1684 = vunpack.c.h.b16 %v656
        %v1685 = vunpack.c.l.b16 %v657
        %v1686 = vunpack.c.h.b16 %v657
        %v1687 = vunpack.c.l.b16 %v658
        %v1688 = vunpack.c.h.b16 %v658
        %v1689 = vunpack.c.l.b16 %v659
        %v1690 = vunpack.c.h.b16 %v659
        %v1691 = vunpack.c.l.b16 %v660
        %v1692 = vunpack.c.h.b16 %v660
        %v1693 = vunpack.c.l.b16 %v661
        %v1694 = vunpack.c.h.b16 %v661
        %v1695 = vunpack.c.l.b16 %v662
        %v1696 = vunpack.c.h.b16 %v662
        %v1697 = vunpack.c.l.b16 %v663
        %v1698 = vunpack.c.h.b16 %v663
        %v1699 = vunpack.c.l.b16 %v664
        %v1700 = vunpack.c.h.b16 %v664
        %v1701 = vunpack.c.l.b16 %v665
        %v1702 = vunpack.c.h.b16 %v665
        %v1703 = vunpack.c.l.b16 %v666
        %v1704 = vunpack.c.h.b16 %v666
        %v1705 = vunpack.c.l.b16 %v667
        %v1706 = vunpack.c.h.b16 %v667
        %v1707 = vunpack.c.l.b16 %v668
        %v1708 = vunpack.c.h.b16 %v668
        %v1709 = vunpack.c.l.b16 %v669
        %v1710 = vunpack.c.h.b16 %v669
        %v1711 = vunpack.c.l.b16 %v670
        %v1712 = vunpack.c.h.b16 %v670
        %v1713 = vunpack.c.l.b16 %v671
        %v1714 = vunpack.c.h.b16 %v671
        %v1715 = vunpack.c.l.b16 %v672
        %v1716 = vunpack.c.h.b16 %v672
        %v1717 = vunpack.c.l.b16 %v673
        %v1718 = vunpack.c.h.b16 %v673
        %v1719 = vunpack.c.l.b16 %v674
        %v1720 = vunpack.c.h.b16 %v674
        %v1721 = vunpack.c.l.b16 %v675
        %v1722 = vunpack.c.h.b16 %v675
        %v1723 = vunpack.c.l.b16 %v676
        %v1724 = vunpack.c.h.b16 %v676
        %v1725 = vunpack.c.l.b16 %v677
        %v1726 = vunpack.c.h.b16 %v677
        %v1727 = vunpack.c.l.b16 %v678
        %v1728 = vunpack.c.h.b16 %v678
        %v1729 = vunpack.c.l.b16 %v679
        %v1730 = vunpack.c.h.b16 %v679
        %v1731 = vunpack.c.l.b16 %v680
        %v1732 = vunpack.c.h.b16 %v680
        %v1733 = vunpack.c.l.b16 %v681
        %v1734 = vunpack.c.h.b16 %v681
        %v1735 = vunpack.c.l.b16 %v682
        %v1736 = vunpack.c.h.b16 %v682
        %v1737 = vunpack.c.l.b16 %v683
        %v1738 = vunpack.c.h.b16 %v683
        %v1739 = vunpack.c.l.b16 %v684
        %v1740 = vunpack.c.h.b16 %v684
        %v1741 = vunpack.c.l.b16 %v685
        %v1742 = vunpack.c.h.b16 %v685
        %v1743 = vunpack.c.l.b16 %v686
        %v1744 = vunpack.c.h.b16 %v686
        %v1745 = vunpack.c.l.b16 %v687
        %v1746 = vunpack.c.h.b16 %v687
        %v1747 = vunpack.c.l.b16 %v688
        %v1748 = vunpack.c.h.b16 %v688
        %v1749 = vunpack.c.l.b16 %v689
        %v1750 = vunpack.c.h.b16 %v689
        %v1751 = vunpack.c.l.b16 %v690
        %v1752 = vunpack.c.h.b16 %v690
        %v1753 = vunpack.c.l.b16 %v691
        %v1754 = vunpack.c.h.b16 %v691
        %v1755 = vunpack.c.l.b16 %v692
        %v1756 = vunpack.c.h.b16 %v692
        %v1757 = vunpack.c.l.b16 %v693
        %v1758 = vunpack.c.h.b16 %v693
        %v1759 = vunpack.c.l.b16 %v694
        %v1760 = vunpack.c.h.b16 %v694
        %v1761 = vunpack.c.l.b16 %v695
        %v1762 = vunpack.c.h.b16 %v695
        %v1763 = vunpack.c.l.b16 %v696
        %v1764 = vunpack.c.h.b16 %v696
        %v1765 = vunpack.c.l.b16 %v697
        %v1766 = vunpack.c.h.b16 %v697
        %v1767 = vunpack.c.l.b16 %v698
        %v1768 = vunpack.c.h.b16 %v698
        %v1769 = vunpack.c.l.b16 %v699
        %v1770 = vunpack.c.h.b16 %v699
        %v1771 = vunpack.c.l.b16 %v700
        %v1772 = vunpack.c.h.b16 %v700
        %v1773 = vunpack.c.l.b16 %v701
        %v1774 = vunpack.c.h.b16 %v701
        %v1775 = vunpack.c.l.b16 %v702
        %v1776 = vunpack.c.h.b16 %v702
        %v1777 = vunpack.c.l.b16 %v703
        %v1778 = vunpack.c.h.b16 %v703
        %v1779 = vunpack.c.l.b16 %v704
        %v1780 = vunpack.c.h.b16 %v704
        %v1781 = vunpack.c.l.b16 %v705
        %v1782 = vunpack.c.h.b16 %v705
        %v1783 = vunpack.c.l.b16 %v706
        %v1784 = vunpack.c.h.b16 %v706
        %v1785 = vunpack.c.l.b16 %v707
        %v1786 = vunpack.c.h.b16 %v707
        %v1787 = vunpack.c.l.b16 %v708
        %v1788 = vunpack.c.h.b16 %v708
        %v1789 = vunpack.c.l.b16 %v709
        %v1790 = vunpack.c.h.b16 %v709
        %v1791 = vunpack.c.l.b16 %v710
        %v1792 = vunpack.c.h.b16 %v710
        %v1793 = vunpack.c.l.b16 %v711
        %v1794 = vunpack.c.h.b16 %v711
        %v1795 = vunpack.c.l.b16 %v712
        %v1796 = vunpack.c.h.b16 %v712
        %v1797 = vunpack.c.l.b16 %v713
        %v1798 = vunpack.c.h.b16 %v713
        %v1799 = vunpack.c.l.b16 %v714
        %v1800 = vunpack.c.h.b16 %v714
        %v1801 = vunpack.c.l.b16 %v715
        %v1802 = vunpack.c.h.b16 %v715
        %v1803 = vunpack.c.l.b16 %v716
        %v1804 = vunpack.c.h.b16 %v716
        %v1805 = vunpack.c.l.b16 %v717
        %v1806 = vunpack.c.h.b16 %v717
        %v1807 = vunpack.c.l.b16 %v718
        %v1808 = vunpack.c.h.b16 %v718
        %v1809 = vunpack.c.l.b16 %v719
        %v1810 = vunpack.c.h.b16 %v719
        %v1811 = vunpack.c.l.b16 %v720
        %v1812 = vunpack.c.h.b16 %v720
        %v1813 = vunpack.c.l.b16 %v721
        %v1814 = vunpack.c.h.b16 %v721
        %v1815 = vunpack.c.l.b16 %v722
        %v1816 = vunpack.c.h.b16 %v722
        %v1817 = vunpack.c.l.b16 %v723
        %v1818 = vunpack.c.h.b16 %v723
        %v1819 = vunpack.c.l.b16 %v724
        %v1820 = vunpack.c.h.b16 %v724
        %v1821 = vunpack.c.l.b16 %v725
        %v1822 = vunpack.c.h.b16 %v725
        %v1823 = vunpack.c.l.b16 %v726
        %v1824 = vunpack.c.h.b16 %v726
        %v1825 = vunpack.c.l.b16 %v727
        %v1826 = vunpack.c.h.b16 %v727
        %v1827 = vunpack.c.l.b16 %v728
        %v1828 = vunpack.c.h.b16 %v728
        %v1829 = vunpack.c.l.b16 %v729
        %v1830 = vunpack.c.h.b16 %v729
        %v1831 = vunpack.c.l.b16 %v730
        %v1832 = vunpack.c.h.b16 %v730
        %v1833 = vunpack.c.l.b16 %v731
        %v1834 = vunpack.c.h.b16 %v731
        %v1835 = vunpack.c.l.b16 %v732
        %v1836 = vunpack.c.h.b16 %v732
        %v1837 = vunpack.c.l.b16 %v733
        %v1838 = vunpack.c.h.b16 %v733
        %v1839 = vunpack.c.l.b16 %v734
        %v1840 = vunpack.c.h.b16 %v734
        %v1841 = vunpack.c.l.b16 %v735
        %v1842 = vunpack.c.h.b16 %v735
        %v1843 = vunpack.c.l.b16 %v736
        %v1844 = vunpack.c.h.b16 %v736
        %v1845 = vunpack.c.l.b16 %v737
        %v1846 = vunpack.c.h.b16 %v737
        %v1847 = vunpack.c.l.b16 %v738
        %v1848 = vunpack.c.h.b16 %v738
        %v1849 = vunpack.c.l.b16 %v739
        %v1850 = vunpack.c.h.b16 %v739
        %v1851 = vunpack.c.l.b16 %v740
        %v1852 = vunpack.c.h.b16 %v740
        %v1853 = vunpack.c.l.b16 %v741
        %v1854 = vunpack.c.h.b16 %v741
        %v1855 = vunpack.c.l.b16 %v742
        %v1856 = vunpack.c.h.b16 %v742
        %v1857 = vunpack.c.l.b16 %v743
        %v1858 = vunpack.c.h.b16 %v743
        %v1859 = vunpack.c.l.b16 %v744
        %v1860 = vunpack.c.h.b16 %v744
        %v1861 = vunpack.c.l.b16 %v745
        %v1862 = vunpack.c.h.b16 %v745
        %v1863 = vunpack.c.l.b16 %v746
        %v1864 = vunpack.c.h.b16 %v746
        %v1865 = vunpack.c.l.b16 %v747
        %v1866 = vunpack.c.h.b16 %v747
        %v1867 = vunpack.c.l.b16 %v748
        %v1868 = vunpack.c.h.b16 %v748
        %v1869 = vunpack.c.l.b16 %v749
        %v1870 = vunpack.c.h.b16 %v749
        %v1871 = vunpack.c.l.b16 %v750
        %v1872 = vunpack.c.h.b16 %v750
        %v1873 = vunpack.c.l.b16 %v751
        %v1874 = vunpack.c.h.b16 %v751
        %v1875 = vunpack.c.l.b16 %v752
        %v1876 = vunpack.c.h.b16 %v752
        %v1877 = vunpack.c.l.b16 %v753
        %v1878 = vunpack.c.h.b16 %v753
        %v1879 = vunpack.c.l.b16 %v754
        %v1880 = vunpack.c.h.b16 %v754
        %v1881 = vunpack.c.l.b16 %v755
        %v1882 = vunpack.c.h.b16 %v755
        %v1883 = vunpack.c.l.b16 %v756
        %v1884 = vunpack.c.h.b16 %v756
        %v1885 = vunpack.c.l.b16 %v757
        %v1886 = vunpack.c.h.b16 %v757
        %v1887 = vunpack.c.l.b16 %v758
        %v1888 = vunpack.c.h.b16 %v758
        %v1889 = vunpack.c.l.b16 %v759
        %v1890 = vunpack.c.h.b16 %v759
        %v1891 = vunpack.c.l.b16 %v760
        %v1892 = vunpack.c.h.b16 %v760
        %v1893 = vunpack.c.l.b16 %v761
        %v1894 = vunpack.c.h.b16 %v761
        %v1895 = vunpack.c.l.b16 %v762
        %v1896 = vunpack.c.h.b16 %v762
        %v1897 = vunpack.c.l.b16 %v763
        %v1898 = vunpack.c.h.b16 %v763
        %v1899 = vunpack.c.l.b16 %v764
        %v1900 = vunpack.c.h.b16 %v764
        %v1901 = vunpack.c.l.b16 %v765
        %v1902 = vunpack.c.h.b16 %v765
        %v1903 = vunpack.c.l.b16 %v766
        %v1904 = vunpack.c.h.b16 %v766
        %v1905 = vunpack.c.l.b16 %v767
        %v1906 = vunpack.c.h.b16 %v767
        %v1907 = vunpack.c.l.b16 %v768
        %v1908 = vunpack.c.h.b16 %v768
        %v1909 = vunpack.c.l.b16 %v769
        %v1910 = vunpack.c.h.b16 %v769
        %v1911 = vunpack.c.l.b16 %v770
        %v1912 = vunpack.c.h.b16 %v770
        %v1913 = vunpack.c.l.b16 %v771
        %v1914 = vunpack.c.h.b16 %v771
        %v1915 = vunpack.c.l.b16 %v772
        %v1916 = vunpack.c.h.b16 %v772
        %v1917 = vunpack.c.l.b16 %v773
        %v1918 = vunpack.c.h.b16 %v773
        %v1919 = vunpack.c.l.b16 %v774
        %v1920 = vunpack.c.h.b16 %v774
        %v1921 = vunpack.c.l.b16 %v775
        %v1922 = vunpack.c.h.b16 %v775
        %v1923 = vunpack.c.l.b16 %v776
        %v1924 = vunpack.c.h.b16 %v776
        %v1925 = vunpack.c.l.b16 %v777
        %v1926 = vunpack.c.h.b16 %v777
        %v1927 = vunpack.c.l.b16 %v778
        %v1928 = vunpack.c.h.b16 %v778
        %v1929 = vunpack.c.l.b16 %v779
        %v1930 = vunpack.c.h.b16 %v779
        %v1931 = vunpack.c.l.b16 %v780
        %v1932 = vunpack.c.h.b16 %v780
        %v1933 = vunpack.c.l.b16 %v781
        %v1934 = vunpack.c.h.b16 %v781
        %v1935 = vunpack.c.l.b16 %v782
        %v1936 = vunpack.c.h.b16 %v782
        %v1937 = vunpack.c.l.b16 %v783
        %v1938 = vunpack.c.h.b16 %v783
        %v1939 = vunpack.c.l.b16 %v784
        %v1940 = vunpack.c.h.b16 %v784
        %v1941 = vunpack.c.l.b16 %v785
        %v1942 = vunpack.c.h.b16 %v785
        %v1943 = vunpack.c.l.b16 %v786
        %v1944 = vunpack.c.h.b16 %v786
        %v1945 = vunpack.c.l.b16 %v787
        %v1946 = vunpack.c.h.b16 %v787
        %v1947 = vunpack.c.l.b16 %v788
        %v1948 = vunpack.c.h.b16 %v788
        %v1949 = vunpack.c.l.b16 %v789
        %v1950 = vunpack.c.h.b16 %v789
        %v1951 = vunpack.c.l.b16 %v790
        %v1952 = vunpack.c.h.b16 %v790
        %v1953 = vunpack.c.l.b16 %v791
        %v1954 = vunpack.c.h.b16 %v791
        %v1955 = vunpack.c.l.b16 %v792
        %v1956 = vunpack.c.h.b16 %v792
        %v1957 = vunpack.c.l.b16 %v793
        %v1958 = vunpack.c.h.b16 %v793
        %v1959 = vunpack.c.l.b16 %v794
        %v1960 = vunpack.c.h.b16 %v794
        %v1961 = vunpack.c.l.b16 %v795
        %v1962 = vunpack.c.h.b16 %v795
        %v1963 = vunpack.c.l.b16 %v796
        %v1964 = vunpack.c.h.b16 %v796
        %v1965 = vunpack.c.l.b16 %v797
        %v1966 = vunpack.c.h.b16 %v797
        %v1967 = vunpack.c.l.b16 %v798
        %v1968 = vunpack.c.h.b16 %v798
        %v1969 = vunpack.c.l.b16 %v799
        %v1970 = vunpack.c.h.b16 %v799
        %v1971 = vunpack.c.l.b16 %v800
        %v1972 = vunpack.c.h.b16 %v800
        %v1973 = vunpack.c.l.b16 %v801
        %v1974 = vunpack.c.h.b16 %v801
        %v1975 = vunpack.c.l.b16 %v802
        %v1976 = vunpack.c.h.b16 %v802
        %v1977 = vunpack.c.l.b16 %v803
        %v1978 = vunpack.c.h.b16 %v803
        %v1979 = vunpack.c.l.b16 %v804
        %v1980 = vunpack.c.h.b16 %v804
        %v1981 = vunpack.c.l.b16 %v805
        %v1982 = vunpack.c.h.b16 %v805
        %v1983 = vunpack.c.l.b16 %v806
        %v1984 = vunpack.c.h.b16 %v806
        %v1985 = vunpack.c.l.b16 %v807
        %v1986 = vunpack.c.h.b16 %v807
        %v1987 = vunpack.c.l.b16 %v808
        %v1988 = vunpack.c.h.b16 %v808
        %v1989 = vunpack.c.l.b16 %v809
        %v1990 = vunpack.c.h.b16 %v809
        %v1991 = vunpack.c.l.b16 %v810
        %v1992 = vunpack.c.h.b16 %v810
        %v1993 = vunpack.c.l.b16 %v811
        %v1994 = vunpack.c.h.b16 %v811
        %v1995 = vunpack.c.l.b16 %v812
        %v1996 = vunpack.c.h.b16 %v812
        %v1997 = vunpack.c.l.b16 %v813
        %v1998 = vunpack.c.h.b16 %v813
        %v1999 = vunpack.c.l.b16 %v814
        %v2000 = vunpack.c.h.b16 %v814
        %v2001 = vunpack.c.l.b16 %v815
        %v2002 = vunpack.c.h.b16 %v815
        %v2003 = vunpack.c.l.b16 %v816
        %v2004 = vunpack.c.h.b16 %v816
        %v2005 = vunpack.c.l.b16 %v817
        %v2006 = vunpack.c.h.b16 %v817
        %v2007 = vunpack.c.l.b16 %v818
        %v2008 = vunpack.c.h.b16 %v818
        %v2009 = vunpack.c.l.b16 %v819
        %v2010 = vunpack.c.h.b16 %v819
        %v2011 = vunpack.c.l.b16 %v820
        %v2012 = vunpack.c.h.b16 %v820
        %v2013 = vunpack.c.l.b16 %v821
        %v2014 = vunpack.c.h.b16 %v821
        %v2015 = vunpack.c.l.b16 %v822
        %v2016 = vunpack.c.h.b16 %v822
        %v2017 = vunpack.c.l.b16 %v823
        %v2018 = vunpack.c.h.b16 %v823
        %v2019 = vunpack.c.l.b16 %v824
        %v2020 = vunpack.c.h.b16 %v824
        %v2021 = vunpack.c.l.b16 %v825
        %v2022 = vunpack.c.h.b16 %v825
        %v2023 = vunpack.c.l.b16 %v826
        %v2024 = vunpack.c.h.b16 %v826
        %v2025 = vunpack.c.l.b16 %v827
        %v2026 = vunpack.c.h.b16 %v827
        %v2027 = vunpack.c.l.b16 %v828
        %v2028 = vunpack.c.h.b16 %v828
        %v2029 = vunpack.c.l.b16 %v829
        %v2030 = vunpack.c.h.b16 %v829
        %v2031 = vunpack.c.l.b16 %v830
        %v2032 = vunpack.c.h.b16 %v830
        %v2033 = vunpack.c.l.b16 %v831
        %v2034 = vunpack.c.h.b16 %v831
        %v2035 = vunpack.c.l.b16 %v832
        %v2036 = vunpack.c.h.b16 %v832
        %v2037 = vunpack.c.l.b16 %v833
        %v2038 = vunpack.c.h.b16 %v833
        %v2039 = vunpack.c.l.b16 %v834
        %v2040 = vunpack.c.h.b16 %v834
        %v2041 = vunpack.c.l.b16 %v835
        %v2042 = vunpack.c.h.b16 %v835
        %v2043 = vunpack.c.l.b16 %v836
        %v2044 = vunpack.c.h.b16 %v836
        %v2045 = vunpack.c.l.b16 %v837
        %v2046 = vunpack.c.h.b16 %v837
        %v2047 = vunpack.c.l.b16 %v838
        %v2048 = vunpack.c.h.b16 %v838
        %v2049 = vunpack.c.l.b16 %v839
        %v2050 = vunpack.c.h.b16 %v839
        %v2051 = vunpack.c.l.b16 %v840
        %v2052 = vunpack.c.h.b16 %v840
        %v2053 = vunpack.c.l.b16 %v841
        %v2054 = vunpack.c.h.b16 %v841
        %v2055 = vunpack.c.l.b16 %v842
        %v2056 = vunpack.c.h.b16 %v842
        %v2057 = vunpack.c.l.b16 %v843
        %v2058 = vunpack.c.h.b16 %v843
        %v2059 = vunpack.c.l.b16 %v844
        %v2060 = vunpack.c.h.b16 %v844
        %v2061 = vunpack.c.l.b16 %v845
        %v2062 = vunpack.c.h.b16 %v845
        %v2063 = vunpack.c.l.b16 %v846
        %v2064 = vunpack.c.h.b16 %v846
        %v2065 = vunpack.c.l.b16 %v847
        %v2066 = vunpack.c.h.b16 %v847
        %v2067 = vunpack.c.l.b16 %v848
        %v2068 = vunpack.c.h.b16 %v848
        %v2069 = vunpack.c.l.b16 %v849
        %v2070 = vunpack.c.h.b16 %v849
        %v2071 = vunpack.c.l.b16 %v850
        %v2072 = vunpack.c.h.b16 %v850
        %v2073 = vunpack.c.l.b16 %v851
        %v2074 = vunpack.c.h.b16 %v851
        %v2075 = vunpack.c.l.b16 %v852
        %v2076 = vunpack.c.h.b16 %v852
        %v2077 = vunpack.c.l.b16 %v853
        %v2078 = vunpack.c.h.b16 %v853
        %v2079 = vunpack.c.l.b16 %v854
        %v2080 = vunpack.c.h.b16 %v854
        %v2081 = vunpack.c.l.b16 %v855
        %v2082 = vunpack.c.h.b16 %v855
        %v2083 = vunpack.c.l.b16 %v856
        %v2084 = vunpack.c.h.b16 %v856
        %v2085 = vunpack.c.l.b16 %v857
        %v2086 = vunpack.c.h.b16 %v857
        %v2087 = vunpack.c.l.b16 %v858
        %v2088 = vunpack.c.h.b16 %v858
        %v2089 = vunpack.c.l.b16 %v859
        %v2090 = vunpack.c.h.b16 %v859
        %v2091 = vunpack.c.l.b16 %v860
        %v2092 = vunpack.c.h.b16 %v860
        %v2093 = vunpack.c.l.b16 %v861
        %v2094 = vunpack.c.h.b16 %v861
        %v2095 = vunpack.c.l.b16 %v862
        %v2096 = vunpack.c.h.b16 %v862
        %v2097 = vunpack.c.l.b16 %v863
        %v2098 = vunpack.c.h.b16 %v863
        %v2099 = vunpack.c.l.b16 %v864
        %v2100 = vunpack.c.h.b16 %v864
        %v2101 = vunpack.c.l.b16 %v865
        %v2102 = vunpack.c.h.b16 %v865
        %v2103 = vunpack.c.l.b16 %v866
        %v2104 = vunpack.c.h.b16 %v866
        %v2105 = vunpack.c.l.b16 %v867
        %v2106 = vunpack.c.h.b16 %v867
        %v2107 = vunpack.c.l.b16 %v868
        %v2108 = vunpack.c.h.b16 %v868
        %v2109 = vunpack.c.l.b16 %v869
        %v2110 = vunpack.c.h.b16 %v869
        %v2111 = vunpack.c.l.b16 %v870
        %v2112 = vunpack.c.h.b16 %v870
        %v2113 = vunpack.c.l.b16 %v871
        %v2114 = vunpack.c.h.b16 %v871
        %v2115 = vunpack.c.l.b16 %v872
        %v2116 = vunpack.c.h.b16 %v872
        %v2117 = vunpack.c.l.b16 %v873
        %v2118 = vunpack.c.h.b16 %v873
        %v2119 = vunpack.c.l.b16 %v874
        %v2120 = vunpack.c.h.b16 %v874
        %v2121 = vunpack.c.l.b16 %v875
        %v2122 = vunpack.c.h.b16 %v875
        %v2123 = vunpack.c.l.b16 %v876
        %v2124 = vunpack.c.h.b16 %v876
        %v2125 = vunpack.c.l.b16 %v877
        %v2126 = vunpack.c.h.b16 %v877
        %v2127 = vunpack.c.l.b16 %v878
        %v2128 = vunpack.c.h.b16 %v878
        %v2129 = vunpack.c.l.b16 %v879
        %v2130 = vunpack.c.h.b16 %v879
        %v2131 = vunpack.c.l.b16 %v880
        %v2132 = vunpack.c.h.b16 %v880
        %v2133 = vunpack.c.l.b16 %v881
        %v2134 = vunpack.c.h.b16 %v881
        %v2135 = vunpack.c.l.b16 %v882
        %v2136 = vunpack.c.h.b16 %v882
        %v2137 = vunpack.c.l.b16 %v883
        %v2138 = vunpack.c.h.b16 %v883
        %v2139 = vunpack.c.l.b16 %v884
        %v2140 = vunpack.c.h.b16 %v884
        %v2141 = vunpack.c.l.b16 %v885
        %v2142 = vunpack.c.h.b16 %v885
        %v2143 = vunpack.c.l.b16 %v886
        %v2144 = vunpack.c.h.b16 %v886
        %v2145 = vunpack.c.l.b16 %v887
        %v2146 = vunpack.c.h.b16 %v887
        %v2147 = vunpack.c.l.b16 %v888
        %v2148 = vunpack.c.h.b16 %v888
        %v2149 = vunpack.c.l.b16 %v889
        %v2150 = vunpack.c.h.b16 %v889
        %v2151 = vunpack.c.l.b16 %v890
        %v2152 = vunpack.c.h.b16 %v890
        %v2153 = vunpack.c.l.b16 %v891
        %v2154 = vunpack.c.h.b16 %v891
        %v2155 = vunpack.c.l.b16 %v892
        %v2156 = vunpack.c.h.b16 %v892
        %v2157 = vunpack.c.l.b16 %v893
        %v2158 = vunpack.c.h.b16 %v893
        %v2159 = vunpack.c.l.b16 %v894
        %v2160 = vunpack.c.h.b16 %v894
        %v2161 = vunpack.c.l.b16 %v895
        %v2162 = vunpack.c.h.b16 %v895
        %v2163 = vunpack.c.l.b16 %v896
        %v2164 = vunpack.c.h.b16 %v896
        %v2165 = vunpack.c.l.b16 %v897
        %v2166 = vunpack.c.h.b16 %v897
        %v2167 = vunpack.c.l.b16 %v898
        %v2168 = vunpack.c.h.b16 %v898
        %v2169 = vunpack.c.l.b16 %v899
        %v2170 = vunpack.c.h.b16 %v899
        %v2171 = vunpack.c.l.b16 %v900
        %v2172 = vunpack.c.h.b16 %v900
        %v2173 = vunpack.c.l.b16 %v901
        %v2174 = vunpack.c.h.b16 %v901
        %v2175 = vunpack.c.l.b16 %v902
        %v2176 = vunpack.c.h.b16 %v902
        %v2177 = vpack.c.b16 %v1553, %v1345
        %v2178 = vpack.c.b16 %v1554, %v1346
        %v2179 = vpack.c.b16 %v1555, %v1347
        %v2180 = vpack.c.b16 %v1556, %v1348
        %v2181 = vpack.c.b16 %v1557, %v1349
        %v2182 = vpack.c.b16 %v1558, %v1350
        %v2183 = vpack.c.b16 %v1559, %v1351
        %v2184 = vpack.c.b16 %v1560, %v1352
        %v2185 = vpack.c.b16 %v1561, %v1353
        %v2186 = vpack.c.b16 %v1562, %v1354
        %v2187 = vpack.c.b16 %v1563, %v1355
        %v2188 = vpack.c.b16 %v1564, %v1356
        %v2189 = vpack.c.b16 %v1565, %v1357
        %v2190 = vpack.c.b16 %v1566, %v1358
        %v2191 = vpack.c.b16 %v1567, %v1359
        %v2192 = vpack.c.b16 %v1568, %v1360
        %v2193 = vpack.c.b16 %v1569, %v1361
        %v2194 = vpack.c.b16 %v1570, %v1362
        %v2195 = vpack.c.b16 %v1571, %v1363
        %v2196 = vpack.c.b16 %v1572, %v1364
        %v2197 = vpack.c.b16 %v1573, %v1365
        %v2198 = vpack.c.b16 %v1574, %v1366
        %v2199 = vpack.c.b16 %v1575, %v1367
        %v2200 = vpack.c.b16 %v1576, %v1368
        %v2201 = vpack.c.b16 %v1577, %v1369
        %v2202 = vpack.c.b16 %v1578, %v1370
        %v2203 = vpack.c.b16 %v1579, %v1371
        %v2204 = vpack.c.b16 %v1580, %v1372
        %v2205 = vpack.c.b16 %v1581, %v1373
        %v2206 = vpack.c.b16 %v1582, %v1374
        %v2207 = vpack.c.b16 %v1583, %v1375
        %v2208 = vpack.c.b16 %v1584, %v1376
        %v2209 = vpack.c.b16 %v1585, %v1377
        %v2210 = vpack.c.b16 %v1586, %v1378
        %v2211 = vpack.c.b16 %v1587, %v1379
        %v2212 = vpack.c.b16 %v1588, %v1380
        %v2213 = vpack.c.b16 %v1589, %v1381
        %v2214 = vpack.c.b16 %v1590, %v1382
        %v2215 = vpack.c.b16 %v1591, %v1383
        %v2216 = vpack.c.b16 %v1592, %v1384
        %v2217 = vpack.c.b16 %v1593, %v1385
        %v2218 = vpack.c.b16 %v1594, %v1386
        %v2219 = vpack.c.b16 %v1595, %v1387
        %v2220 = vpack.c.b16 %v1596, %v1388
        %v2221 = vpack.c.b16 %v1597, %v1389
        %v2222 = vpack.c.b16 %v1598, %v1390
        %v2223 = vpack.c.b16 %v1599, %v1391
        %v2224 = vpack.c.b16 %v1600, %v1392
        %v2225 = vpack.c.b16 %v1601, %v1393
        %v2226 = vpack.c.b16 %v1602, %v1394
        %v2227 = vpack.c.b16 %v1603, %v1395
        %v2228 = vpack.c.b16 %v1604, %v1396
        %v2229 = vpack.c.b16 %v1605, %v1397
        %v2230 = vpack.c.b16 %v1606, %v1398
        %v2231 = vpack.c.b16 %v1607, %v1399
        %v2232 = vpack.c.b16 %v1608, %v1400
        %v2233 = vpack.c.b16 %v1609, %v1401
        %v2234 = vpack.c.b16 %v1610, %v1402
        %v2235 = vpack.c.b16 %v1611, %v1403
        %v2236 = vpack.c.b16 %v1612, %v1404
        %v2237 = vpack.c.b16 %v1613, %v1405
        %v2238 = vpack.c.b16 %v1614, %v1406
        %v2239 = vpack.c.b16 %v1615, %v1407
        %v2240 = vpack.c.b16 %v1616, %v1408
        %v2241 = vpack.c.b16 %v1617, %v1409
        %v2242 = vpack.c.b16 %v1618, %v1410
        %v2243 = vpack.c.b16 %v1619, %v1411
        %v2244 = vpack.c.b16 %v1620, %v1412
        %v2245 = vpack.c.b16 %v1621, %v1413
        %v2246 = vpack.c.b16 %v1622, %v1414
        %v2247 = vpack.c.b16 %v1623, %v1415
        %v2248 = vpack.c.b16 %v1624, %v1416
        %v2249 = vpack.c.b16 %v1625, %v1417
        %v2250 = vpack.c.b16 %v1626, %v1418
        %v2251 = vpack.c.b16 %v1627, %v1419
        %v2252 = vpack.c.b16 %v1628, %v1420
        %v2253 = vpack.c.b16 %v1629, %v1421
        %v2254 = vpack.c.b16 %v1630, %v1422
        %v2255 = vpack.c.b16 %v1631, %v1423
        %v2256 = vpack.c.b16 %v1632, %v1424
        %v2257 = vpack.c.b16 %v1633, %v1425
        %v2258 = vpack.c.b16 %v1634, %v1426
        %v2259 = vpack.c.b16 %v1635, %v1427
        %v2260 = vpack.c.b16 %v1636, %v1428
        %v2261 = vpack.c.b16 %v1637, %v1429
        %v2262 = vpack.c.b16 %v1638, %v1430
        %v2263 = vpack.c.b16 %v1639, %v1431
        %v2264 = vpack.c.b16 %v1640, %v1432
        %v2265 = vpack.c.b16 %v1641, %v1433
        %v2266 = vpack.c.b16 %v1642, %v1434
        %v2267 = vpack.c.b16 %v1643, %v1435
        %v2268 = vpack.c.b16 %v1644, %v1436
        %v2269 = vpack.c.b16 %v1645, %v1437
        %v2270 = vpack.c.b16 %v1646, %v1438
        %v2271 = vpack.c.b16 %v1647, %v1439
        %v2272 = vpack.c.b16 %v1648, %v1440
        %v2273 = vpack.c.b16 %v1649, %v1441
        %v2274 = vpack.c.b16 %v1650, %v1442
        %v2275 = vpack.c.b16 %v1651, %v1443
        %v2276 = vpack.c.b16 %v1652, %v1444
        %v2277 = vpack.c.b16 %v1653, %v1445
        %v2278 = vpack.c.b16 %v1654, %v1446
        %v2279 = vpack.c.b16 %v1655, %v1447
        %v2280 = vpack.c.b16 %v1656, %v1448
        %v2281 = vpack.c.b16 %v1657, %v1449
        %v2282 = vpack.c.b16 %v1658, %v1450
        %v2283 = vpack.c.b16 %v1659, %v1451
        %v2284 = vpack.c.b16 %v1660, %v1452
        %v2285 = vpack.c.b16 %v1661, %v1453
        %v2286 = vpack.c.b16 %v1662, %v1454
        %v2287 = vpack.c.b16 %v1663, %v1455
        %v2288 = vpack.c.b16 %v1664, %v1456
        %v2289 = vpack.c.b16 %v1665, %v1457
        %v2290 = vpack.c.b16 %v1666, %v1458
        %v2291 = vpack.c.b16 %v1667, %v1459
        %v2292 = vpack.c.b16 %v1668, %v1460
        %v2293 = vpack.c.b16 %v1669, %v1461
        %v2294 = vpack.c.b16 %v1670, %v1462
        %v2295 = vpack.c.b16 %v1671, %v1463
        %v2296 = vpack.c.b16 %v1672, %v1464
        %v2297 = vpack.c.b16 %v1673, %v1465
        %v2298 = vpack.c.b16 %v1674, %v1466
        %v2299 = vpack.c.b16 %v1675, %v1467
        %v2300 = vpack.c.b16 %v1676, %v1468
        %v2301 = vpack.c.b16 %v1677, %v1469
        %v2302 = vpack.c.b16 %v1678, %v1470
        %v2303 = vpack.c.b16 %v1679, %v1471
        %v2304 = vpack.c.b16 %v1680, %v1472
        %v2305 = vpack.c.b16 %v1681, %v1473
        %v2306 = vpack.c.b16 %v1682, %v1474
        %v2307 = vpack.c.b16 %v1683, %v1475
        %v2308 = vpack.c.b16 %v1684, %v1476
        %v2309 = vpack.c.b16 %v1685, %v1477
        %v2310 = vpack.c.b16 %v1686, %v1478
        %v2311 = vpack.c.b16 %v1687, %v1479
        %v2312 = vpack.c.b16 %v1688, %v1480
        %v2313 = vpack.c.b16 %v1689, %v1481
        %v2314 = vpack.c.b16 %v1690, %v1482
        %v2315 = vpack.c.b16 %v1691, %v1483
        %v2316 = vpack.c.b16 %v1692, %v1484
        %v2317 = vpack.c.b16 %v1693, %v1485
        %v2318 = vpack.c.b16 %v1694, %v1486
        %v2319 = vpack.c.b16 %v1695, %v1487
        %v2320 = vpack.c.b16 %v1696, %v1488
        %v2321 = vpack.c.b16 %v1697, %v1489
        %v2322 = vpack.c.b16 %v1698, %v1490
        %v2323 = vpack.c.b16 %v1699, %v1491
        %v2324 = vpack.c.b16 %v1700, %v1492
        %v2325 = vpack.c.b16 %v1701, %v1493
        %v2326 = vpack.c.b16 %v1702, %v1494
        %v2327 = vpack.c.b16 %v1703, %v1495
        %v2328 = vpack.c.b16 %v1704, %v1496
        %v2329 = vpack.c.b16 %v1705, %v1497
        %v2330 = vpack.c.b16 %v1706, %v1498
        %v2331 = vpack.c.b16 %v1707, %v1499
        %v2332 = vpack.c.b16 %v1708, %v1500
        %v2333 = vpack.c.b16 %v1709, %v1501
        %v2334 = vpack.c.b16 %v1710, %v1502
        %v2335 = vpack.c.b16 %v1711, %v1503
        %v2336 = vpack.c.b16 %v1712, %v1504
        %v2337 = vpack.c.b16 %v1713, %v1505
        %v2338 = vpack.c.b16 %v1714, %v1506
        %v2339 = vpack.c.b16 %v1715, %v1507
        %v2340 = vpack.c.b16 %v1716, %v1508
        %v2341 = vpack.c.b16 %v1717, %v1509
        %v2342 = vpack.c.b16 %v1718, %v1510
        %v2343 = vpack.c.b16 %v1719, %v1511
        %v2344 = vpack.c.b16 %v1720, %v1512
        %v2345 = vpack.c.b16 %v1721, %v1513
        %v2346 = vpack.c.b16 %v1722, %v1514
        %v2347 = vpack.c.b16 %v1723, %v1515
        %v2348 = vpack.c.b16 %v1724, %v1516
        %v2349 = vpack.c.b16 %v1725, %v1517
        %v2350 = vpack.c.b16 %v1726, %v1518
        %v2351 = vpack.c.b16 %v1727, %v1519
        %v2352 = vpack.c.b16 %v1728, %v1520
        %v2353 = vpack.c.b16 %v1729, %v1521
        %v2354 = vpack.c.b16 %v1730, %v1522
        %v2355 = vpack.c.b16 %v1731, %v1523
        %v2356 = vpack.c.b16 %v1732, %v1524
        %v2357 = vpack.c.b16 %v1733, %v1525
        %v2358 = vpack.c.b16 %v1734, %v1526
        %v2359 = vpack.c.b16 %v1735, %v1527
        %v2360 = vpack.c.b16 %v1736, %v1528
        %v2361 = vpack.c.b16 %v1737, %v1529
        %v2362 = vpack.c.b16 %v1738, %v1530
        %v2363 = vpack.c.b16 %v1739, %v1531
        %v2364 = vpack.c.b16 %v1740, %v1532
        %v2365 = vpack.c.b16 %v1741, %v1533
        %v2366 = vpack.c.b16 %v1742, %v1534
        %v2367 = vpack.c.b16 %v1743, %v1535
        %v2368 = vpack.c.b16 %v1744, %v1536
        %v2369 = vpack.c.b16 %v1745, %v1537
        %v2370 = vpack.c.b16 %v1746, %v1538
        %v2371 = vpack.c.b16 %v1747, %v1539
        %v2372 = vpack.c.b16 %v1748, %v1540
        %v2373 = vpack.c.b16 %v1749, %v1541
        %v2374 = vpack.c.b16 %v1750, %v1542
        %v2375 = vpack.c.b16 %v1751, %v1543
        %v2376 = vpack.c.b16 %v1752, %v1544
        %v2377 = vpack.c.b16 %v1753, %v1545
        %v2378 = vpack.c.b16 %v1754, %v1546
        %v2379 = vpack.c.b16 %v1755, %v1547
        %v2380 = vpack.c.b16 %v1756, %v1548
        %v2381 = vpack.c.b16 %v1757, %v1549
        %v2382 = vpack.c.b16 %v1758, %v1550
        %v2383 = vpack.c.b16 %v1759, %v1551
        %v2384 = vpack.c.b16 %v1760, %v1552
        %v2385 = vpack.c.b16 %v1969, %v1761
        %v2386 = vpack.c.b16 %v1970, %v1762
        %v2387 = vpack.c.b16 %v1971, %v1763
        %v2388 = vpack.c.b16 %v1972, %v1764
        %v2389 = vpack.c.b16 %v1973, %v1765
        %v2390 = vpack.c.b16 %v1974, %v1766
        %v2391 = vpack.c.b16 %v1975, %v1767
        %v2392 = vpack.c.b16 %v1976, %v1768
        %v2393 = vpack.c.b16 %v1977, %v1769
        %v2394 = vpack.c.b16 %v1978, %v1770
        %v2395 = vpack.c.b16 %v1979, %v1771
        %v2396 = vpack.c.b16 %v1980, %v1772
        %v2397 = vpack.c.b16 %v1981, %v1773
        %v2398 = vpack.c.b16 %v1982, %v1774
        %v2399 = vpack.c.b16 %v1983, %v1775
        %v2400 = vpack.c.b16 %v1984, %v1776
        %v2401 = vpack.c.b16 %v1985, %v1777
        %v2402 = vpack.c.b16 %v1986, %v1778
        %v2403 = vpack.c.b16 %v1987, %v1779
        %v2404 = vpack.c.b16 %v1988, %v1780
        %v2405 = vpack.c.b16 %v1989, %v1781
        %v2406 = vpack.c.b16 %v1990, %v1782
        %v2407 = vpack.c.b16 %v1991, %v1783
        %v2408 = vpack.c.b16 %v1992, %v1784
        %v2409 = vpack.c.b16 %v1993, %v1785
        %v2410 = vpack.c.b16 %v1994, %v1786
        %v2411 = vpack.c.b16 %v1995, %v1787
        %v2412 = vpack.c.b16 %v1996, %v1788
        %v2413 = vpack.c.b16 %v1997, %v1789
        %v2414 = vpack.c.b16 %v1998, %v1790
        %v2415 = vpack.c.b16 %v1999, %v1791
        %v2416 = vpack.c.b16 %v2000, %v1792
        %v2417 = vpack.c.b16 %v2001, %v1793
        %v2418 = vpack.c.b16 %v2002, %v1794
        %v2419 = vpack.c.b16 %v2003, %v1795
        %v2420 = vpack.c.b16 %v2004, %v1796
        %v2421 = vpack.c.b16 %v2005, %v1797
        %v2422 = vpack.c.b16 %v2006, %v1798
        %v2423 = vpack.c.b16 %v2007, %v1799
        %v2424 = vpack.c.b16 %v2008, %v1800
        %v2425 = vpack.c.b16 %v2009, %v1801
        %v2426 = vpack.c.b16 %v2010, %v1802
        %v2427 = vpack.c.b16 %v2011, %v1803
        %v2428 = vpack.c.b16 %v2012, %v1804
        %v2429 = vpack.c.b16 %v2013, %v1805
        %v2430 = vpack.c.b16 %v2014, %v1806
        %v2431 = vpack.c.b16 %v2015, %v1807
        %v2432 = vpack.c.b16 %v2016, %v1808
        %v2433 = vpack.c.b16 %v2017, %v1809
        %v2434 = vpack.c.b16 %v2018, %v1810
        %v2435 = vpack.c.b16 %v2019, %v1811
        %v2436 = vpack.c.b16 %v2020, %v1812
        %v2437 = vpack.c.b16 %v2021, %v1813
        %v2438 = vpack.c.b16 %v2022, %v1814
        %v2439 = vpack.c.b16 %v2023, %v1815
        %v2440 = vpack.c.b16 %v2024, %v1816
        %v2441 = vpack.c.b16 %v2025, %v1817
        %v2442 = vpack.c.b16 %v2026, %v1818
        %v2443 = vpack.c.b16 %v2027, %v1819
        %v2444 = vpack.c.b16 %v2028, %v1820
        %v2445 = vpack.c.b16 %v2029, %v1821
        %v2446 = vpack.c.b16 %v2030, %v1822
        %v2447 = vpack.c.b16 %v2031, %v1823
        %v2448 = vpack.c.b16 %v2032, %v1824
        %v2449 = vpack.c.b16 %v2033, %v1825
        %v2450 = vpack.c.b16 %v2034, %v1826
        %v2451 = vpack.c.b16 %v2035, %v1827
        %v2452 = vpack.c.b16 %v2036, %v1828
        %v2453 = vpack.c.b16 %v2037, %v1829
        %v2454 = vpack.c.b16 %v2038, %v1830
        %v2455 = vpack.c.b16 %v2039, %v1831
        %v2456 = vpack.c.b16 %v2040, %v1832
        %v2457 = vpack.c.b16 %v2041, %v1833
        %v2458 = vpack.c.b16 %v2042, %v1834
        %v2459 = vpack.c.b16 %v2043, %v1835
        %v2460 = vpack.c.b16 %v2044, %v1836
        %v2461 = vpack.c.b16 %v2045, %v1837
        %v2462 = vpack.c.b16 %v2046, %v1838
        %v2463 = vpack.c.b16 %v2047, %v1839
        %v2464 = vpack.c.b16 %v2048, %v1840
        %v2465 = vpack.c.b16 %v2049, %v1841
        %v2466 = vpack.c.b16 %v2050, %v1842
        %v2467 = vpack.c.b16 %v2051, %v1843
        %v2468 = vpack.c.b16 %v2052, %v1844
        %v2469 = vpack.c.b16 %v2053, %v1845
        %v2470 = vpack.c.b16 %v2054, %v1846
        %v2471 = vpack.c.b16 %v2055, %v1847
        %v2472 = vpack.c.b16 %v2056, %v1848
        %v2473 = vpack.c.b16 %v2057, %v1849
        %v2474 = vpack.c.b16 %v2058, %v1850
        %v2475 = vpack.c.b16 %v2059, %v1851
        %v2476 = vpack.c.b16 %v2060, %v1852
        %v2477 = vpack.c.b16 %v2061, %v1853
        %v2478 = vpack.c.b16 %v2062, %v1854
        %v2479 = vpack.c.b16 %v2063, %v1855
        %v2480 = vpack.c.b16 %v2064, %v1856
        %v2481 = vpack.c.b16 %v2065, %v1857
        %v2482 = vpack.c.b16 %v2066, %v1858
        %v2483 = vpack.c.b16 %v2067, %v1859
        %v2484 = vpack.c.b16 %v2068, %v1860
        %v2485 = vpack.c.b16 %v2069, %v1861
        %v2486 = vpack.c.b16 %v2070, %v1862
        %v2487 = vpack.c.b16 %v2071, %v1863
        %v2488 = vpack.c.b16 %v2072, %v1864
        %v2489 = vpack.c.b16 %v2073, %v1865
        %v2490 = vpack.c.b16 %v2074, %v1866
        %v2491 = vpack.c.b16 %v2075, %v1867
        %v2492 = vpack.c.b16 %v2076, %v1868
        %v2493 = vpack.c.b16 %v2077, %v1869
        %v2494 = vpack.c.b16 %v2078, %v1870
        %v2495 = vpack.c.b16 %v2079, %v1871
        %v2496 = vpack.c.b16 %v2080, %v1872
        %v2497 = vpack.c.b16 %v2081, %v1873
        %v2498 = vpack.c.b16 %v2082, %v1874
        %v2499 = vpack.c.b16 %v2083, %v1875
        %v2500 = vpack.c.b16 %v2084, %v1876
        %v2501 = vpack.c.b16 %v2085, %v1877
        %v2502 = vpack.c.b16 %v2086, %v1878
        %v2503 = vpack.c.b16 %v2087, %v1879
        %v2504 = vpack.c.b16 %v2088, %v1880
        %v2505 = vpack.c.b16 %v2089, %v1881
        %v2506 = vpack.c.b16 %v2090, %v1882
        %v2507 = vpack.c.b16 %v2091, %v1883
        %v2508 = vpack.c.b16 %v2092, %v1884
        %v2509 = vpack.c.b16 %v2093, %v1885
        %v2510 = vpack.c.b16 %v2094, %v1886
        %v2511 = vpack.c.b16 %v2095, %v1887
        %v2512 = vpack.c.b16 %v2096, %v1888
        %v2513 = vpack.c.b16 %v2097, %v1889
        %v2514 = vpack.c.b16 %v2098, %v1890
        %v2515 = vpack.c.b16 %v2099, %v1891
        %v2516 = vpack.c.b16 %v2100, %v1892
        %v2517 = vpack.c.b16 %v2101, %v1893
        %v2518 = vpack.c.b16 %v2102, %v1894
        %v2519 = vpack.c.b16 %v2103, %v1895
        %v2520 = vpack.c.b16 %v2104, %v1896
        %v2521 = vpack.c.b16 %v2105, %v1897
        %v2522 = vpack.c.b16 %v2106, %v1898
        %v2523 = vpack.c.b16 %v2107, %v1899
        %v2524 = vpack.c.b16 %v2108, %v1900
        %v2525 = vpack.c.b16 %v2109, %v1901
        %v2526 = vpack.c.b16 %v2110, %v1902
        %v2527 = vpack.c.b16 %v2111, %v1903
        %v2528 = vpack.c.b16 %v2112, %v1904
        %v2529 = vpack.c.b16 %v2113, %v1905
        %v2530 = vpack.c.b16 %v2114, %v1906
        %v2531 = vpack.c.b16 %v2115, %v1907
        %v2532 = vpack.c.b16 %v2116, %v1908
        %v2533 = vpack.c.b16 %v2117, %v1909
        %v2534 = vpack.c.b16 %v2118, %v1910
        %v2535 = vpack.c.b16 %v2119, %v1911
        %v2536 = vpack.c.b16 %v2120, %v1912
        %v2537 = vpack.c.b16 %v2121, %v1913
        %v2538 = vpack.c.b16 %v2122, %v1914
        %v2539 = vpack.c.b16 %v2123, %v1915
        %v2540 = vpack.c.b16 %v2124, %v1916
        %v2541 = vpack.c.b16 %v2125, %v1917
        %v2542 = vpack.c.b16 %v2126, %v1918
        %v2543 = vpack.c.b16 %v2127, %v1919
        %v2544 = vpack.c.b16 %v2128, %v1920
        %v2545 = vpack.c.b16 %v2129, %v1921
        %v2546 = vpack.c.b16 %v2130, %v1922
        %v2547 = vpack.c.b16 %v2131, %v1923
        %v2548 = vpack.c.b16 %v2132, %v1924
        %v2549 = vpack.c.b16 %v2133, %v1925
        %v2550 = vpack.c.b16 %v2134, %v1926
        %v2551 = vpack.c.b16 %v2135, %v1927
        %v2552 = vpack.c.b16 %v2136, %v1928
        %v2553 = vpack.c.b16 %v2137, %v1929
        %v2554 = vpack.c.b16 %v2138, %v1930
        %v2555 = vpack.c.b16 %v2139, %v1931
        %v2556 = vpack.c.b16 %v2140, %v1932
        %v2557 = vpack.c.b16 %v2141, %v1933
        %v2558 = vpack.c.b16 %v2142, %v1934
        %v2559 = vpack.c.b16 %v2143, %v1935
        %v2560 = vpack.c.b16 %v2144, %v1936
        %v2561 = vpack.c.b16 %v2145, %v1937
        %v2562 = vpack.c.b16 %v2146, %v1938
        %v2563 = vpack.c.b16 %v2147, %v1939
        %v2564 = vpack.c.b16 %v2148, %v1940
        %v2565 = vpack.c.b16 %v2149, %v1941
        %v2566 = vpack.c.b16 %v2150, %v1942
        %v2567 = vpack.c.b16 %v2151, %v1943
        %v2568 = vpack.c.b16 %v2152, %v1944
        %v2569 = vpack.c.b16 %v2153, %v1945
        %v2570 = vpack.c.b16 %v2154, %v1946
        %v2571 = vpack.c.b16 %v2155, %v1947
        %v2572 = vpack.c.b16 %v2156, %v1948
        %v2573 = vpack.c.b16 %v2157, %v1949
        %v2574 = vpack.c.b16 %v2158, %v1950
        %v2575 = vpack.c.b16 %v2159, %v1951
        %v2576 = vpack.c.b16 %v2160, %v1952
        %v2577 = vpack.c.b16 %v2161, %v1953
        %v2578 = vpack.c.b16 %v2162, %v1954
        %v2579 = vpack.c.b16 %v2163, %v1955
        %v2580 = vpack.c.b16 %v2164, %v1956
        %v2581 = vpack.c.b16 %v2165, %v1957
        %v2582 = vpack.c.b16 %v2166, %v1958
        %v2583 = vpack.c.b16 %v2167, %v1959
        %v2584 = vpack.c.b16 %v2168, %v1960
        %v2585 = vpack.c.b16 %v2169, %v1961
        %v2586 = vpack.c.b16 %v2170, %v1962
        %v2587 = vpack.c.b16 %v2171, %v1963
        %v2588 = vpack.c.b16 %v2172, %v1964
        %v2589 = vpack.c.b16 %v2173, %v1965
        %v2590 = vpack.c.b16 %v2174, %v1966
        %v2591 = vpack.c.b16 %v2175, %v1967
        %v2592 = vpack.c.b16 %v2176, %v1968
        %v3035 = vperm.slane %v903, 0
        %v3036 = vperm.slane %v903, 1
        %v3037 = vperm.slane %v903, 2
        %v3038 = vperm.slane %v903, 3
        %v3039 = vperm.slane %v903, 4
        %v3040 = vperm.slane %v903, 5
        %v3041 = vperm.slane %v903, 6
        %v3042 = vperm.slane %v903, 7
        %v3043 = vperm.slane %v904, 0
        %v3044 = vperm.slane %v904, 1
        %v3045 = vperm.slane %v904, 2
        %v3046 = vperm.slane %v904, 3
        %v3047 = vperm.slane %v904, 4
        %v3048 = vperm.slane %v904, 5
        %v3049 = vperm.slane %v904, 6
        %v3050 = vperm.slane %v904, 7
        %v3051 = vperm.slane %v905, 0
        %v3052 = vperm.slane %v905, 1
        %v3053 = vperm.slane %v905, 2
        %v3054 = vperm.slane %v905, 3
        %v3055 = vperm.slane %v905, 4
        %v3056 = vperm.slane %v905, 5
        %v3057 = vperm.slane %v905, 6
        %v3058 = vperm.slane %v905, 7
        %v3059 = vperm.slane %v906, 0
        %v3060 = vperm.slane %v906, 1
        %v3061 = vperm.slane %v906, 2
        %v3062 = vperm.slane %v906, 3
        %v3063 = vperm.slane %v906, 4
        %v3064 = vperm.slane %v906, 5
        %v3065 = vperm.slane %v906, 6
        %v3066 = vperm.slane %v906, 7
        %v3067 = vperm.slane %v907, 0
        %v3068 = vperm.slane %v907, 1
        %v3069 = vperm.slane %v907, 2
        %v3070 = vperm.slane %v907, 3
        %v3071 = vperm.slane %v907, 4
        %v3072 = vperm.slane %v907, 5
        %v3073 = vperm.slane %v907, 6
        %v3074 = vperm.slane %v907, 7
        %v3075 = vperm.slane %v908, 0
        %v3076 = vperm.slane %v908, 1
        %v3077 = vperm.slane %v908, 2
        %v3078 = vperm.slane %v908, 3
        %v3079 = vperm.slane %v908, 4
        %v3080 = vperm.slane %v908, 5
        %v3081 = vperm.slane %v908, 6
        %v3082 = vperm.slane %v908, 7
        %v3083 = vperm.slane %v909, 0
        %v3084 = vperm.slane %v909, 1
        %v3085 = vperm.slane %v909, 2
        %v3086 = vperm.slane %v909, 3
        %v3087 = vperm.slane %v909, 4
        %v3088 = vperm.slane %v909, 5
        %v3089 = vperm.slane %v909, 6
        %v3090 = vperm.slane %v909, 7
        %v3091 = vperm.slane %v910, 0
        %v3092 = vperm.slane %v910, 1
        %v3093 = vperm.slane %v910, 2
        %v3094 = vperm.slane %v910, 3
        %v3095 = vperm.slane %v910, 4
        %v3096 = vperm.slane %v910, 5
        %v3097 = vperm.slane %v910, 6
        %v3098 = vperm.slane %v910, 7
        %v3099 = vperm.slane %v911, 0
        %v3100 = vperm.slane %v911, 1
        %v3101 = vperm.slane %v911, 2
        %v3102 = vperm.slane %v911, 3
        %v3103 = vperm.slane %v911, 4
        %v3104 = vperm.slane %v911, 5
        %v3105 = vperm.slane %v911, 6
        %v3106 = vperm.slane %v911, 7
        %v3107 = vperm.slane %v912, 0
        %v3108 = vperm.slane %v912, 1
        %v3109 = vperm.slane %v912, 2
        %v3110 = vperm.slane %v912, 3
        %v3111 = vperm.slane %v912, 4
        %v3112 = vperm.slane %v912, 5
        %v3113 = vperm.slane %v912, 6
        %v3114 = vperm.slane %v912, 7
        %v3115 = vperm.slane %v913, 0
        %v3116 = vperm.slane %v913, 1
        %v3117 = vperm.slane %v913, 2
        %v3118 = vperm.slane %v913, 3
        %v3119 = vperm.slane %v913, 4
        %v3120 = vperm.slane %v913, 5
        %v3121 = vperm.slane %v913, 6
        %v3122 = vperm.slane %v913, 7
        %v3123 = vperm.slane %v914, 0
        %v3124 = vperm.slane %v914, 1
        %v3125 = vperm.slane %v914, 2
        %v3126 = vperm.slane %v914, 3
        %v3127 = vperm.slane %v914, 4
        %v3128 = vperm.slane %v914, 5
        %v3129 = vperm.slane %v914, 6
        %v3130 = vperm.slane %v914, 7
        %v3131 = vperm.slane %v915, 0
        %v3132 = vperm.slane %v915, 1
        %v3133 = vperm.slane %v915, 2
        %v3134 = vperm.slane %v915, 3
        %v3135 = vperm.slane %v915, 4
        %v3136 = vperm.slane %v915, 5
        %v3137 = vperm.slane %v915, 6
        %v3138 = vperm.slane %v915, 7
        %v3139 = vperm.slane %v916, 0
        %v3140 = vperm.slane %v916, 1
        %v3141 = vperm.slane %v916, 2
        %v3142 = vperm.slane %v916, 3
        %v3143 = vperm.slane %v916, 4
        %v3144 = vperm.slane %v916, 5
        %v3145 = vperm.slane %v916, 6
        %v3146 = vperm.slane %v916, 7
        %v3147 = vperm.slane %v917, 0
        %v3148 = vperm.slane %v917, 1
        %v3149 = vperm.slane %v917, 2
        %v3150 = vperm.slane %v917, 3
        %v3151 = vperm.slane %v917, 4
        %v3152 = vperm.slane %v917, 5
        %v3153 = vperm.slane %v917, 6
        %v3154 = vperm.slane %v917, 7
        %v3155 = vperm.slane %v918, 0
        %v3156 = vperm.slane %v918, 1
        %v3157 = vperm.slane %v918, 2
        %v3158 = vperm.slane %v918, 3
        %v3159 = vperm.slane %v918, 4
        %v3160 = vperm.slane %v918, 5
        %v3161 = vperm.slane %v918, 6
        %v3162 = vperm.slane %v918, 7
        %v3163 = vperm.slane %v919, 0
        %v3164 = vperm.slane %v919, 1
        %v3165 = vperm.slane %v919, 2
        %v3166 = vperm.slane %v919, 3
        %v3167 = vperm.slane %v919, 4
        %v3168 = vperm.slane %v919, 5
        %v3169 = vperm.slane %v919, 6
        %v3170 = vperm.slane %v919, 7
        %v3171 = vperm.slane %v920, 0
        %v3172 = vperm.slane %v920, 1
        %v3173 = vperm.slane %v920, 2
        %v3174 = vperm.slane %v920, 3
        %v3175 = vperm.slane %v920, 4
        %v3176 = vperm.slane %v920, 5
        %v3177 = vperm.slane %v920, 6
        %v3178 = vperm.slane %v920, 7
        %v3179 = vperm.slane %v921, 0
        %v3180 = vperm.slane %v921, 1
        %v3181 = vperm.slane %v921, 2
        %v3182 = vperm.slane %v921, 3
        %v3183 = vperm.slane %v921, 4
        %v3184 = vperm.slane %v921, 5
        %v3185 = vperm.slane %v921, 6
        %v3186 = vperm.slane %v921, 7
        %v3187 = vperm.slane %v922, 0
        %v3188 = vperm.slane %v922, 1
        %v3189 = vperm.slane %v922, 2
        %v3190 = vperm.slane %v922, 3
        %v3191 = vperm.slane %v922, 4
        %v3192 = vperm.slane %v922, 5
        %v3193 = vperm.slane %v922, 6
        %v3194 = vperm.slane %v922, 7
        %v3195 = vperm.slane %v923, 0
        %v3196 = vperm.slane %v923, 1
        %v3197 = vperm.slane %v923, 2
        %v3198 = vperm.slane %v923, 3
        %v3199 = vperm.slane %v923, 4
        %v3200 = vperm.slane %v923, 5
        %v3201 = vperm.slane %v923, 6
        %v3202 = vperm.slane %v923, 7
        %v3203 = vperm.slane %v924, 0
        %v3204 = vperm.slane %v924, 1
        %v3205 = vperm.slane %v924, 2
        %v3206 = vperm.slane %v924, 3
        %v3207 = vperm.slane %v924, 4
        %v3208 = vperm.slane %v924, 5
        %v3209 = vperm.slane %v924, 6
        %v3210 = vperm.slane %v924, 7
        %v3211 = vperm.slane %v925, 0
        %v3212 = vperm.slane %v925, 1
        %v3213 = vperm.slane %v925, 2
        %v3214 = vperm.slane %v925, 3
        %v3215 = vperm.slane %v925, 4
        %v3216 = vperm.slane %v925, 5
        %v3217 = vperm.slane %v925, 6
        %v3218 = vperm.slane %v925, 7
        %v3219 = vperm.slane %v926, 0
        %v3220 = vperm.slane %v926, 1
        %v3221 = vperm.slane %v926, 2
        %v3222 = vperm.slane %v926, 3
        %v3223 = vperm.slane %v926, 4
        %v3224 = vperm.slane %v926, 5
        %v3225 = vperm.slane %v926, 6
        %v3226 = vperm.slane %v926, 7
        %v3227 = vperm.slane %v927, 0
        %v3228 = vperm.slane %v927, 1
        %v3229 = vperm.slane %v927, 2
        %v3230 = vperm.slane %v927, 3
        %v3231 = vperm.slane %v927, 4
        %v3232 = vperm.slane %v927, 5
        %v3233 = vperm.slane %v927, 6
        %v3234 = vperm.slane %v927, 7
        %v3235 = vperm.slane %v928, 0
        %v3236 = vperm.slane %v928, 1
        %v3237 = vperm.slane %v928, 2
        %v3238 = vperm.slane %v928, 3
        %v3239 = vperm.slane %v928, 4
        %v3240 = vperm.slane %v928, 5
        %v3241 = vperm.slane %v928, 6
        %v3242 = vperm.slane %v928, 7
        %v3452 = vsel %vm433, %v486, 0
        %3454 = vmatpush.bf16.msra.mxu0 0
        %3455 = vmatpush.bf16.msra.mxu0 0
        %3456 = vmatpush.bf16.msra.mxu0 0
        %3457 = vmatpush.bf16.msra.mxu0 0
        %3458 = vmatpush.bf16.msra.mxu0 0
        %3459 = vmatpush.bf16.msra.mxu0 0
        %3460 = vmatpush.bf16.msra.mxu0 %v2385
        %3461 = vmatpush.bf16.msra.mxu0 %v2177
        %3462 = vmatmul.bf16.gmra.mxu0 %v3452
        %v3463 = vpop.f32.mrf.mxu0
        %v3464 = vadd.f32 %v3035, %v3463
        %v3465 = vpop.f32.mrf.mxu0
        %3466 = vdwg.mxu0
        %3467 = vmatpush.bf16.msra.mxu0 0
        %3468 = vmatpush.bf16.msra.mxu0 0
        %3469 = vmatpush.bf16.msra.mxu0 0
        %3470 = vmatpush.bf16.msra.mxu0 0
        %3471 = vmatpush.bf16.msra.mxu0 0
        %3472 = vmatpush.bf16.msra.mxu0 0
        %3473 = vmatpush.bf16.msra.mxu0 %v2386
        %3474 = vmatpush.bf16.msra.mxu0 %v2178
        %3475 = vmatmul.bf16.gmra.mxu0 %v3452
        %v3476 = vpop.f32.mrf.mxu0
        %v3477 = vadd.f32 %v3036, %v3476
        %v3478 = vpop.f32.mrf.mxu0
        %3479 = vdwg.mxu0
        %3480 = vmatpush.bf16.msra.mxu0 0
        %3481 = vmatpush.bf16.msra.mxu0 0
        %3482 = vmatpush.bf16.msra.mxu0 0
        %3483 = vmatpush.bf16.msra.mxu0 0
        %3484 = vmatpush.bf16.msra.mxu0 0
        %3485 = vmatpush.bf16.msra.mxu0 0
        %3486 = vmatpush.bf16.msra.mxu0 %v2387
        %3487 = vmatpush.bf16.msra.mxu0 %v2179
        %3488 = vmatmul.bf16.gmra.mxu0 %v3452
        %v3489 = vpop.f32.mrf.mxu0
        %v3490 = vadd.f32 %v3037, %v3489
        %v3491 = vpop.f32.mrf.mxu0
        %3492 = vdwg.mxu0
        %3493 = vmatpush.bf16.msra.mxu0 0
        %3494 = vmatpush.bf16.msra.mxu0 0
        %3495 = vmatpush.bf16.msra.mxu0 0
        %3496 = vmatpush.bf16.msra.mxu0 0
        %3497 = vmatpush.bf16.msra.mxu0 0
        %3498 = vmatpush.bf16.msra.mxu0 0
        %3499 = vmatpush.bf16.msra.mxu0 %v2388
        %3500 = vmatpush.bf16.msra.mxu0 %v2180
        %3501 = vmatmul.bf16.gmra.mxu0 %v3452
        %v3502 = vpop.f32.mrf.mxu0
        %v3503 = vadd.f32 %v3038, %v3502
        %v3504 = vpop.f32.mrf.mxu0
        %3505 = vdwg.mxu0
        %3506 = vmatpush.bf16.msra.mxu0 0
        %3507 = vmatpush.bf16.msra.mxu0 0
        %3508 = vmatpush.bf16.msra.mxu0 0
        %3509 = vmatpush.bf16.msra.mxu0 0
        %3510 = vmatpush.bf16.msra.mxu0 0
        %3511 = vmatpush.bf16.msra.mxu0 0
        %3512 = vmatpush.bf16.msra.mxu0 %v2389
        %3513 = vmatpush.bf16.msra.mxu0 %v2181
        %3514 = vmatmul.bf16.gmra.mxu0 %v3452
        %v3515 = vpop.f32.mrf.mxu0
        %v3516 = vadd.f32 %v3039, %v3515
        %v3517 = vpop.f32.mrf.mxu0
        %3518 = vdwg.mxu0
        %3519 = vmatpush.bf16.msra.mxu0 0
        %3520 = vmatpush.bf16.msra.mxu0 0
        %3521 = vmatpush.bf16.msra.mxu0 0
        %3522 = vmatpush.bf16.msra.mxu0 0
        %3523 = vmatpush.bf16.msra.mxu0 0
        %3524 = vmatpush.bf16.msra.mxu0 0
        %3525 = vmatpush.bf16.msra.mxu0 %v2390
        %3526 = vmatpush.bf16.msra.mxu0 %v2182
        %3527 = vmatmul.bf16.gmra.mxu0 %v3452
        %v3528 = vpop.f32.mrf.mxu0
        %v3529 = vadd.f32 %v3040, %v3528
        %v3530 = vpop.f32.mrf.mxu0
        %3531 = vdwg.mxu0
        %3532 = vmatpush.bf16.msra.mxu0 0
        %3533 = vmatpush.bf16.msra.mxu0 0
        %3534 = vmatpush.bf16.msra.mxu0 0
        %3535 = vmatpush.bf16.msra.mxu0 0
        %3536 = vmatpush.bf16.msra.mxu0 0
        %3537 = vmatpush.bf16.msra.mxu0 0
        %3538 = vmatpush.bf16.msra.mxu0 %v2391
        %3539 = vmatpush.bf16.msra.mxu0 %v2183
        %3540 = vmatmul.bf16.gmra.mxu0 %v3452
        %v3541 = vpop.f32.mrf.mxu0
        %v3542 = vadd.f32 %v3041, %v3541
        %v3543 = vpop.f32.mrf.mxu0
        %3544 = vdwg.mxu0
        %3545 = vmatpush.bf16.msra.mxu0 0
        %3546 = vmatpush.bf16.msra.mxu0 0
        %3547 = vmatpush.bf16.msra.mxu0 0
        %3548 = vmatpush.bf16.msra.mxu0 0
        %3549 = vmatpush.bf16.msra.mxu0 0
        %3550 = vmatpush.bf16.msra.mxu0 0
        %3551 = vmatpush.bf16.msra.mxu0 %v2392
        %3552 = vmatpush.bf16.msra.mxu0 %v2184
        %3553 = vmatmul.bf16.gmra.mxu0 %v3452
        %v3554 = vpop.f32.mrf.mxu0
        %v3555 = vadd.f32 %v3042, %v3554
        %v3556 = vpop.f32.mrf.mxu0
        %3557 = vdwg.mxu0
        %3558 = vmatpush.bf16.msra.mxu0 0
        %3559 = vmatpush.bf16.msra.mxu0 0
        %3560 = vmatpush.bf16.msra.mxu0 0
        %3561 = vmatpush.bf16.msra.mxu0 0
        %3562 = vmatpush.bf16.msra.mxu0 0
        %3563 = vmatpush.bf16.msra.mxu0 0
        %3564 = vmatpush.bf16.msra.mxu0 %v2393
        %3565 = vmatpush.bf16.msra.mxu0 %v2185
        %3566 = vmatmul.bf16.gmra.mxu0 %v3452
        %v3567 = vpop.f32.mrf.mxu0
        %v3568 = vadd.f32 %v3043, %v3567
        %v3569 = vpop.f32.mrf.mxu0
        %3570 = vdwg.mxu0
        %3571 = vmatpush.bf16.msra.mxu0 0
        %3572 = vmatpush.bf16.msra.mxu0 0
        %3573 = vmatpush.bf16.msra.mxu0 0
        %3574 = vmatpush.bf16.msra.mxu0 0
        %3575 = vmatpush.bf16.msra.mxu0 0
        %3576 = vmatpush.bf16.msra.mxu0 0
        %3577 = vmatpush.bf16.msra.mxu0 %v2394
        %3578 = vmatpush.bf16.msra.mxu0 %v2186
        %3579 = vmatmul.bf16.gmra.mxu0 %v3452
        %v3580 = vpop.f32.mrf.mxu0
        %v3581 = vadd.f32 %v3044, %v3580
        %v3582 = vpop.f32.mrf.mxu0
        %3583 = vdwg.mxu0
        %3584 = vmatpush.bf16.msra.mxu0 0
        %3585 = vmatpush.bf16.msra.mxu0 0
        %3586 = vmatpush.bf16.msra.mxu0 0
        %3587 = vmatpush.bf16.msra.mxu0 0
        %3588 = vmatpush.bf16.msra.mxu0 0
        %3589 = vmatpush.bf16.msra.mxu0 0
        %3590 = vmatpush.bf16.msra.mxu0 %v2395
        %3591 = vmatpush.bf16.msra.mxu0 %v2187
        %3592 = vmatmul.bf16.gmra.mxu0 %v3452
        %v3593 = vpop.f32.mrf.mxu0
        %v3594 = vadd.f32 %v3045, %v3593
        %v3595 = vpop.f32.mrf.mxu0
        %3596 = vdwg.mxu0
        %3597 = vmatpush.bf16.msra.mxu0 0
        %3598 = vmatpush.bf16.msra.mxu0 0
        %3599 = vmatpush.bf16.msra.mxu0 0
        %3600 = vmatpush.bf16.msra.mxu0 0
        %3601 = vmatpush.bf16.msra.mxu0 0
        %3602 = vmatpush.bf16.msra.mxu0 0
        %3603 = vmatpush.bf16.msra.mxu0 %v2396
        %3604 = vmatpush.bf16.msra.mxu0 %v2188
        %3605 = vmatmul.bf16.gmra.mxu0 %v3452
        %v3606 = vpop.f32.mrf.mxu0
        %v3607 = vadd.f32 %v3046, %v3606
        %v3608 = vpop.f32.mrf.mxu0
        %3609 = vdwg.mxu0
        %3610 = vmatpush.bf16.msra.mxu0 0
        %3611 = vmatpush.bf16.msra.mxu0 0
        %3612 = vmatpush.bf16.msra.mxu0 0
        %3613 = vmatpush.bf16.msra.mxu0 0
        %3614 = vmatpush.bf16.msra.mxu0 0
        %3615 = vmatpush.bf16.msra.mxu0 0
        %3616 = vmatpush.bf16.msra.mxu0 %v2397
        %3617 = vmatpush.bf16.msra.mxu0 %v2189
        %3618 = vmatmul.bf16.gmra.mxu0 %v3452
        %v3619 = vpop.f32.mrf.mxu0
        %v3620 = vadd.f32 %v3047, %v3619
        %v3621 = vpop.f32.mrf.mxu0
        %3622 = vdwg.mxu0
        %3623 = vmatpush.bf16.msra.mxu0 0
        %3624 = vmatpush.bf16.msra.mxu0 0
        %3625 = vmatpush.bf16.msra.mxu0 0
        %3626 = vmatpush.bf16.msra.mxu0 0
        %3627 = vmatpush.bf16.msra.mxu0 0
        %3628 = vmatpush.bf16.msra.mxu0 0
        %3629 = vmatpush.bf16.msra.mxu0 %v2398
        %3630 = vmatpush.bf16.msra.mxu0 %v2190
        %3631 = vmatmul.bf16.gmra.mxu0 %v3452
        %v3632 = vpop.f32.mrf.mxu0
        %v3633 = vadd.f32 %v3048, %v3632
        %v3634 = vpop.f32.mrf.mxu0
        %3635 = vdwg.mxu0
        %3636 = vmatpush.bf16.msra.mxu0 0
        %3637 = vmatpush.bf16.msra.mxu0 0
        %3638 = vmatpush.bf16.msra.mxu0 0
        %3639 = vmatpush.bf16.msra.mxu0 0
        %3640 = vmatpush.bf16.msra.mxu0 0
        %3641 = vmatpush.bf16.msra.mxu0 0
        %3642 = vmatpush.bf16.msra.mxu0 %v2399
        %3643 = vmatpush.bf16.msra.mxu0 %v2191
        %3644 = vmatmul.bf16.gmra.mxu0 %v3452
        %v3645 = vpop.f32.mrf.mxu0
        %v3646 = vadd.f32 %v3049, %v3645
        %v3647 = vpop.f32.mrf.mxu0
        %3648 = vdwg.mxu0
        %3649 = vmatpush.bf16.msra.mxu0 0
        %3650 = vmatpush.bf16.msra.mxu0 0
        %3651 = vmatpush.bf16.msra.mxu0 0
        %3652 = vmatpush.bf16.msra.mxu0 0
        %3653 = vmatpush.bf16.msra.mxu0 0
        %3654 = vmatpush.bf16.msra.mxu0 0
        %3655 = vmatpush.bf16.msra.mxu0 %v2400
        %3656 = vmatpush.bf16.msra.mxu0 %v2192
        %3657 = vmatmul.bf16.gmra.mxu0 %v3452
        %v3658 = vpop.f32.mrf.mxu0
        %v3659 = vadd.f32 %v3050, %v3658
        %v3660 = vpop.f32.mrf.mxu0
        %3661 = vdwg.mxu0
        %3662 = vmatpush.bf16.msra.mxu0 0
        %3663 = vmatpush.bf16.msra.mxu0 0
        %3664 = vmatpush.bf16.msra.mxu0 0
        %3665 = vmatpush.bf16.msra.mxu0 0
        %3666 = vmatpush.bf16.msra.mxu0 0
        %3667 = vmatpush.bf16.msra.mxu0 0
        %3668 = vmatpush.bf16.msra.mxu0 %v2401
        %3669 = vmatpush.bf16.msra.mxu0 %v2193
        %3670 = vmatmul.bf16.gmra.mxu0 %v3452
        %v3671 = vpop.f32.mrf.mxu0
        %v3672 = vadd.f32 %v3051, %v3671
        %v3673 = vpop.f32.mrf.mxu0
        %3674 = vdwg.mxu0
        %3675 = vmatpush.bf16.msra.mxu0 0
        %3676 = vmatpush.bf16.msra.mxu0 0
        %3677 = vmatpush.bf16.msra.mxu0 0
        %3678 = vmatpush.bf16.msra.mxu0 0
        %3679 = vmatpush.bf16.msra.mxu0 0
        %3680 = vmatpush.bf16.msra.mxu0 0
        %3681 = vmatpush.bf16.msra.mxu0 %v2402
        %3682 = vmatpush.bf16.msra.mxu0 %v2194
        %3683 = vmatmul.bf16.gmra.mxu0 %v3452
        %v3684 = vpop.f32.mrf.mxu0
        %v3685 = vadd.f32 %v3052, %v3684
        %v3686 = vpop.f32.mrf.mxu0
        %3687 = vdwg.mxu0
        %3688 = vmatpush.bf16.msra.mxu0 0
        %3689 = vmatpush.bf16.msra.mxu0 0
        %3690 = vmatpush.bf16.msra.mxu0 0
        %3691 = vmatpush.bf16.msra.mxu0 0
        %3692 = vmatpush.bf16.msra.mxu0 0
        %3693 = vmatpush.bf16.msra.mxu0 0
        %3694 = vmatpush.bf16.msra.mxu0 %v2403
        %3695 = vmatpush.bf16.msra.mxu0 %v2195
        %3696 = vmatmul.bf16.gmra.mxu0 %v3452
        %v3697 = vpop.f32.mrf.mxu0
        %v3698 = vadd.f32 %v3053, %v3697
        %v3699 = vpop.f32.mrf.mxu0
        %3700 = vdwg.mxu0
        %3701 = vmatpush.bf16.msra.mxu0 0
        %3702 = vmatpush.bf16.msra.mxu0 0
        %3703 = vmatpush.bf16.msra.mxu0 0
        %3704 = vmatpush.bf16.msra.mxu0 0
        %3705 = vmatpush.bf16.msra.mxu0 0
        %3706 = vmatpush.bf16.msra.mxu0 0
        %3707 = vmatpush.bf16.msra.mxu0 %v2404
        %3708 = vmatpush.bf16.msra.mxu0 %v2196
        %3709 = vmatmul.bf16.gmra.mxu0 %v3452
        %v3710 = vpop.f32.mrf.mxu0
        %v3711 = vadd.f32 %v3054, %v3710
        %v3712 = vpop.f32.mrf.mxu0
        %3713 = vdwg.mxu0
        %3714 = vmatpush.bf16.msra.mxu0 0
        %3715 = vmatpush.bf16.msra.mxu0 0
        %3716 = vmatpush.bf16.msra.mxu0 0
        %3717 = vmatpush.bf16.msra.mxu0 0
        %3718 = vmatpush.bf16.msra.mxu0 0
        %3719 = vmatpush.bf16.msra.mxu0 0
        %3720 = vmatpush.bf16.msra.mxu0 %v2405
        %3721 = vmatpush.bf16.msra.mxu0 %v2197
        %3722 = vmatmul.bf16.gmra.mxu0 %v3452
        %v3723 = vpop.f32.mrf.mxu0
        %v3724 = vadd.f32 %v3055, %v3723
        %v3725 = vpop.f32.mrf.mxu0
        %3726 = vdwg.mxu0
        %3727 = vmatpush.bf16.msra.mxu0 0
        %3728 = vmatpush.bf16.msra.mxu0 0
        %3729 = vmatpush.bf16.msra.mxu0 0
        %3730 = vmatpush.bf16.msra.mxu0 0
        %3731 = vmatpush.bf16.msra.mxu0 0
        %3732 = vmatpush.bf16.msra.mxu0 0
        %3733 = vmatpush.bf16.msra.mxu0 %v2406
        %3734 = vmatpush.bf16.msra.mxu0 %v2198
        %3735 = vmatmul.bf16.gmra.mxu0 %v3452
        %v3736 = vpop.f32.mrf.mxu0
        %v3737 = vadd.f32 %v3056, %v3736
        %v3738 = vpop.f32.mrf.mxu0
        %3739 = vdwg.mxu0
        %3740 = vmatpush.bf16.msra.mxu0 0
        %3741 = vmatpush.bf16.msra.mxu0 0
        %3742 = vmatpush.bf16.msra.mxu0 0
        %3743 = vmatpush.bf16.msra.mxu0 0
        %3744 = vmatpush.bf16.msra.mxu0 0
        %3745 = vmatpush.bf16.msra.mxu0 0
        %3746 = vmatpush.bf16.msra.mxu0 %v2407
        %3747 = vmatpush.bf16.msra.mxu0 %v2199
        %3748 = vmatmul.bf16.gmra.mxu0 %v3452
        %v3749 = vpop.f32.mrf.mxu0
        %v3750 = vadd.f32 %v3057, %v3749
        %v3751 = vpop.f32.mrf.mxu0
        %3752 = vdwg.mxu0
        %3753 = vmatpush.bf16.msra.mxu0 0
        %3754 = vmatpush.bf16.msra.mxu0 0
        %3755 = vmatpush.bf16.msra.mxu0 0
        %3756 = vmatpush.bf16.msra.mxu0 0
        %3757 = vmatpush.bf16.msra.mxu0 0
        %3758 = vmatpush.bf16.msra.mxu0 0
        %3759 = vmatpush.bf16.msra.mxu0 %v2408
        %3760 = vmatpush.bf16.msra.mxu0 %v2200
        %3761 = vmatmul.bf16.gmra.mxu0 %v3452
        %v3762 = vpop.f32.mrf.mxu0
        %v3763 = vadd.f32 %v3058, %v3762
        %v3764 = vpop.f32.mrf.mxu0
        %3765 = vdwg.mxu0
        %3766 = vmatpush.bf16.msra.mxu0 0
        %3767 = vmatpush.bf16.msra.mxu0 0
        %3768 = vmatpush.bf16.msra.mxu0 0
        %3769 = vmatpush.bf16.msra.mxu0 0
        %3770 = vmatpush.bf16.msra.mxu0 0
        %3771 = vmatpush.bf16.msra.mxu0 0
        %3772 = vmatpush.bf16.msra.mxu0 %v2409
        %3773 = vmatpush.bf16.msra.mxu0 %v2201
        %3774 = vmatmul.bf16.gmra.mxu0 %v3452
        %v3775 = vpop.f32.mrf.mxu0
        %v3776 = vadd.f32 %v3059, %v3775
        %v3777 = vpop.f32.mrf.mxu0
        %3778 = vdwg.mxu0
        %3779 = vmatpush.bf16.msra.mxu0 0
        %3780 = vmatpush.bf16.msra.mxu0 0
        %3781 = vmatpush.bf16.msra.mxu0 0
        %3782 = vmatpush.bf16.msra.mxu0 0
        %3783 = vmatpush.bf16.msra.mxu0 0
        %3784 = vmatpush.bf16.msra.mxu0 0
        %3785 = vmatpush.bf16.msra.mxu0 %v2410
        %3786 = vmatpush.bf16.msra.mxu0 %v2202
        %3787 = vmatmul.bf16.gmra.mxu0 %v3452
        %v3788 = vpop.f32.mrf.mxu0
        %v3789 = vadd.f32 %v3060, %v3788
        %v3790 = vpop.f32.mrf.mxu0
        %3791 = vdwg.mxu0
        %3792 = vmatpush.bf16.msra.mxu0 0
        %3793 = vmatpush.bf16.msra.mxu0 0
        %3794 = vmatpush.bf16.msra.mxu0 0
        %3795 = vmatpush.bf16.msra.mxu0 0
        %3796 = vmatpush.bf16.msra.mxu0 0
        %3797 = vmatpush.bf16.msra.mxu0 0
        %3798 = vmatpush.bf16.msra.mxu0 %v2411
        %3799 = vmatpush.bf16.msra.mxu0 %v2203
        %3800 = vmatmul.bf16.gmra.mxu0 %v3452
        %v3801 = vpop.f32.mrf.mxu0
        %v3802 = vadd.f32 %v3061, %v3801
        %v3803 = vpop.f32.mrf.mxu0
        %3804 = vdwg.mxu0
        %3805 = vmatpush.bf16.msra.mxu0 0
        %3806 = vmatpush.bf16.msra.mxu0 0
        %3807 = vmatpush.bf16.msra.mxu0 0
        %3808 = vmatpush.bf16.msra.mxu0 0
        %3809 = vmatpush.bf16.msra.mxu0 0
        %3810 = vmatpush.bf16.msra.mxu0 0
        %3811 = vmatpush.bf16.msra.mxu0 %v2412
        %3812 = vmatpush.bf16.msra.mxu0 %v2204
        %3813 = vmatmul.bf16.gmra.mxu0 %v3452
        %v3814 = vpop.f32.mrf.mxu0
        %v3815 = vadd.f32 %v3062, %v3814
        %v3816 = vpop.f32.mrf.mxu0
        %3817 = vdwg.mxu0
        %3818 = vmatpush.bf16.msra.mxu0 0
        %3819 = vmatpush.bf16.msra.mxu0 0
        %3820 = vmatpush.bf16.msra.mxu0 0
        %3821 = vmatpush.bf16.msra.mxu0 0
        %3822 = vmatpush.bf16.msra.mxu0 0
        %3823 = vmatpush.bf16.msra.mxu0 0
        %3824 = vmatpush.bf16.msra.mxu0 %v2413
        %3825 = vmatpush.bf16.msra.mxu0 %v2205
        %3826 = vmatmul.bf16.gmra.mxu0 %v3452
        %v3827 = vpop.f32.mrf.mxu0
        %v3828 = vadd.f32 %v3063, %v3827
        %v3829 = vpop.f32.mrf.mxu0
        %3830 = vdwg.mxu0
        %3831 = vmatpush.bf16.msra.mxu0 0
        %3832 = vmatpush.bf16.msra.mxu0 0
        %3833 = vmatpush.bf16.msra.mxu0 0
        %3834 = vmatpush.bf16.msra.mxu0 0
        %3835 = vmatpush.bf16.msra.mxu0 0
        %3836 = vmatpush.bf16.msra.mxu0 0
        %3837 = vmatpush.bf16.msra.mxu0 %v2414
        %3838 = vmatpush.bf16.msra.mxu0 %v2206
        %3839 = vmatmul.bf16.gmra.mxu0 %v3452
        %v3840 = vpop.f32.mrf.mxu0
        %v3841 = vadd.f32 %v3064, %v3840
        %v3842 = vpop.f32.mrf.mxu0
        %3843 = vdwg.mxu0
        %3844 = vmatpush.bf16.msra.mxu0 0
        %3845 = vmatpush.bf16.msra.mxu0 0
        %3846 = vmatpush.bf16.msra.mxu0 0
        %3847 = vmatpush.bf16.msra.mxu0 0
        %3848 = vmatpush.bf16.msra.mxu0 0
        %3849 = vmatpush.bf16.msra.mxu0 0
        %3850 = vmatpush.bf16.msra.mxu0 %v2415
        %3851 = vmatpush.bf16.msra.mxu0 %v2207
        %3852 = vmatmul.bf16.gmra.mxu0 %v3452
        %v3853 = vpop.f32.mrf.mxu0
        %v3854 = vadd.f32 %v3065, %v3853
        %v3855 = vpop.f32.mrf.mxu0
        %3856 = vdwg.mxu0
        %3857 = vmatpush.bf16.msra.mxu0 0
        %3858 = vmatpush.bf16.msra.mxu0 0
        %3859 = vmatpush.bf16.msra.mxu0 0
        %3860 = vmatpush.bf16.msra.mxu0 0
        %3861 = vmatpush.bf16.msra.mxu0 0
        %3862 = vmatpush.bf16.msra.mxu0 0
        %3863 = vmatpush.bf16.msra.mxu0 %v2416
        %3864 = vmatpush.bf16.msra.mxu0 %v2208
        %3865 = vmatmul.bf16.gmra.mxu0 %v3452
        %v3866 = vpop.f32.mrf.mxu0
        %v3867 = vadd.f32 %v3066, %v3866
        %v3868 = vpop.f32.mrf.mxu0
        %3869 = vdwg.mxu0
        %3870 = vmatpush.bf16.msra.mxu0 0
        %3871 = vmatpush.bf16.msra.mxu0 0
        %3872 = vmatpush.bf16.msra.mxu0 0
        %3873 = vmatpush.bf16.msra.mxu0 0
        %3874 = vmatpush.bf16.msra.mxu0 0
        %3875 = vmatpush.bf16.msra.mxu0 0
        %3876 = vmatpush.bf16.msra.mxu0 %v2417
        %3877 = vmatpush.bf16.msra.mxu0 %v2209
        %3878 = vmatmul.bf16.gmra.mxu0 %v3452
        %v3879 = vpop.f32.mrf.mxu0
        %v3880 = vadd.f32 %v3067, %v3879
        %v3881 = vpop.f32.mrf.mxu0
        %3882 = vdwg.mxu0
        %3883 = vmatpush.bf16.msra.mxu0 0
        %3884 = vmatpush.bf16.msra.mxu0 0
        %3885 = vmatpush.bf16.msra.mxu0 0
        %3886 = vmatpush.bf16.msra.mxu0 0
        %3887 = vmatpush.bf16.msra.mxu0 0
        %3888 = vmatpush.bf16.msra.mxu0 0
        %3889 = vmatpush.bf16.msra.mxu0 %v2418
        %3890 = vmatpush.bf16.msra.mxu0 %v2210
        %3891 = vmatmul.bf16.gmra.mxu0 %v3452
        %v3892 = vpop.f32.mrf.mxu0
        %v3893 = vadd.f32 %v3068, %v3892
        %v3894 = vpop.f32.mrf.mxu0
        %3895 = vdwg.mxu0
        %3896 = vmatpush.bf16.msra.mxu0 0
        %3897 = vmatpush.bf16.msra.mxu0 0
        %3898 = vmatpush.bf16.msra.mxu0 0
        %3899 = vmatpush.bf16.msra.mxu0 0
        %3900 = vmatpush.bf16.msra.mxu0 0
        %3901 = vmatpush.bf16.msra.mxu0 0
        %3902 = vmatpush.bf16.msra.mxu0 %v2419
        %3903 = vmatpush.bf16.msra.mxu0 %v2211
        %3904 = vmatmul.bf16.gmra.mxu0 %v3452
        %v3905 = vpop.f32.mrf.mxu0
        %v3906 = vadd.f32 %v3069, %v3905
        %v3907 = vpop.f32.mrf.mxu0
        %3908 = vdwg.mxu0
        %3909 = vmatpush.bf16.msra.mxu0 0
        %3910 = vmatpush.bf16.msra.mxu0 0
        %3911 = vmatpush.bf16.msra.mxu0 0
        %3912 = vmatpush.bf16.msra.mxu0 0
        %3913 = vmatpush.bf16.msra.mxu0 0
        %3914 = vmatpush.bf16.msra.mxu0 0
        %3915 = vmatpush.bf16.msra.mxu0 %v2420
        %3916 = vmatpush.bf16.msra.mxu0 %v2212
        %3917 = vmatmul.bf16.gmra.mxu0 %v3452
        %v3918 = vpop.f32.mrf.mxu0
        %v3919 = vadd.f32 %v3070, %v3918
        %v3920 = vpop.f32.mrf.mxu0
        %3921 = vdwg.mxu0
        %3922 = vmatpush.bf16.msra.mxu0 0
        %3923 = vmatpush.bf16.msra.mxu0 0
        %3924 = vmatpush.bf16.msra.mxu0 0
        %3925 = vmatpush.bf16.msra.mxu0 0
        %3926 = vmatpush.bf16.msra.mxu0 0
        %3927 = vmatpush.bf16.msra.mxu0 0
        %3928 = vmatpush.bf16.msra.mxu0 %v2421
        %3929 = vmatpush.bf16.msra.mxu0 %v2213
        %3930 = vmatmul.bf16.gmra.mxu0 %v3452
        %v3931 = vpop.f32.mrf.mxu0
        %v3932 = vadd.f32 %v3071, %v3931
        %v3933 = vpop.f32.mrf.mxu0
        %3934 = vdwg.mxu0
        %3935 = vmatpush.bf16.msra.mxu0 0
        %3936 = vmatpush.bf16.msra.mxu0 0
        %3937 = vmatpush.bf16.msra.mxu0 0
        %3938 = vmatpush.bf16.msra.mxu0 0
        %3939 = vmatpush.bf16.msra.mxu0 0
        %3940 = vmatpush.bf16.msra.mxu0 0
        %3941 = vmatpush.bf16.msra.mxu0 %v2422
        %3942 = vmatpush.bf16.msra.mxu0 %v2214
        %3943 = vmatmul.bf16.gmra.mxu0 %v3452
        %v3944 = vpop.f32.mrf.mxu0
        %v3945 = vadd.f32 %v3072, %v3944
        %v3946 = vpop.f32.mrf.mxu0
        %3947 = vdwg.mxu0
        %3948 = vmatpush.bf16.msra.mxu0 0
        %3949 = vmatpush.bf16.msra.mxu0 0
        %3950 = vmatpush.bf16.msra.mxu0 0
        %3951 = vmatpush.bf16.msra.mxu0 0
        %3952 = vmatpush.bf16.msra.mxu0 0
        %3953 = vmatpush.bf16.msra.mxu0 0
        %3954 = vmatpush.bf16.msra.mxu0 %v2423
        %3955 = vmatpush.bf16.msra.mxu0 %v2215
        %3956 = vmatmul.bf16.gmra.mxu0 %v3452
        %v3957 = vpop.f32.mrf.mxu0
        %v3958 = vadd.f32 %v3073, %v3957
        %v3959 = vpop.f32.mrf.mxu0
        %3960 = vdwg.mxu0
        %3961 = vmatpush.bf16.msra.mxu0 0
        %3962 = vmatpush.bf16.msra.mxu0 0
        %3963 = vmatpush.bf16.msra.mxu0 0
        %3964 = vmatpush.bf16.msra.mxu0 0
        %3965 = vmatpush.bf16.msra.mxu0 0
        %3966 = vmatpush.bf16.msra.mxu0 0
        %3967 = vmatpush.bf16.msra.mxu0 %v2424
        %3968 = vmatpush.bf16.msra.mxu0 %v2216
        %3969 = vmatmul.bf16.gmra.mxu0 %v3452
        %v3970 = vpop.f32.mrf.mxu0
        %v3971 = vadd.f32 %v3074, %v3970
        %v3972 = vpop.f32.mrf.mxu0
        %3973 = vdwg.mxu0
        %3974 = vmatpush.bf16.msra.mxu0 0
        %3975 = vmatpush.bf16.msra.mxu0 0
        %3976 = vmatpush.bf16.msra.mxu0 0
        %3977 = vmatpush.bf16.msra.mxu0 0
        %3978 = vmatpush.bf16.msra.mxu0 0
        %3979 = vmatpush.bf16.msra.mxu0 0
        %3980 = vmatpush.bf16.msra.mxu0 %v2425
        %3981 = vmatpush.bf16.msra.mxu0 %v2217
        %3982 = vmatmul.bf16.gmra.mxu0 %v3452
        %v3983 = vpop.f32.mrf.mxu0
        %v3984 = vadd.f32 %v3075, %v3983
        %v3985 = vpop.f32.mrf.mxu0
        %3986 = vdwg.mxu0
        %3987 = vmatpush.bf16.msra.mxu0 0
        %3988 = vmatpush.bf16.msra.mxu0 0
        %3989 = vmatpush.bf16.msra.mxu0 0
        %3990 = vmatpush.bf16.msra.mxu0 0
        %3991 = vmatpush.bf16.msra.mxu0 0
        %3992 = vmatpush.bf16.msra.mxu0 0
        %3993 = vmatpush.bf16.msra.mxu0 %v2426
        %3994 = vmatpush.bf16.msra.mxu0 %v2218
        %3995 = vmatmul.bf16.gmra.mxu0 %v3452
        %v3996 = vpop.f32.mrf.mxu0
        %v3997 = vadd.f32 %v3076, %v3996
        %v3998 = vpop.f32.mrf.mxu0
        %3999 = vdwg.mxu0
        %4000 = vmatpush.bf16.msra.mxu0 0
        %4001 = vmatpush.bf16.msra.mxu0 0
        %4002 = vmatpush.bf16.msra.mxu0 0
        %4003 = vmatpush.bf16.msra.mxu0 0
        %4004 = vmatpush.bf16.msra.mxu0 0
        %4005 = vmatpush.bf16.msra.mxu0 0
        %4006 = vmatpush.bf16.msra.mxu0 %v2427
        %4007 = vmatpush.bf16.msra.mxu0 %v2219
        %4008 = vmatmul.bf16.gmra.mxu0 %v3452
        %v4009 = vpop.f32.mrf.mxu0
        %v4010 = vadd.f32 %v3077, %v4009
        %v4011 = vpop.f32.mrf.mxu0
        %4012 = vdwg.mxu0
        %4013 = vmatpush.bf16.msra.mxu0 0
        %4014 = vmatpush.bf16.msra.mxu0 0
        %4015 = vmatpush.bf16.msra.mxu0 0
        %4016 = vmatpush.bf16.msra.mxu0 0
        %4017 = vmatpush.bf16.msra.mxu0 0
        %4018 = vmatpush.bf16.msra.mxu0 0
        %4019 = vmatpush.bf16.msra.mxu0 %v2428
        %4020 = vmatpush.bf16.msra.mxu0 %v2220
        %4021 = vmatmul.bf16.gmra.mxu0 %v3452
        %v4022 = vpop.f32.mrf.mxu0
        %v4023 = vadd.f32 %v3078, %v4022
        %v4024 = vpop.f32.mrf.mxu0
        %4025 = vdwg.mxu0
        %4026 = vmatpush.bf16.msra.mxu0 0
        %4027 = vmatpush.bf16.msra.mxu0 0
        %4028 = vmatpush.bf16.msra.mxu0 0
        %4029 = vmatpush.bf16.msra.mxu0 0
        %4030 = vmatpush.bf16.msra.mxu0 0
        %4031 = vmatpush.bf16.msra.mxu0 0
        %4032 = vmatpush.bf16.msra.mxu0 %v2429
        %4033 = vmatpush.bf16.msra.mxu0 %v2221
        %4034 = vmatmul.bf16.gmra.mxu0 %v3452
        %v4035 = vpop.f32.mrf.mxu0
        %v4036 = vadd.f32 %v3079, %v4035
        %v4037 = vpop.f32.mrf.mxu0
        %4038 = vdwg.mxu0
        %4039 = vmatpush.bf16.msra.mxu0 0
        %4040 = vmatpush.bf16.msra.mxu0 0
        %4041 = vmatpush.bf16.msra.mxu0 0
        %4042 = vmatpush.bf16.msra.mxu0 0
        %4043 = vmatpush.bf16.msra.mxu0 0
        %4044 = vmatpush.bf16.msra.mxu0 0
        %4045 = vmatpush.bf16.msra.mxu0 %v2430
        %4046 = vmatpush.bf16.msra.mxu0 %v2222
        %4047 = vmatmul.bf16.gmra.mxu0 %v3452
        %v4048 = vpop.f32.mrf.mxu0
        %v4049 = vadd.f32 %v3080, %v4048
        %v4050 = vpop.f32.mrf.mxu0
        %4051 = vdwg.mxu0
        %4052 = vmatpush.bf16.msra.mxu0 0
        %4053 = vmatpush.bf16.msra.mxu0 0
        %4054 = vmatpush.bf16.msra.mxu0 0
        %4055 = vmatpush.bf16.msra.mxu0 0
        %4056 = vmatpush.bf16.msra.mxu0 0
        %4057 = vmatpush.bf16.msra.mxu0 0
        %4058 = vmatpush.bf16.msra.mxu0 %v2431
        %4059 = vmatpush.bf16.msra.mxu0 %v2223
        %4060 = vmatmul.bf16.gmra.mxu0 %v3452
        %v4061 = vpop.f32.mrf.mxu0
        %v4062 = vadd.f32 %v3081, %v4061
        %v4063 = vpop.f32.mrf.mxu0
        %4064 = vdwg.mxu0
        %4065 = vmatpush.bf16.msra.mxu0 0
        %4066 = vmatpush.bf16.msra.mxu0 0
        %4067 = vmatpush.bf16.msra.mxu0 0
        %4068 = vmatpush.bf16.msra.mxu0 0
        %4069 = vmatpush.bf16.msra.mxu0 0
        %4070 = vmatpush.bf16.msra.mxu0 0
        %4071 = vmatpush.bf16.msra.mxu0 %v2432
        %4072 = vmatpush.bf16.msra.mxu0 %v2224
        %4073 = vmatmul.bf16.gmra.mxu0 %v3452
        %v4074 = vpop.f32.mrf.mxu0
        %v4075 = vadd.f32 %v3082, %v4074
        %v4076 = vpop.f32.mrf.mxu0
        %4077 = vdwg.mxu0
        %4078 = vmatpush.bf16.msra.mxu0 0
        %4079 = vmatpush.bf16.msra.mxu0 0
        %4080 = vmatpush.bf16.msra.mxu0 0
        %4081 = vmatpush.bf16.msra.mxu0 0
        %4082 = vmatpush.bf16.msra.mxu0 0
        %4083 = vmatpush.bf16.msra.mxu0 0
        %4084 = vmatpush.bf16.msra.mxu0 %v2433
        %4085 = vmatpush.bf16.msra.mxu0 %v2225
        %4086 = vmatmul.bf16.gmra.mxu0 %v3452
        %v4087 = vpop.f32.mrf.mxu0
        %v4088 = vadd.f32 %v3083, %v4087
        %v4089 = vpop.f32.mrf.mxu0
        %4090 = vdwg.mxu0
        %4091 = vmatpush.bf16.msra.mxu0 0
        %4092 = vmatpush.bf16.msra.mxu0 0
        %4093 = vmatpush.bf16.msra.mxu0 0
        %4094 = vmatpush.bf16.msra.mxu0 0
        %4095 = vmatpush.bf16.msra.mxu0 0
        %4096 = vmatpush.bf16.msra.mxu0 0
        %4097 = vmatpush.bf16.msra.mxu0 %v2434
        %4098 = vmatpush.bf16.msra.mxu0 %v2226
        %4099 = vmatmul.bf16.gmra.mxu0 %v3452
        %v4100 = vpop.f32.mrf.mxu0
        %v4101 = vadd.f32 %v3084, %v4100
        %v4102 = vpop.f32.mrf.mxu0
        %4103 = vdwg.mxu0
        %4104 = vmatpush.bf16.msra.mxu0 0
        %4105 = vmatpush.bf16.msra.mxu0 0
        %4106 = vmatpush.bf16.msra.mxu0 0
        %4107 = vmatpush.bf16.msra.mxu0 0
        %4108 = vmatpush.bf16.msra.mxu0 0
        %4109 = vmatpush.bf16.msra.mxu0 0
        %4110 = vmatpush.bf16.msra.mxu0 %v2435
        %4111 = vmatpush.bf16.msra.mxu0 %v2227
        %4112 = vmatmul.bf16.gmra.mxu0 %v3452
        %v4113 = vpop.f32.mrf.mxu0
        %v4114 = vadd.f32 %v3085, %v4113
        %v4115 = vpop.f32.mrf.mxu0
        %4116 = vdwg.mxu0
        %4117 = vmatpush.bf16.msra.mxu0 0
        %4118 = vmatpush.bf16.msra.mxu0 0
        %4119 = vmatpush.bf16.msra.mxu0 0
        %4120 = vmatpush.bf16.msra.mxu0 0
        %4121 = vmatpush.bf16.msra.mxu0 0
        %4122 = vmatpush.bf16.msra.mxu0 0
        %4123 = vmatpush.bf16.msra.mxu0 %v2436
        %4124 = vmatpush.bf16.msra.mxu0 %v2228
        %4125 = vmatmul.bf16.gmra.mxu0 %v3452
        %v4126 = vpop.f32.mrf.mxu0
        %v4127 = vadd.f32 %v3086, %v4126
        %v4128 = vpop.f32.mrf.mxu0
        %4129 = vdwg.mxu0
        %4130 = vmatpush.bf16.msra.mxu0 0
        %4131 = vmatpush.bf16.msra.mxu0 0
        %4132 = vmatpush.bf16.msra.mxu0 0
        %4133 = vmatpush.bf16.msra.mxu0 0
        %4134 = vmatpush.bf16.msra.mxu0 0
        %4135 = vmatpush.bf16.msra.mxu0 0
        %4136 = vmatpush.bf16.msra.mxu0 %v2437
        %4137 = vmatpush.bf16.msra.mxu0 %v2229
        %4138 = vmatmul.bf16.gmra.mxu0 %v3452
        %v4139 = vpop.f32.mrf.mxu0
        %v4140 = vadd.f32 %v3087, %v4139
        %v4141 = vpop.f32.mrf.mxu0
        %4142 = vdwg.mxu0
        %4143 = vmatpush.bf16.msra.mxu0 0
        %4144 = vmatpush.bf16.msra.mxu0 0
        %4145 = vmatpush.bf16.msra.mxu0 0
        %4146 = vmatpush.bf16.msra.mxu0 0
        %4147 = vmatpush.bf16.msra.mxu0 0
        %4148 = vmatpush.bf16.msra.mxu0 0
        %4149 = vmatpush.bf16.msra.mxu0 %v2438
        %4150 = vmatpush.bf16.msra.mxu0 %v2230
        %4151 = vmatmul.bf16.gmra.mxu0 %v3452
        %v4152 = vpop.f32.mrf.mxu0
        %v4153 = vadd.f32 %v3088, %v4152
        %v4154 = vpop.f32.mrf.mxu0
        %4155 = vdwg.mxu0
        %4156 = vmatpush.bf16.msra.mxu0 0
        %4157 = vmatpush.bf16.msra.mxu0 0
        %4158 = vmatpush.bf16.msra.mxu0 0
        %4159 = vmatpush.bf16.msra.mxu0 0
        %4160 = vmatpush.bf16.msra.mxu0 0
        %4161 = vmatpush.bf16.msra.mxu0 0
        %4162 = vmatpush.bf16.msra.mxu0 %v2439
        %4163 = vmatpush.bf16.msra.mxu0 %v2231
        %4164 = vmatmul.bf16.gmra.mxu0 %v3452
        %v4165 = vpop.f32.mrf.mxu0
        %v4166 = vadd.f32 %v3089, %v4165
        %v4167 = vpop.f32.mrf.mxu0
        %4168 = vdwg.mxu0
        %4169 = vmatpush.bf16.msra.mxu0 0
        %4170 = vmatpush.bf16.msra.mxu0 0
        %4171 = vmatpush.bf16.msra.mxu0 0
        %4172 = vmatpush.bf16.msra.mxu0 0
        %4173 = vmatpush.bf16.msra.mxu0 0
        %4174 = vmatpush.bf16.msra.mxu0 0
        %4175 = vmatpush.bf16.msra.mxu0 %v2440
        %4176 = vmatpush.bf16.msra.mxu0 %v2232
        %4177 = vmatmul.bf16.gmra.mxu0 %v3452
        %v4178 = vpop.f32.mrf.mxu0
        %v4179 = vadd.f32 %v3090, %v4178
        %v4180 = vpop.f32.mrf.mxu0
        %4181 = vdwg.mxu0
        %4182 = vmatpush.bf16.msra.mxu0 0
        %4183 = vmatpush.bf16.msra.mxu0 0
        %4184 = vmatpush.bf16.msra.mxu0 0
        %4185 = vmatpush.bf16.msra.mxu0 0
        %4186 = vmatpush.bf16.msra.mxu0 0
        %4187 = vmatpush.bf16.msra.mxu0 0
        %4188 = vmatpush.bf16.msra.mxu0 %v2441
        %4189 = vmatpush.bf16.msra.mxu0 %v2233
        %4190 = vmatmul.bf16.gmra.mxu0 %v3452
        %v4191 = vpop.f32.mrf.mxu0
        %v4192 = vadd.f32 %v3091, %v4191
        %v4193 = vpop.f32.mrf.mxu0
        %4194 = vdwg.mxu0
        %4195 = vmatpush.bf16.msra.mxu0 0
        %4196 = vmatpush.bf16.msra.mxu0 0
        %4197 = vmatpush.bf16.msra.mxu0 0
        %4198 = vmatpush.bf16.msra.mxu0 0
        %4199 = vmatpush.bf16.msra.mxu0 0
        %4200 = vmatpush.bf16.msra.mxu0 0
        %4201 = vmatpush.bf16.msra.mxu0 %v2442
        %4202 = vmatpush.bf16.msra.mxu0 %v2234
        %4203 = vmatmul.bf16.gmra.mxu0 %v3452
        %v4204 = vpop.f32.mrf.mxu0
        %v4205 = vadd.f32 %v3092, %v4204
        %v4206 = vpop.f32.mrf.mxu0
        %4207 = vdwg.mxu0
        %4208 = vmatpush.bf16.msra.mxu0 0
        %4209 = vmatpush.bf16.msra.mxu0 0
        %4210 = vmatpush.bf16.msra.mxu0 0
        %4211 = vmatpush.bf16.msra.mxu0 0
        %4212 = vmatpush.bf16.msra.mxu0 0
        %4213 = vmatpush.bf16.msra.mxu0 0
        %4214 = vmatpush.bf16.msra.mxu0 %v2443
        %4215 = vmatpush.bf16.msra.mxu0 %v2235
        %4216 = vmatmul.bf16.gmra.mxu0 %v3452
        %v4217 = vpop.f32.mrf.mxu0
        %v4218 = vadd.f32 %v3093, %v4217
        %v4219 = vpop.f32.mrf.mxu0
        %4220 = vdwg.mxu0
        %4221 = vmatpush.bf16.msra.mxu0 0
        %4222 = vmatpush.bf16.msra.mxu0 0
        %4223 = vmatpush.bf16.msra.mxu0 0
        %4224 = vmatpush.bf16.msra.mxu0 0
        %4225 = vmatpush.bf16.msra.mxu0 0
        %4226 = vmatpush.bf16.msra.mxu0 0
        %4227 = vmatpush.bf16.msra.mxu0 %v2444
        %4228 = vmatpush.bf16.msra.mxu0 %v2236
        %4229 = vmatmul.bf16.gmra.mxu0 %v3452
        %v4230 = vpop.f32.mrf.mxu0
        %v4231 = vadd.f32 %v3094, %v4230
        %v4232 = vpop.f32.mrf.mxu0
        %4233 = vdwg.mxu0
        %4234 = vmatpush.bf16.msra.mxu0 0
        %4235 = vmatpush.bf16.msra.mxu0 0
        %4236 = vmatpush.bf16.msra.mxu0 0
        %4237 = vmatpush.bf16.msra.mxu0 0
        %4238 = vmatpush.bf16.msra.mxu0 0
        %4239 = vmatpush.bf16.msra.mxu0 0
        %4240 = vmatpush.bf16.msra.mxu0 %v2445
        %4241 = vmatpush.bf16.msra.mxu0 %v2237
        %4242 = vmatmul.bf16.gmra.mxu0 %v3452
        %v4243 = vpop.f32.mrf.mxu0
        %v4244 = vadd.f32 %v3095, %v4243
        %v4245 = vpop.f32.mrf.mxu0
        %4246 = vdwg.mxu0
        %4247 = vmatpush.bf16.msra.mxu0 0
        %4248 = vmatpush.bf16.msra.mxu0 0
        %4249 = vmatpush.bf16.msra.mxu0 0
        %4250 = vmatpush.bf16.msra.mxu0 0
        %4251 = vmatpush.bf16.msra.mxu0 0
        %4252 = vmatpush.bf16.msra.mxu0 0
        %4253 = vmatpush.bf16.msra.mxu0 %v2446
        %4254 = vmatpush.bf16.msra.mxu0 %v2238
        %4255 = vmatmul.bf16.gmra.mxu0 %v3452
        %v4256 = vpop.f32.mrf.mxu0
        %v4257 = vadd.f32 %v3096, %v4256
        %v4258 = vpop.f32.mrf.mxu0
        %4259 = vdwg.mxu0
        %4260 = vmatpush.bf16.msra.mxu0 0
        %4261 = vmatpush.bf16.msra.mxu0 0
        %4262 = vmatpush.bf16.msra.mxu0 0
        %4263 = vmatpush.bf16.msra.mxu0 0
        %4264 = vmatpush.bf16.msra.mxu0 0
        %4265 = vmatpush.bf16.msra.mxu0 0
        %4266 = vmatpush.bf16.msra.mxu0 %v2447
        %4267 = vmatpush.bf16.msra.mxu0 %v2239
        %4268 = vmatmul.bf16.gmra.mxu0 %v3452
        %v4269 = vpop.f32.mrf.mxu0
        %v4270 = vadd.f32 %v3097, %v4269
        %v4271 = vpop.f32.mrf.mxu0
        %4272 = vdwg.mxu0
        %4273 = vmatpush.bf16.msra.mxu0 0
        %4274 = vmatpush.bf16.msra.mxu0 0
        %4275 = vmatpush.bf16.msra.mxu0 0
        %4276 = vmatpush.bf16.msra.mxu0 0
        %4277 = vmatpush.bf16.msra.mxu0 0
        %4278 = vmatpush.bf16.msra.mxu0 0
        %4279 = vmatpush.bf16.msra.mxu0 %v2448
        %4280 = vmatpush.bf16.msra.mxu0 %v2240
        %4281 = vmatmul.bf16.gmra.mxu0 %v3452
        %v4282 = vpop.f32.mrf.mxu0
        %v4283 = vadd.f32 %v3098, %v4282
        %v4284 = vpop.f32.mrf.mxu0
        %4285 = vdwg.mxu0
        %4286 = vmatpush.bf16.msra.mxu0 0
        %4287 = vmatpush.bf16.msra.mxu0 0
        %4288 = vmatpush.bf16.msra.mxu0 0
        %4289 = vmatpush.bf16.msra.mxu0 0
        %4290 = vmatpush.bf16.msra.mxu0 0
        %4291 = vmatpush.bf16.msra.mxu0 0
        %4292 = vmatpush.bf16.msra.mxu0 %v2449
        %4293 = vmatpush.bf16.msra.mxu0 %v2241
        %4294 = vmatmul.bf16.gmra.mxu0 %v3452
        %v4295 = vpop.f32.mrf.mxu0
        %v4296 = vadd.f32 %v3099, %v4295
        %v4297 = vpop.f32.mrf.mxu0
        %4298 = vdwg.mxu0
        %4299 = vmatpush.bf16.msra.mxu0 0
        %4300 = vmatpush.bf16.msra.mxu0 0
        %4301 = vmatpush.bf16.msra.mxu0 0
        %4302 = vmatpush.bf16.msra.mxu0 0
        %4303 = vmatpush.bf16.msra.mxu0 0
        %4304 = vmatpush.bf16.msra.mxu0 0
        %4305 = vmatpush.bf16.msra.mxu0 %v2450
        %4306 = vmatpush.bf16.msra.mxu0 %v2242
        %4307 = vmatmul.bf16.gmra.mxu0 %v3452
        %v4308 = vpop.f32.mrf.mxu0
        %v4309 = vadd.f32 %v3100, %v4308
        %v4310 = vpop.f32.mrf.mxu0
        %4311 = vdwg.mxu0
        %4312 = vmatpush.bf16.msra.mxu0 0
        %4313 = vmatpush.bf16.msra.mxu0 0
        %4314 = vmatpush.bf16.msra.mxu0 0
        %4315 = vmatpush.bf16.msra.mxu0 0
        %4316 = vmatpush.bf16.msra.mxu0 0
        %4317 = vmatpush.bf16.msra.mxu0 0
        %4318 = vmatpush.bf16.msra.mxu0 %v2451
        %4319 = vmatpush.bf16.msra.mxu0 %v2243
        %4320 = vmatmul.bf16.gmra.mxu0 %v3452
        %v4321 = vpop.f32.mrf.mxu0
        %v4322 = vadd.f32 %v3101, %v4321
        %v4323 = vpop.f32.mrf.mxu0
        %4324 = vdwg.mxu0
        %4325 = vmatpush.bf16.msra.mxu0 0
        %4326 = vmatpush.bf16.msra.mxu0 0
        %4327 = vmatpush.bf16.msra.mxu0 0
        %4328 = vmatpush.bf16.msra.mxu0 0
        %4329 = vmatpush.bf16.msra.mxu0 0
        %4330 = vmatpush.bf16.msra.mxu0 0
        %4331 = vmatpush.bf16.msra.mxu0 %v2452
        %4332 = vmatpush.bf16.msra.mxu0 %v2244
        %4333 = vmatmul.bf16.gmra.mxu0 %v3452
        %v4334 = vpop.f32.mrf.mxu0
        %v4335 = vadd.f32 %v3102, %v4334
        %v4336 = vpop.f32.mrf.mxu0
        %4337 = vdwg.mxu0
        %4338 = vmatpush.bf16.msra.mxu0 0
        %4339 = vmatpush.bf16.msra.mxu0 0
        %4340 = vmatpush.bf16.msra.mxu0 0
        %4341 = vmatpush.bf16.msra.mxu0 0
        %4342 = vmatpush.bf16.msra.mxu0 0
        %4343 = vmatpush.bf16.msra.mxu0 0
        %4344 = vmatpush.bf16.msra.mxu0 %v2453
        %4345 = vmatpush.bf16.msra.mxu0 %v2245
        %4346 = vmatmul.bf16.gmra.mxu0 %v3452
        %v4347 = vpop.f32.mrf.mxu0
        %v4348 = vadd.f32 %v3103, %v4347
        %v4349 = vpop.f32.mrf.mxu0
        %4350 = vdwg.mxu0
        %4351 = vmatpush.bf16.msra.mxu0 0
        %4352 = vmatpush.bf16.msra.mxu0 0
        %4353 = vmatpush.bf16.msra.mxu0 0
        %4354 = vmatpush.bf16.msra.mxu0 0
        %4355 = vmatpush.bf16.msra.mxu0 0
        %4356 = vmatpush.bf16.msra.mxu0 0
        %4357 = vmatpush.bf16.msra.mxu0 %v2454
        %4358 = vmatpush.bf16.msra.mxu0 %v2246
        %4359 = vmatmul.bf16.gmra.mxu0 %v3452
        %v4360 = vpop.f32.mrf.mxu0
        %v4361 = vadd.f32 %v3104, %v4360
        %v4362 = vpop.f32.mrf.mxu0
        %4363 = vdwg.mxu0
        %4364 = vmatpush.bf16.msra.mxu0 0
        %4365 = vmatpush.bf16.msra.mxu0 0
        %4366 = vmatpush.bf16.msra.mxu0 0
        %4367 = vmatpush.bf16.msra.mxu0 0
        %4368 = vmatpush.bf16.msra.mxu0 0
        %4369 = vmatpush.bf16.msra.mxu0 0
        %4370 = vmatpush.bf16.msra.mxu0 %v2455
        %4371 = vmatpush.bf16.msra.mxu0 %v2247
        %4372 = vmatmul.bf16.gmra.mxu0 %v3452
        %v4373 = vpop.f32.mrf.mxu0
        %v4374 = vadd.f32 %v3105, %v4373
        %v4375 = vpop.f32.mrf.mxu0
        %4376 = vdwg.mxu0
        %4377 = vmatpush.bf16.msra.mxu0 0
        %4378 = vmatpush.bf16.msra.mxu0 0
        %4379 = vmatpush.bf16.msra.mxu0 0
        %4380 = vmatpush.bf16.msra.mxu0 0
        %4381 = vmatpush.bf16.msra.mxu0 0
        %4382 = vmatpush.bf16.msra.mxu0 0
        %4383 = vmatpush.bf16.msra.mxu0 %v2456
        %4384 = vmatpush.bf16.msra.mxu0 %v2248
        %4385 = vmatmul.bf16.gmra.mxu0 %v3452
        %v4386 = vpop.f32.mrf.mxu0
        %v4387 = vadd.f32 %v3106, %v4386
        %v4388 = vpop.f32.mrf.mxu0
        %4389 = vdwg.mxu0
        %4390 = vmatpush.bf16.msra.mxu0 0
        %4391 = vmatpush.bf16.msra.mxu0 0
        %4392 = vmatpush.bf16.msra.mxu0 0
        %4393 = vmatpush.bf16.msra.mxu0 0
        %4394 = vmatpush.bf16.msra.mxu0 0
        %4395 = vmatpush.bf16.msra.mxu0 0
        %4396 = vmatpush.bf16.msra.mxu0 %v2457
        %4397 = vmatpush.bf16.msra.mxu0 %v2249
        %4398 = vmatmul.bf16.gmra.mxu0 %v3452
        %v4399 = vpop.f32.mrf.mxu0
        %v4400 = vadd.f32 %v3107, %v4399
        %v4401 = vpop.f32.mrf.mxu0
        %4402 = vdwg.mxu0
        %4403 = vmatpush.bf16.msra.mxu0 0
        %4404 = vmatpush.bf16.msra.mxu0 0
        %4405 = vmatpush.bf16.msra.mxu0 0
        %4406 = vmatpush.bf16.msra.mxu0 0
        %4407 = vmatpush.bf16.msra.mxu0 0
        %4408 = vmatpush.bf16.msra.mxu0 0
        %4409 = vmatpush.bf16.msra.mxu0 %v2458
        %4410 = vmatpush.bf16.msra.mxu0 %v2250
        %4411 = vmatmul.bf16.gmra.mxu0 %v3452
        %v4412 = vpop.f32.mrf.mxu0
        %v4413 = vadd.f32 %v3108, %v4412
        %v4414 = vpop.f32.mrf.mxu0
        %4415 = vdwg.mxu0
        %4416 = vmatpush.bf16.msra.mxu0 0
        %4417 = vmatpush.bf16.msra.mxu0 0
        %4418 = vmatpush.bf16.msra.mxu0 0
        %4419 = vmatpush.bf16.msra.mxu0 0
        %4420 = vmatpush.bf16.msra.mxu0 0
        %4421 = vmatpush.bf16.msra.mxu0 0
        %4422 = vmatpush.bf16.msra.mxu0 %v2459
        %4423 = vmatpush.bf16.msra.mxu0 %v2251
        %4424 = vmatmul.bf16.gmra.mxu0 %v3452
        %v4425 = vpop.f32.mrf.mxu0
        %v4426 = vadd.f32 %v3109, %v4425
        %v4427 = vpop.f32.mrf.mxu0
        %4428 = vdwg.mxu0
        %4429 = vmatpush.bf16.msra.mxu0 0
        %4430 = vmatpush.bf16.msra.mxu0 0
        %4431 = vmatpush.bf16.msra.mxu0 0
        %4432 = vmatpush.bf16.msra.mxu0 0
        %4433 = vmatpush.bf16.msra.mxu0 0
        %4434 = vmatpush.bf16.msra.mxu0 0
        %4435 = vmatpush.bf16.msra.mxu0 %v2460
        %4436 = vmatpush.bf16.msra.mxu0 %v2252
        %4437 = vmatmul.bf16.gmra.mxu0 %v3452
        %v4438 = vpop.f32.mrf.mxu0
        %v4439 = vadd.f32 %v3110, %v4438
        %v4440 = vpop.f32.mrf.mxu0
        %4441 = vdwg.mxu0
        %4442 = vmatpush.bf16.msra.mxu0 0
        %4443 = vmatpush.bf16.msra.mxu0 0
        %4444 = vmatpush.bf16.msra.mxu0 0
        %4445 = vmatpush.bf16.msra.mxu0 0
        %4446 = vmatpush.bf16.msra.mxu0 0
        %4447 = vmatpush.bf16.msra.mxu0 0
        %4448 = vmatpush.bf16.msra.mxu0 %v2461
        %4449 = vmatpush.bf16.msra.mxu0 %v2253
        %4450 = vmatmul.bf16.gmra.mxu0 %v3452
        %v4451 = vpop.f32.mrf.mxu0
        %v4452 = vadd.f32 %v3111, %v4451
        %v4453 = vpop.f32.mrf.mxu0
        %4454 = vdwg.mxu0
        %4455 = vmatpush.bf16.msra.mxu0 0
        %4456 = vmatpush.bf16.msra.mxu0 0
        %4457 = vmatpush.bf16.msra.mxu0 0
        %4458 = vmatpush.bf16.msra.mxu0 0
        %4459 = vmatpush.bf16.msra.mxu0 0
        %4460 = vmatpush.bf16.msra.mxu0 0
        %4461 = vmatpush.bf16.msra.mxu0 %v2462
        %4462 = vmatpush.bf16.msra.mxu0 %v2254
        %4463 = vmatmul.bf16.gmra.mxu0 %v3452
        %v4464 = vpop.f32.mrf.mxu0
        %v4465 = vadd.f32 %v3112, %v4464
        %v4466 = vpop.f32.mrf.mxu0
        %4467 = vdwg.mxu0
        %4468 = vmatpush.bf16.msra.mxu0 0
        %4469 = vmatpush.bf16.msra.mxu0 0
        %4470 = vmatpush.bf16.msra.mxu0 0
        %4471 = vmatpush.bf16.msra.mxu0 0
        %4472 = vmatpush.bf16.msra.mxu0 0
        %4473 = vmatpush.bf16.msra.mxu0 0
        %4474 = vmatpush.bf16.msra.mxu0 %v2463
        %4475 = vmatpush.bf16.msra.mxu0 %v2255
        %4476 = vmatmul.bf16.gmra.mxu0 %v3452
        %v4477 = vpop.f32.mrf.mxu0
        %v4478 = vadd.f32 %v3113, %v4477
        %v4479 = vpop.f32.mrf.mxu0
        %4480 = vdwg.mxu0
        %4481 = vmatpush.bf16.msra.mxu0 0
        %4482 = vmatpush.bf16.msra.mxu0 0
        %4483 = vmatpush.bf16.msra.mxu0 0
        %4484 = vmatpush.bf16.msra.mxu0 0
        %4485 = vmatpush.bf16.msra.mxu0 0
        %4486 = vmatpush.bf16.msra.mxu0 0
        %4487 = vmatpush.bf16.msra.mxu0 %v2464
        %4488 = vmatpush.bf16.msra.mxu0 %v2256
        %4489 = vmatmul.bf16.gmra.mxu0 %v3452
        %v4490 = vpop.f32.mrf.mxu0
        %v4491 = vadd.f32 %v3114, %v4490
        %v4492 = vpop.f32.mrf.mxu0
        %4493 = vdwg.mxu0
        %4494 = vmatpush.bf16.msra.mxu0 0
        %4495 = vmatpush.bf16.msra.mxu0 0
        %4496 = vmatpush.bf16.msra.mxu0 0
        %4497 = vmatpush.bf16.msra.mxu0 0
        %4498 = vmatpush.bf16.msra.mxu0 0
        %4499 = vmatpush.bf16.msra.mxu0 0
        %4500 = vmatpush.bf16.msra.mxu0 %v2465
        %4501 = vmatpush.bf16.msra.mxu0 %v2257
        %4502 = vmatmul.bf16.gmra.mxu0 %v3452
        %v4503 = vpop.f32.mrf.mxu0
        %v4504 = vadd.f32 %v3115, %v4503
        %v4505 = vpop.f32.mrf.mxu0
        %4506 = vdwg.mxu0
        %4507 = vmatpush.bf16.msra.mxu0 0
        %4508 = vmatpush.bf16.msra.mxu0 0
        %4509 = vmatpush.bf16.msra.mxu0 0
        %4510 = vmatpush.bf16.msra.mxu0 0
        %4511 = vmatpush.bf16.msra.mxu0 0
        %4512 = vmatpush.bf16.msra.mxu0 0
        %4513 = vmatpush.bf16.msra.mxu0 %v2466
        %4514 = vmatpush.bf16.msra.mxu0 %v2258
        %4515 = vmatmul.bf16.gmra.mxu0 %v3452
        %v4516 = vpop.f32.mrf.mxu0
        %v4517 = vadd.f32 %v3116, %v4516
        %v4518 = vpop.f32.mrf.mxu0
        %4519 = vdwg.mxu0
        %4520 = vmatpush.bf16.msra.mxu0 0
        %4521 = vmatpush.bf16.msra.mxu0 0
        %4522 = vmatpush.bf16.msra.mxu0 0
        %4523 = vmatpush.bf16.msra.mxu0 0
        %4524 = vmatpush.bf16.msra.mxu0 0
        %4525 = vmatpush.bf16.msra.mxu0 0
        %4526 = vmatpush.bf16.msra.mxu0 %v2467
        %4527 = vmatpush.bf16.msra.mxu0 %v2259
        %4528 = vmatmul.bf16.gmra.mxu0 %v3452
        %v4529 = vpop.f32.mrf.mxu0
        %v4530 = vadd.f32 %v3117, %v4529
        %v4531 = vpop.f32.mrf.mxu0
        %4532 = vdwg.mxu0
        %4533 = vmatpush.bf16.msra.mxu0 0
        %4534 = vmatpush.bf16.msra.mxu0 0
        %4535 = vmatpush.bf16.msra.mxu0 0
        %4536 = vmatpush.bf16.msra.mxu0 0
        %4537 = vmatpush.bf16.msra.mxu0 0
        %4538 = vmatpush.bf16.msra.mxu0 0
        %4539 = vmatpush.bf16.msra.mxu0 %v2468
        %4540 = vmatpush.bf16.msra.mxu0 %v2260
        %4541 = vmatmul.bf16.gmra.mxu0 %v3452
        %v4542 = vpop.f32.mrf.mxu0
        %v4543 = vadd.f32 %v3118, %v4542
        %v4544 = vpop.f32.mrf.mxu0
        %4545 = vdwg.mxu0
        %4546 = vmatpush.bf16.msra.mxu0 0
        %4547 = vmatpush.bf16.msra.mxu0 0
        %4548 = vmatpush.bf16.msra.mxu0 0
        %4549 = vmatpush.bf16.msra.mxu0 0
        %4550 = vmatpush.bf16.msra.mxu0 0
        %4551 = vmatpush.bf16.msra.mxu0 0
        %4552 = vmatpush.bf16.msra.mxu0 %v2469
        %4553 = vmatpush.bf16.msra.mxu0 %v2261
        %4554 = vmatmul.bf16.gmra.mxu0 %v3452
        %v4555 = vpop.f32.mrf.mxu0
        %v4556 = vadd.f32 %v3119, %v4555
        %v4557 = vpop.f32.mrf.mxu0
        %4558 = vdwg.mxu0
        %4559 = vmatpush.bf16.msra.mxu0 0
        %4560 = vmatpush.bf16.msra.mxu0 0
        %4561 = vmatpush.bf16.msra.mxu0 0
        %4562 = vmatpush.bf16.msra.mxu0 0
        %4563 = vmatpush.bf16.msra.mxu0 0
        %4564 = vmatpush.bf16.msra.mxu0 0
        %4565 = vmatpush.bf16.msra.mxu0 %v2470
        %4566 = vmatpush.bf16.msra.mxu0 %v2262
        %4567 = vmatmul.bf16.gmra.mxu0 %v3452
        %v4568 = vpop.f32.mrf.mxu0
        %v4569 = vadd.f32 %v3120, %v4568
        %v4570 = vpop.f32.mrf.mxu0
        %4571 = vdwg.mxu0
        %4572 = vmatpush.bf16.msra.mxu0 0
        %4573 = vmatpush.bf16.msra.mxu0 0
        %4574 = vmatpush.bf16.msra.mxu0 0
        %4575 = vmatpush.bf16.msra.mxu0 0
        %4576 = vmatpush.bf16.msra.mxu0 0
        %4577 = vmatpush.bf16.msra.mxu0 0
        %4578 = vmatpush.bf16.msra.mxu0 %v2471
        %4579 = vmatpush.bf16.msra.mxu0 %v2263
        %4580 = vmatmul.bf16.gmra.mxu0 %v3452
        %v4581 = vpop.f32.mrf.mxu0
        %v4582 = vadd.f32 %v3121, %v4581
        %v4583 = vpop.f32.mrf.mxu0
        %4584 = vdwg.mxu0
        %4585 = vmatpush.bf16.msra.mxu0 0
        %4586 = vmatpush.bf16.msra.mxu0 0
        %4587 = vmatpush.bf16.msra.mxu0 0
        %4588 = vmatpush.bf16.msra.mxu0 0
        %4589 = vmatpush.bf16.msra.mxu0 0
        %4590 = vmatpush.bf16.msra.mxu0 0
        %4591 = vmatpush.bf16.msra.mxu0 %v2472
        %4592 = vmatpush.bf16.msra.mxu0 %v2264
        %4593 = vmatmul.bf16.gmra.mxu0 %v3452
        %v4594 = vpop.f32.mrf.mxu0
        %v4595 = vadd.f32 %v3122, %v4594
        %v4596 = vpop.f32.mrf.mxu0
        %4597 = vdwg.mxu0
        %4598 = vmatpush.bf16.msra.mxu0 0
        %4599 = vmatpush.bf16.msra.mxu0 0
        %4600 = vmatpush.bf16.msra.mxu0 0
        %4601 = vmatpush.bf16.msra.mxu0 0
        %4602 = vmatpush.bf16.msra.mxu0 0
        %4603 = vmatpush.bf16.msra.mxu0 0
        %4604 = vmatpush.bf16.msra.mxu0 %v2473
        %4605 = vmatpush.bf16.msra.mxu0 %v2265
        %4606 = vmatmul.bf16.gmra.mxu0 %v3452
        %v4607 = vpop.f32.mrf.mxu0
        %v4608 = vadd.f32 %v3123, %v4607
        %v4609 = vpop.f32.mrf.mxu0
        %4610 = vdwg.mxu0
        %4611 = vmatpush.bf16.msra.mxu0 0
        %4612 = vmatpush.bf16.msra.mxu0 0
        %4613 = vmatpush.bf16.msra.mxu0 0
        %4614 = vmatpush.bf16.msra.mxu0 0
        %4615 = vmatpush.bf16.msra.mxu0 0
        %4616 = vmatpush.bf16.msra.mxu0 0
        %4617 = vmatpush.bf16.msra.mxu0 %v2474
        %4618 = vmatpush.bf16.msra.mxu0 %v2266
        %4619 = vmatmul.bf16.gmra.mxu0 %v3452
        %v4620 = vpop.f32.mrf.mxu0
        %v4621 = vadd.f32 %v3124, %v4620
        %v4622 = vpop.f32.mrf.mxu0
        %4623 = vdwg.mxu0
        %4624 = vmatpush.bf16.msra.mxu0 0
        %4625 = vmatpush.bf16.msra.mxu0 0
        %4626 = vmatpush.bf16.msra.mxu0 0
        %4627 = vmatpush.bf16.msra.mxu0 0
        %4628 = vmatpush.bf16.msra.mxu0 0
        %4629 = vmatpush.bf16.msra.mxu0 0
        %4630 = vmatpush.bf16.msra.mxu0 %v2475
        %4631 = vmatpush.bf16.msra.mxu0 %v2267
        %4632 = vmatmul.bf16.gmra.mxu0 %v3452
        %v4633 = vpop.f32.mrf.mxu0
        %v4634 = vadd.f32 %v3125, %v4633
        %v4635 = vpop.f32.mrf.mxu0
        %4636 = vdwg.mxu0
        %4637 = vmatpush.bf16.msra.mxu0 0
        %4638 = vmatpush.bf16.msra.mxu0 0
        %4639 = vmatpush.bf16.msra.mxu0 0
        %4640 = vmatpush.bf16.msra.mxu0 0
        %4641 = vmatpush.bf16.msra.mxu0 0
        %4642 = vmatpush.bf16.msra.mxu0 0
        %4643 = vmatpush.bf16.msra.mxu0 %v2476
        %4644 = vmatpush.bf16.msra.mxu0 %v2268
        %4645 = vmatmul.bf16.gmra.mxu0 %v3452
        %v4646 = vpop.f32.mrf.mxu0
        %v4647 = vadd.f32 %v3126, %v4646
        %v4648 = vpop.f32.mrf.mxu0
        %4649 = vdwg.mxu0
        %4650 = vmatpush.bf16.msra.mxu0 0
        %4651 = vmatpush.bf16.msra.mxu0 0
        %4652 = vmatpush.bf16.msra.mxu0 0
        %4653 = vmatpush.bf16.msra.mxu0 0
        %4654 = vmatpush.bf16.msra.mxu0 0
        %4655 = vmatpush.bf16.msra.mxu0 0
        %4656 = vmatpush.bf16.msra.mxu0 %v2477
        %4657 = vmatpush.bf16.msra.mxu0 %v2269
        %4658 = vmatmul.bf16.gmra.mxu0 %v3452
        %v4659 = vpop.f32.mrf.mxu0
        %v4660 = vadd.f32 %v3127, %v4659
        %v4661 = vpop.f32.mrf.mxu0
        %4662 = vdwg.mxu0
        %4663 = vmatpush.bf16.msra.mxu0 0
        %4664 = vmatpush.bf16.msra.mxu0 0
        %4665 = vmatpush.bf16.msra.mxu0 0
        %4666 = vmatpush.bf16.msra.mxu0 0
        %4667 = vmatpush.bf16.msra.mxu0 0
        %4668 = vmatpush.bf16.msra.mxu0 0
        %4669 = vmatpush.bf16.msra.mxu0 %v2478
        %4670 = vmatpush.bf16.msra.mxu0 %v2270
        %4671 = vmatmul.bf16.gmra.mxu0 %v3452
        %v4672 = vpop.f32.mrf.mxu0
        %v4673 = vadd.f32 %v3128, %v4672
        %v4674 = vpop.f32.mrf.mxu0
        %4675 = vdwg.mxu0
        %4676 = vmatpush.bf16.msra.mxu0 0
        %4677 = vmatpush.bf16.msra.mxu0 0
        %4678 = vmatpush.bf16.msra.mxu0 0
        %4679 = vmatpush.bf16.msra.mxu0 0
        %4680 = vmatpush.bf16.msra.mxu0 0
        %4681 = vmatpush.bf16.msra.mxu0 0
        %4682 = vmatpush.bf16.msra.mxu0 %v2479
        %4683 = vmatpush.bf16.msra.mxu0 %v2271
        %4684 = vmatmul.bf16.gmra.mxu0 %v3452
        %v4685 = vpop.f32.mrf.mxu0
        %v4686 = vadd.f32 %v3129, %v4685
        %v4687 = vpop.f32.mrf.mxu0
        %4688 = vdwg.mxu0
        %4689 = vmatpush.bf16.msra.mxu0 0
        %4690 = vmatpush.bf16.msra.mxu0 0
        %4691 = vmatpush.bf16.msra.mxu0 0
        %4692 = vmatpush.bf16.msra.mxu0 0
        %4693 = vmatpush.bf16.msra.mxu0 0
        %4694 = vmatpush.bf16.msra.mxu0 0
        %4695 = vmatpush.bf16.msra.mxu0 %v2480
        %4696 = vmatpush.bf16.msra.mxu0 %v2272
        %4697 = vmatmul.bf16.gmra.mxu0 %v3452
        %v4698 = vpop.f32.mrf.mxu0
        %v4699 = vadd.f32 %v3130, %v4698
        %v4700 = vpop.f32.mrf.mxu0
        %4701 = vdwg.mxu0
        %4702 = vmatpush.bf16.msra.mxu0 0
        %4703 = vmatpush.bf16.msra.mxu0 0
        %4704 = vmatpush.bf16.msra.mxu0 0
        %4705 = vmatpush.bf16.msra.mxu0 0
        %4706 = vmatpush.bf16.msra.mxu0 0
        %4707 = vmatpush.bf16.msra.mxu0 0
        %4708 = vmatpush.bf16.msra.mxu0 %v2481
        %4709 = vmatpush.bf16.msra.mxu0 %v2273
        %4710 = vmatmul.bf16.gmra.mxu0 %v3452
        %v4711 = vpop.f32.mrf.mxu0
        %v4712 = vadd.f32 %v3131, %v4711
        %v4713 = vpop.f32.mrf.mxu0
        %4714 = vdwg.mxu0
        %4715 = vmatpush.bf16.msra.mxu0 0
        %4716 = vmatpush.bf16.msra.mxu0 0
        %4717 = vmatpush.bf16.msra.mxu0 0
        %4718 = vmatpush.bf16.msra.mxu0 0
        %4719 = vmatpush.bf16.msra.mxu0 0
        %4720 = vmatpush.bf16.msra.mxu0 0
        %4721 = vmatpush.bf16.msra.mxu0 %v2482
        %4722 = vmatpush.bf16.msra.mxu0 %v2274
        %4723 = vmatmul.bf16.gmra.mxu0 %v3452
        %v4724 = vpop.f32.mrf.mxu0
        %v4725 = vadd.f32 %v3132, %v4724
        %v4726 = vpop.f32.mrf.mxu0
        %4727 = vdwg.mxu0
        %4728 = vmatpush.bf16.msra.mxu0 0
        %4729 = vmatpush.bf16.msra.mxu0 0
        %4730 = vmatpush.bf16.msra.mxu0 0
        %4731 = vmatpush.bf16.msra.mxu0 0
        %4732 = vmatpush.bf16.msra.mxu0 0
        %4733 = vmatpush.bf16.msra.mxu0 0
        %4734 = vmatpush.bf16.msra.mxu0 %v2483
        %4735 = vmatpush.bf16.msra.mxu0 %v2275
        %4736 = vmatmul.bf16.gmra.mxu0 %v3452
        %v4737 = vpop.f32.mrf.mxu0
        %v4738 = vadd.f32 %v3133, %v4737
        %v4739 = vpop.f32.mrf.mxu0
        %4740 = vdwg.mxu0
        %4741 = vmatpush.bf16.msra.mxu0 0
        %4742 = vmatpush.bf16.msra.mxu0 0
        %4743 = vmatpush.bf16.msra.mxu0 0
        %4744 = vmatpush.bf16.msra.mxu0 0
        %4745 = vmatpush.bf16.msra.mxu0 0
        %4746 = vmatpush.bf16.msra.mxu0 0
        %4747 = vmatpush.bf16.msra.mxu0 %v2484
        %4748 = vmatpush.bf16.msra.mxu0 %v2276
        %4749 = vmatmul.bf16.gmra.mxu0 %v3452
        %v4750 = vpop.f32.mrf.mxu0
        %v4751 = vadd.f32 %v3134, %v4750
        %v4752 = vpop.f32.mrf.mxu0
        %4753 = vdwg.mxu0
        %4754 = vmatpush.bf16.msra.mxu0 0
        %4755 = vmatpush.bf16.msra.mxu0 0
        %4756 = vmatpush.bf16.msra.mxu0 0
        %4757 = vmatpush.bf16.msra.mxu0 0
        %4758 = vmatpush.bf16.msra.mxu0 0
        %4759 = vmatpush.bf16.msra.mxu0 0
        %4760 = vmatpush.bf16.msra.mxu0 %v2485
        %4761 = vmatpush.bf16.msra.mxu0 %v2277
        %4762 = vmatmul.bf16.gmra.mxu0 %v3452
        %v4763 = vpop.f32.mrf.mxu0
        %v4764 = vadd.f32 %v3135, %v4763
        %v4765 = vpop.f32.mrf.mxu0
        %4766 = vdwg.mxu0
        %4767 = vmatpush.bf16.msra.mxu0 0
        %4768 = vmatpush.bf16.msra.mxu0 0
        %4769 = vmatpush.bf16.msra.mxu0 0
        %4770 = vmatpush.bf16.msra.mxu0 0
        %4771 = vmatpush.bf16.msra.mxu0 0
        %4772 = vmatpush.bf16.msra.mxu0 0
        %4773 = vmatpush.bf16.msra.mxu0 %v2486
        %4774 = vmatpush.bf16.msra.mxu0 %v2278
        %4775 = vmatmul.bf16.gmra.mxu0 %v3452
        %v4776 = vpop.f32.mrf.mxu0
        %v4777 = vadd.f32 %v3136, %v4776
        %v4778 = vpop.f32.mrf.mxu0
        %4779 = vdwg.mxu0
        %4780 = vmatpush.bf16.msra.mxu0 0
        %4781 = vmatpush.bf16.msra.mxu0 0
        %4782 = vmatpush.bf16.msra.mxu0 0
        %4783 = vmatpush.bf16.msra.mxu0 0
        %4784 = vmatpush.bf16.msra.mxu0 0
        %4785 = vmatpush.bf16.msra.mxu0 0
        %4786 = vmatpush.bf16.msra.mxu0 %v2487
        %4787 = vmatpush.bf16.msra.mxu0 %v2279
        %4788 = vmatmul.bf16.gmra.mxu0 %v3452
        %v4789 = vpop.f32.mrf.mxu0
        %v4790 = vadd.f32 %v3137, %v4789
        %v4791 = vpop.f32.mrf.mxu0
        %4792 = vdwg.mxu0
        %4793 = vmatpush.bf16.msra.mxu0 0
        %4794 = vmatpush.bf16.msra.mxu0 0
        %4795 = vmatpush.bf16.msra.mxu0 0
        %4796 = vmatpush.bf16.msra.mxu0 0
        %4797 = vmatpush.bf16.msra.mxu0 0
        %4798 = vmatpush.bf16.msra.mxu0 0
        %4799 = vmatpush.bf16.msra.mxu0 %v2488
        %4800 = vmatpush.bf16.msra.mxu0 %v2280
        %4801 = vmatmul.bf16.gmra.mxu0 %v3452
        %v4802 = vpop.f32.mrf.mxu0
        %v4803 = vadd.f32 %v3138, %v4802
        %v4804 = vpop.f32.mrf.mxu0
        %4805 = vdwg.mxu0
        %4806 = vmatpush.bf16.msra.mxu0 0
        %4807 = vmatpush.bf16.msra.mxu0 0
        %4808 = vmatpush.bf16.msra.mxu0 0
        %4809 = vmatpush.bf16.msra.mxu0 0
        %4810 = vmatpush.bf16.msra.mxu0 0
        %4811 = vmatpush.bf16.msra.mxu0 0
        %4812 = vmatpush.bf16.msra.mxu0 %v2489
        %4813 = vmatpush.bf16.msra.mxu0 %v2281
        %4814 = vmatmul.bf16.gmra.mxu0 %v3452
        %v4815 = vpop.f32.mrf.mxu0
        %v4816 = vadd.f32 %v3139, %v4815
        %v4817 = vpop.f32.mrf.mxu0
        %4818 = vdwg.mxu0
        %4819 = vmatpush.bf16.msra.mxu0 0
        %4820 = vmatpush.bf16.msra.mxu0 0
        %4821 = vmatpush.bf16.msra.mxu0 0
        %4822 = vmatpush.bf16.msra.mxu0 0
        %4823 = vmatpush.bf16.msra.mxu0 0
        %4824 = vmatpush.bf16.msra.mxu0 0
        %4825 = vmatpush.bf16.msra.mxu0 %v2490
        %4826 = vmatpush.bf16.msra.mxu0 %v2282
        %4827 = vmatmul.bf16.gmra.mxu0 %v3452
        %v4828 = vpop.f32.mrf.mxu0
        %v4829 = vadd.f32 %v3140, %v4828
        %v4830 = vpop.f32.mrf.mxu0
        %4831 = vdwg.mxu0
        %4832 = vmatpush.bf16.msra.mxu0 0
        %4833 = vmatpush.bf16.msra.mxu0 0
        %4834 = vmatpush.bf16.msra.mxu0 0
        %4835 = vmatpush.bf16.msra.mxu0 0
        %4836 = vmatpush.bf16.msra.mxu0 0
        %4837 = vmatpush.bf16.msra.mxu0 0
        %4838 = vmatpush.bf16.msra.mxu0 %v2491
        %4839 = vmatpush.bf16.msra.mxu0 %v2283
        %4840 = vmatmul.bf16.gmra.mxu0 %v3452
        %v4841 = vpop.f32.mrf.mxu0
        %v4842 = vadd.f32 %v3141, %v4841
        %v4843 = vpop.f32.mrf.mxu0
        %4844 = vdwg.mxu0
        %4845 = vmatpush.bf16.msra.mxu0 0
        %4846 = vmatpush.bf16.msra.mxu0 0
        %4847 = vmatpush.bf16.msra.mxu0 0
        %4848 = vmatpush.bf16.msra.mxu0 0
        %4849 = vmatpush.bf16.msra.mxu0 0
        %4850 = vmatpush.bf16.msra.mxu0 0
        %4851 = vmatpush.bf16.msra.mxu0 %v2492
        %4852 = vmatpush.bf16.msra.mxu0 %v2284
        %4853 = vmatmul.bf16.gmra.mxu0 %v3452
        %v4854 = vpop.f32.mrf.mxu0
        %v4855 = vadd.f32 %v3142, %v4854
        %v4856 = vpop.f32.mrf.mxu0
        %4857 = vdwg.mxu0
        %4858 = vmatpush.bf16.msra.mxu0 0
        %4859 = vmatpush.bf16.msra.mxu0 0
        %4860 = vmatpush.bf16.msra.mxu0 0
        %4861 = vmatpush.bf16.msra.mxu0 0
        %4862 = vmatpush.bf16.msra.mxu0 0
        %4863 = vmatpush.bf16.msra.mxu0 0
        %4864 = vmatpush.bf16.msra.mxu0 %v2493
        %4865 = vmatpush.bf16.msra.mxu0 %v2285
        %4866 = vmatmul.bf16.gmra.mxu0 %v3452
        %v4867 = vpop.f32.mrf.mxu0
        %v4868 = vadd.f32 %v3143, %v4867
        %v4869 = vpop.f32.mrf.mxu0
        %4870 = vdwg.mxu0
        %4871 = vmatpush.bf16.msra.mxu0 0
        %4872 = vmatpush.bf16.msra.mxu0 0
        %4873 = vmatpush.bf16.msra.mxu0 0
        %4874 = vmatpush.bf16.msra.mxu0 0
        %4875 = vmatpush.bf16.msra.mxu0 0
        %4876 = vmatpush.bf16.msra.mxu0 0
        %4877 = vmatpush.bf16.msra.mxu0 %v2494
        %4878 = vmatpush.bf16.msra.mxu0 %v2286
        %4879 = vmatmul.bf16.gmra.mxu0 %v3452
        %v4880 = vpop.f32.mrf.mxu0
        %v4881 = vadd.f32 %v3144, %v4880
        %v4882 = vpop.f32.mrf.mxu0
        %4883 = vdwg.mxu0
        %4884 = vmatpush.bf16.msra.mxu0 0
        %4885 = vmatpush.bf16.msra.mxu0 0
        %4886 = vmatpush.bf16.msra.mxu0 0
        %4887 = vmatpush.bf16.msra.mxu0 0
        %4888 = vmatpush.bf16.msra.mxu0 0
        %4889 = vmatpush.bf16.msra.mxu0 0
        %4890 = vmatpush.bf16.msra.mxu0 %v2495
        %4891 = vmatpush.bf16.msra.mxu0 %v2287
        %4892 = vmatmul.bf16.gmra.mxu0 %v3452
        %v4893 = vpop.f32.mrf.mxu0
        %v4894 = vadd.f32 %v3145, %v4893
        %v4895 = vpop.f32.mrf.mxu0
        %4896 = vdwg.mxu0
        %4897 = vmatpush.bf16.msra.mxu0 0
        %4898 = vmatpush.bf16.msra.mxu0 0
        %4899 = vmatpush.bf16.msra.mxu0 0
        %4900 = vmatpush.bf16.msra.mxu0 0
        %4901 = vmatpush.bf16.msra.mxu0 0
        %4902 = vmatpush.bf16.msra.mxu0 0
        %4903 = vmatpush.bf16.msra.mxu0 %v2496
        %4904 = vmatpush.bf16.msra.mxu0 %v2288
        %4905 = vmatmul.bf16.gmra.mxu0 %v3452
        %v4906 = vpop.f32.mrf.mxu0
        %v4907 = vadd.f32 %v3146, %v4906
        %v4908 = vpop.f32.mrf.mxu0
        %4909 = vdwg.mxu0
        %4910 = vmatpush.bf16.msra.mxu0 0
        %4911 = vmatpush.bf16.msra.mxu0 0
        %4912 = vmatpush.bf16.msra.mxu0 0
        %4913 = vmatpush.bf16.msra.mxu0 0
        %4914 = vmatpush.bf16.msra.mxu0 0
        %4915 = vmatpush.bf16.msra.mxu0 0
        %4916 = vmatpush.bf16.msra.mxu0 %v2497
        %4917 = vmatpush.bf16.msra.mxu0 %v2289
        %4918 = vmatmul.bf16.gmra.mxu0 %v3452
        %v4919 = vpop.f32.mrf.mxu0
        %v4920 = vadd.f32 %v3147, %v4919
        %v4921 = vpop.f32.mrf.mxu0
        %4922 = vdwg.mxu0
        %4923 = vmatpush.bf16.msra.mxu0 0
        %4924 = vmatpush.bf16.msra.mxu0 0
        %4925 = vmatpush.bf16.msra.mxu0 0
        %4926 = vmatpush.bf16.msra.mxu0 0
        %4927 = vmatpush.bf16.msra.mxu0 0
        %4928 = vmatpush.bf16.msra.mxu0 0
        %4929 = vmatpush.bf16.msra.mxu0 %v2498
        %4930 = vmatpush.bf16.msra.mxu0 %v2290
        %4931 = vmatmul.bf16.gmra.mxu0 %v3452
        %v4932 = vpop.f32.mrf.mxu0
        %v4933 = vadd.f32 %v3148, %v4932
        %v4934 = vpop.f32.mrf.mxu0
        %4935 = vdwg.mxu0
        %4936 = vmatpush.bf16.msra.mxu0 0
        %4937 = vmatpush.bf16.msra.mxu0 0
        %4938 = vmatpush.bf16.msra.mxu0 0
        %4939 = vmatpush.bf16.msra.mxu0 0
        %4940 = vmatpush.bf16.msra.mxu0 0
        %4941 = vmatpush.bf16.msra.mxu0 0
        %4942 = vmatpush.bf16.msra.mxu0 %v2499
        %4943 = vmatpush.bf16.msra.mxu0 %v2291
        %4944 = vmatmul.bf16.gmra.mxu0 %v3452
        %v4945 = vpop.f32.mrf.mxu0
        %v4946 = vadd.f32 %v3149, %v4945
        %v4947 = vpop.f32.mrf.mxu0
        %4948 = vdwg.mxu0
        %4949 = vmatpush.bf16.msra.mxu0 0
        %4950 = vmatpush.bf16.msra.mxu0 0
        %4951 = vmatpush.bf16.msra.mxu0 0
        %4952 = vmatpush.bf16.msra.mxu0 0
        %4953 = vmatpush.bf16.msra.mxu0 0
        %4954 = vmatpush.bf16.msra.mxu0 0
        %4955 = vmatpush.bf16.msra.mxu0 %v2500
        %4956 = vmatpush.bf16.msra.mxu0 %v2292
        %4957 = vmatmul.bf16.gmra.mxu0 %v3452
        %v4958 = vpop.f32.mrf.mxu0
        %v4959 = vadd.f32 %v3150, %v4958
        %v4960 = vpop.f32.mrf.mxu0
        %4961 = vdwg.mxu0
        %4962 = vmatpush.bf16.msra.mxu0 0
        %4963 = vmatpush.bf16.msra.mxu0 0
        %4964 = vmatpush.bf16.msra.mxu0 0
        %4965 = vmatpush.bf16.msra.mxu0 0
        %4966 = vmatpush.bf16.msra.mxu0 0
        %4967 = vmatpush.bf16.msra.mxu0 0
        %4968 = vmatpush.bf16.msra.mxu0 %v2501
        %4969 = vmatpush.bf16.msra.mxu0 %v2293
        %4970 = vmatmul.bf16.gmra.mxu0 %v3452
        %v4971 = vpop.f32.mrf.mxu0
        %v4972 = vadd.f32 %v3151, %v4971
        %v4973 = vpop.f32.mrf.mxu0
        %4974 = vdwg.mxu0
        %4975 = vmatpush.bf16.msra.mxu0 0
        %4976 = vmatpush.bf16.msra.mxu0 0
        %4977 = vmatpush.bf16.msra.mxu0 0
        %4978 = vmatpush.bf16.msra.mxu0 0
        %4979 = vmatpush.bf16.msra.mxu0 0
        %4980 = vmatpush.bf16.msra.mxu0 0
        %4981 = vmatpush.bf16.msra.mxu0 %v2502
        %4982 = vmatpush.bf16.msra.mxu0 %v2294
        %4983 = vmatmul.bf16.gmra.mxu0 %v3452
        %v4984 = vpop.f32.mrf.mxu0
        %v4985 = vadd.f32 %v3152, %v4984
        %v4986 = vpop.f32.mrf.mxu0
        %4987 = vdwg.mxu0
        %4988 = vmatpush.bf16.msra.mxu0 0
        %4989 = vmatpush.bf16.msra.mxu0 0
        %4990 = vmatpush.bf16.msra.mxu0 0
        %4991 = vmatpush.bf16.msra.mxu0 0
        %4992 = vmatpush.bf16.msra.mxu0 0
        %4993 = vmatpush.bf16.msra.mxu0 0
        %4994 = vmatpush.bf16.msra.mxu0 %v2503
        %4995 = vmatpush.bf16.msra.mxu0 %v2295
        %4996 = vmatmul.bf16.gmra.mxu0 %v3452
        %v4997 = vpop.f32.mrf.mxu0
        %v4998 = vadd.f32 %v3153, %v4997
        %v4999 = vpop.f32.mrf.mxu0
        %5000 = vdwg.mxu0
        %5001 = vmatpush.bf16.msra.mxu0 0
        %5002 = vmatpush.bf16.msra.mxu0 0
        %5003 = vmatpush.bf16.msra.mxu0 0
        %5004 = vmatpush.bf16.msra.mxu0 0
        %5005 = vmatpush.bf16.msra.mxu0 0
        %5006 = vmatpush.bf16.msra.mxu0 0
        %5007 = vmatpush.bf16.msra.mxu0 %v2504
        %5008 = vmatpush.bf16.msra.mxu0 %v2296
        %5009 = vmatmul.bf16.gmra.mxu0 %v3452
        %v5010 = vpop.f32.mrf.mxu0
        %v5011 = vadd.f32 %v3154, %v5010
        %v5012 = vpop.f32.mrf.mxu0
        %5013 = vdwg.mxu0
        %5014 = vmatpush.bf16.msra.mxu0 0
        %5015 = vmatpush.bf16.msra.mxu0 0
        %5016 = vmatpush.bf16.msra.mxu0 0
        %5017 = vmatpush.bf16.msra.mxu0 0
        %5018 = vmatpush.bf16.msra.mxu0 0
        %5019 = vmatpush.bf16.msra.mxu0 0
        %5020 = vmatpush.bf16.msra.mxu0 %v2505
        %5021 = vmatpush.bf16.msra.mxu0 %v2297
        %5022 = vmatmul.bf16.gmra.mxu0 %v3452
        %v5023 = vpop.f32.mrf.mxu0
        %v5024 = vadd.f32 %v3155, %v5023
        %v5025 = vpop.f32.mrf.mxu0
        %5026 = vdwg.mxu0
        %5027 = vmatpush.bf16.msra.mxu0 0
        %5028 = vmatpush.bf16.msra.mxu0 0
        %5029 = vmatpush.bf16.msra.mxu0 0
        %5030 = vmatpush.bf16.msra.mxu0 0
        %5031 = vmatpush.bf16.msra.mxu0 0
        %5032 = vmatpush.bf16.msra.mxu0 0
        %5033 = vmatpush.bf16.msra.mxu0 %v2506
        %5034 = vmatpush.bf16.msra.mxu0 %v2298
        %5035 = vmatmul.bf16.gmra.mxu0 %v3452
        %v5036 = vpop.f32.mrf.mxu0
        %v5037 = vadd.f32 %v3156, %v5036
        %v5038 = vpop.f32.mrf.mxu0
        %5039 = vdwg.mxu0
        %5040 = vmatpush.bf16.msra.mxu0 0
        %5041 = vmatpush.bf16.msra.mxu0 0
        %5042 = vmatpush.bf16.msra.mxu0 0
        %5043 = vmatpush.bf16.msra.mxu0 0
        %5044 = vmatpush.bf16.msra.mxu0 0
        %5045 = vmatpush.bf16.msra.mxu0 0
        %5046 = vmatpush.bf16.msra.mxu0 %v2507
        %5047 = vmatpush.bf16.msra.mxu0 %v2299
        %5048 = vmatmul.bf16.gmra.mxu0 %v3452
        %v5049 = vpop.f32.mrf.mxu0
        %v5050 = vadd.f32 %v3157, %v5049
        %v5051 = vpop.f32.mrf.mxu0
        %5052 = vdwg.mxu0
        %5053 = vmatpush.bf16.msra.mxu0 0
        %5054 = vmatpush.bf16.msra.mxu0 0
        %5055 = vmatpush.bf16.msra.mxu0 0
        %5056 = vmatpush.bf16.msra.mxu0 0
        %5057 = vmatpush.bf16.msra.mxu0 0
        %5058 = vmatpush.bf16.msra.mxu0 0
        %5059 = vmatpush.bf16.msra.mxu0 %v2508
        %5060 = vmatpush.bf16.msra.mxu0 %v2300
        %5061 = vmatmul.bf16.gmra.mxu0 %v3452
        %v5062 = vpop.f32.mrf.mxu0
        %v5063 = vadd.f32 %v3158, %v5062
        %v5064 = vpop.f32.mrf.mxu0
        %5065 = vdwg.mxu0
        %5066 = vmatpush.bf16.msra.mxu0 0
        %5067 = vmatpush.bf16.msra.mxu0 0
        %5068 = vmatpush.bf16.msra.mxu0 0
        %5069 = vmatpush.bf16.msra.mxu0 0
        %5070 = vmatpush.bf16.msra.mxu0 0
        %5071 = vmatpush.bf16.msra.mxu0 0
        %5072 = vmatpush.bf16.msra.mxu0 %v2509
        %5073 = vmatpush.bf16.msra.mxu0 %v2301
        %5074 = vmatmul.bf16.gmra.mxu0 %v3452
        %v5075 = vpop.f32.mrf.mxu0
        %v5076 = vadd.f32 %v3159, %v5075
        %v5077 = vpop.f32.mrf.mxu0
        %5078 = vdwg.mxu0
        %5079 = vmatpush.bf16.msra.mxu0 0
        %5080 = vmatpush.bf16.msra.mxu0 0
        %5081 = vmatpush.bf16.msra.mxu0 0
        %5082 = vmatpush.bf16.msra.mxu0 0
        %5083 = vmatpush.bf16.msra.mxu0 0
        %5084 = vmatpush.bf16.msra.mxu0 0
        %5085 = vmatpush.bf16.msra.mxu0 %v2510
        %5086 = vmatpush.bf16.msra.mxu0 %v2302
        %5087 = vmatmul.bf16.gmra.mxu0 %v3452
        %v5088 = vpop.f32.mrf.mxu0
        %v5089 = vadd.f32 %v3160, %v5088
        %v5090 = vpop.f32.mrf.mxu0
        %5091 = vdwg.mxu0
        %5092 = vmatpush.bf16.msra.mxu0 0
        %5093 = vmatpush.bf16.msra.mxu0 0
        %5094 = vmatpush.bf16.msra.mxu0 0
        %5095 = vmatpush.bf16.msra.mxu0 0
        %5096 = vmatpush.bf16.msra.mxu0 0
        %5097 = vmatpush.bf16.msra.mxu0 0
        %5098 = vmatpush.bf16.msra.mxu0 %v2511
        %5099 = vmatpush.bf16.msra.mxu0 %v2303
        %5100 = vmatmul.bf16.gmra.mxu0 %v3452
        %v5101 = vpop.f32.mrf.mxu0
        %v5102 = vadd.f32 %v3161, %v5101
        %v5103 = vpop.f32.mrf.mxu0
        %5104 = vdwg.mxu0
        %5105 = vmatpush.bf16.msra.mxu0 0
        %5106 = vmatpush.bf16.msra.mxu0 0
        %5107 = vmatpush.bf16.msra.mxu0 0
        %5108 = vmatpush.bf16.msra.mxu0 0
        %5109 = vmatpush.bf16.msra.mxu0 0
        %5110 = vmatpush.bf16.msra.mxu0 0
        %5111 = vmatpush.bf16.msra.mxu0 %v2512
        %5112 = vmatpush.bf16.msra.mxu0 %v2304
        %5113 = vmatmul.bf16.gmra.mxu0 %v3452
        %v5114 = vpop.f32.mrf.mxu0
        %v5115 = vadd.f32 %v3162, %v5114
        %v5116 = vpop.f32.mrf.mxu0
        %5117 = vdwg.mxu0
        %5118 = vmatpush.bf16.msra.mxu0 0
        %5119 = vmatpush.bf16.msra.mxu0 0
        %5120 = vmatpush.bf16.msra.mxu0 0
        %5121 = vmatpush.bf16.msra.mxu0 0
        %5122 = vmatpush.bf16.msra.mxu0 0
        %5123 = vmatpush.bf16.msra.mxu0 0
        %5124 = vmatpush.bf16.msra.mxu0 %v2513
        %5125 = vmatpush.bf16.msra.mxu0 %v2305
        %5126 = vmatmul.bf16.gmra.mxu0 %v3452
        %v5127 = vpop.f32.mrf.mxu0
        %v5128 = vadd.f32 %v3163, %v5127
        %v5129 = vpop.f32.mrf.mxu0
        %5130 = vdwg.mxu0
        %5131 = vmatpush.bf16.msra.mxu0 0
        %5132 = vmatpush.bf16.msra.mxu0 0
        %5133 = vmatpush.bf16.msra.mxu0 0
        %5134 = vmatpush.bf16.msra.mxu0 0
        %5135 = vmatpush.bf16.msra.mxu0 0
        %5136 = vmatpush.bf16.msra.mxu0 0
        %5137 = vmatpush.bf16.msra.mxu0 %v2514
        %5138 = vmatpush.bf16.msra.mxu0 %v2306
        %5139 = vmatmul.bf16.gmra.mxu0 %v3452
        %v5140 = vpop.f32.mrf.mxu0
        %v5141 = vadd.f32 %v3164, %v5140
        %v5142 = vpop.f32.mrf.mxu0
        %5143 = vdwg.mxu0
        %5144 = vmatpush.bf16.msra.mxu0 0
        %5145 = vmatpush.bf16.msra.mxu0 0
        %5146 = vmatpush.bf16.msra.mxu0 0
        %5147 = vmatpush.bf16.msra.mxu0 0
        %5148 = vmatpush.bf16.msra.mxu0 0
        %5149 = vmatpush.bf16.msra.mxu0 0
        %5150 = vmatpush.bf16.msra.mxu0 %v2515
        %5151 = vmatpush.bf16.msra.mxu0 %v2307
        %5152 = vmatmul.bf16.gmra.mxu0 %v3452
        %v5153 = vpop.f32.mrf.mxu0
        %v5154 = vadd.f32 %v3165, %v5153
        %v5155 = vpop.f32.mrf.mxu0
        %5156 = vdwg.mxu0
        %5157 = vmatpush.bf16.msra.mxu0 0
        %5158 = vmatpush.bf16.msra.mxu0 0
        %5159 = vmatpush.bf16.msra.mxu0 0
        %5160 = vmatpush.bf16.msra.mxu0 0
        %5161 = vmatpush.bf16.msra.mxu0 0
        %5162 = vmatpush.bf16.msra.mxu0 0
        %5163 = vmatpush.bf16.msra.mxu0 %v2516
        %5164 = vmatpush.bf16.msra.mxu0 %v2308
        %5165 = vmatmul.bf16.gmra.mxu0 %v3452
        %v5166 = vpop.f32.mrf.mxu0
        %v5167 = vadd.f32 %v3166, %v5166
        %v5168 = vpop.f32.mrf.mxu0
        %5169 = vdwg.mxu0
        %5170 = vmatpush.bf16.msra.mxu0 0
        %5171 = vmatpush.bf16.msra.mxu0 0
        %5172 = vmatpush.bf16.msra.mxu0 0
        %5173 = vmatpush.bf16.msra.mxu0 0
        %5174 = vmatpush.bf16.msra.mxu0 0
        %5175 = vmatpush.bf16.msra.mxu0 0
        %5176 = vmatpush.bf16.msra.mxu0 %v2517
        %5177 = vmatpush.bf16.msra.mxu0 %v2309
        %5178 = vmatmul.bf16.gmra.mxu0 %v3452
        %v5179 = vpop.f32.mrf.mxu0
        %v5180 = vadd.f32 %v3167, %v5179
        %v5181 = vpop.f32.mrf.mxu0
        %5182 = vdwg.mxu0
        %5183 = vmatpush.bf16.msra.mxu0 0
        %5184 = vmatpush.bf16.msra.mxu0 0
        %5185 = vmatpush.bf16.msra.mxu0 0
        %5186 = vmatpush.bf16.msra.mxu0 0
        %5187 = vmatpush.bf16.msra.mxu0 0
        %5188 = vmatpush.bf16.msra.mxu0 0
        %5189 = vmatpush.bf16.msra.mxu0 %v2518
        %5190 = vmatpush.bf16.msra.mxu0 %v2310
        %5191 = vmatmul.bf16.gmra.mxu0 %v3452
        %v5192 = vpop.f32.mrf.mxu0
        %v5193 = vadd.f32 %v3168, %v5192
        %v5194 = vpop.f32.mrf.mxu0
        %5195 = vdwg.mxu0
        %5196 = vmatpush.bf16.msra.mxu0 0
        %5197 = vmatpush.bf16.msra.mxu0 0
        %5198 = vmatpush.bf16.msra.mxu0 0
        %5199 = vmatpush.bf16.msra.mxu0 0
        %5200 = vmatpush.bf16.msra.mxu0 0
        %5201 = vmatpush.bf16.msra.mxu0 0
        %5202 = vmatpush.bf16.msra.mxu0 %v2519
        %5203 = vmatpush.bf16.msra.mxu0 %v2311
        %5204 = vmatmul.bf16.gmra.mxu0 %v3452
        %v5205 = vpop.f32.mrf.mxu0
        %v5206 = vadd.f32 %v3169, %v5205
        %v5207 = vpop.f32.mrf.mxu0
        %5208 = vdwg.mxu0
        %5209 = vmatpush.bf16.msra.mxu0 0
        %5210 = vmatpush.bf16.msra.mxu0 0
        %5211 = vmatpush.bf16.msra.mxu0 0
        %5212 = vmatpush.bf16.msra.mxu0 0
        %5213 = vmatpush.bf16.msra.mxu0 0
        %5214 = vmatpush.bf16.msra.mxu0 0
        %5215 = vmatpush.bf16.msra.mxu0 %v2520
        %5216 = vmatpush.bf16.msra.mxu0 %v2312
        %5217 = vmatmul.bf16.gmra.mxu0 %v3452
        %v5218 = vpop.f32.mrf.mxu0
        %v5219 = vadd.f32 %v3170, %v5218
        %v5220 = vpop.f32.mrf.mxu0
        %5221 = vdwg.mxu0
        %5222 = vmatpush.bf16.msra.mxu0 0
        %5223 = vmatpush.bf16.msra.mxu0 0
        %5224 = vmatpush.bf16.msra.mxu0 0
        %5225 = vmatpush.bf16.msra.mxu0 0
        %5226 = vmatpush.bf16.msra.mxu0 0
        %5227 = vmatpush.bf16.msra.mxu0 0
        %5228 = vmatpush.bf16.msra.mxu0 %v2521
        %5229 = vmatpush.bf16.msra.mxu0 %v2313
        %5230 = vmatmul.bf16.gmra.mxu0 %v3452
        %v5231 = vpop.f32.mrf.mxu0
        %v5232 = vadd.f32 %v3171, %v5231
        %v5233 = vpop.f32.mrf.mxu0
        %5234 = vdwg.mxu0
        %5235 = vmatpush.bf16.msra.mxu0 0
        %5236 = vmatpush.bf16.msra.mxu0 0
        %5237 = vmatpush.bf16.msra.mxu0 0
        %5238 = vmatpush.bf16.msra.mxu0 0
        %5239 = vmatpush.bf16.msra.mxu0 0
        %5240 = vmatpush.bf16.msra.mxu0 0
        %5241 = vmatpush.bf16.msra.mxu0 %v2522
        %5242 = vmatpush.bf16.msra.mxu0 %v2314
        %5243 = vmatmul.bf16.gmra.mxu0 %v3452
        %v5244 = vpop.f32.mrf.mxu0
        %v5245 = vadd.f32 %v3172, %v5244
        %v5246 = vpop.f32.mrf.mxu0
        %5247 = vdwg.mxu0
        %5248 = vmatpush.bf16.msra.mxu0 0
        %5249 = vmatpush.bf16.msra.mxu0 0
        %5250 = vmatpush.bf16.msra.mxu0 0
        %5251 = vmatpush.bf16.msra.mxu0 0
        %5252 = vmatpush.bf16.msra.mxu0 0
        %5253 = vmatpush.bf16.msra.mxu0 0
        %5254 = vmatpush.bf16.msra.mxu0 %v2523
        %5255 = vmatpush.bf16.msra.mxu0 %v2315
        %5256 = vmatmul.bf16.gmra.mxu0 %v3452
        %v5257 = vpop.f32.mrf.mxu0
        %v5258 = vadd.f32 %v3173, %v5257
        %v5259 = vpop.f32.mrf.mxu0
        %5260 = vdwg.mxu0
        %5261 = vmatpush.bf16.msra.mxu0 0
        %5262 = vmatpush.bf16.msra.mxu0 0
        %5263 = vmatpush.bf16.msra.mxu0 0
        %5264 = vmatpush.bf16.msra.mxu0 0
        %5265 = vmatpush.bf16.msra.mxu0 0
        %5266 = vmatpush.bf16.msra.mxu0 0
        %5267 = vmatpush.bf16.msra.mxu0 %v2524
        %5268 = vmatpush.bf16.msra.mxu0 %v2316
        %5269 = vmatmul.bf16.gmra.mxu0 %v3452
        %v5270 = vpop.f32.mrf.mxu0
        %v5271 = vadd.f32 %v3174, %v5270
        %v5272 = vpop.f32.mrf.mxu0
        %5273 = vdwg.mxu0
        %5274 = vmatpush.bf16.msra.mxu0 0
        %5275 = vmatpush.bf16.msra.mxu0 0
        %5276 = vmatpush.bf16.msra.mxu0 0
        %5277 = vmatpush.bf16.msra.mxu0 0
        %5278 = vmatpush.bf16.msra.mxu0 0
        %5279 = vmatpush.bf16.msra.mxu0 0
        %5280 = vmatpush.bf16.msra.mxu0 %v2525
        %5281 = vmatpush.bf16.msra.mxu0 %v2317
        %5282 = vmatmul.bf16.gmra.mxu0 %v3452
        %v5283 = vpop.f32.mrf.mxu0
        %v5284 = vadd.f32 %v3175, %v5283
        %v5285 = vpop.f32.mrf.mxu0
        %5286 = vdwg.mxu0
        %5287 = vmatpush.bf16.msra.mxu0 0
        %5288 = vmatpush.bf16.msra.mxu0 0
        %5289 = vmatpush.bf16.msra.mxu0 0
        %5290 = vmatpush.bf16.msra.mxu0 0
        %5291 = vmatpush.bf16.msra.mxu0 0
        %5292 = vmatpush.bf16.msra.mxu0 0
        %5293 = vmatpush.bf16.msra.mxu0 %v2526
        %5294 = vmatpush.bf16.msra.mxu0 %v2318
        %5295 = vmatmul.bf16.gmra.mxu0 %v3452
        %v5296 = vpop.f32.mrf.mxu0
        %v5297 = vadd.f32 %v3176, %v5296
        %v5298 = vpop.f32.mrf.mxu0
        %5299 = vdwg.mxu0
        %5300 = vmatpush.bf16.msra.mxu0 0
        %5301 = vmatpush.bf16.msra.mxu0 0
        %5302 = vmatpush.bf16.msra.mxu0 0
        %5303 = vmatpush.bf16.msra.mxu0 0
        %5304 = vmatpush.bf16.msra.mxu0 0
        %5305 = vmatpush.bf16.msra.mxu0 0
        %5306 = vmatpush.bf16.msra.mxu0 %v2527
        %5307 = vmatpush.bf16.msra.mxu0 %v2319
        %5308 = vmatmul.bf16.gmra.mxu0 %v3452
        %v5309 = vpop.f32.mrf.mxu0
        %v5310 = vadd.f32 %v3177, %v5309
        %v5311 = vpop.f32.mrf.mxu0
        %5312 = vdwg.mxu0
        %5313 = vmatpush.bf16.msra.mxu0 0
        %5314 = vmatpush.bf16.msra.mxu0 0
        %5315 = vmatpush.bf16.msra.mxu0 0
        %5316 = vmatpush.bf16.msra.mxu0 0
        %5317 = vmatpush.bf16.msra.mxu0 0
        %5318 = vmatpush.bf16.msra.mxu0 0
        %5319 = vmatpush.bf16.msra.mxu0 %v2528
        %5320 = vmatpush.bf16.msra.mxu0 %v2320
        %5321 = vmatmul.bf16.gmra.mxu0 %v3452
        %v5322 = vpop.f32.mrf.mxu0
        %v5323 = vadd.f32 %v3178, %v5322
        %v5324 = vpop.f32.mrf.mxu0
        %5325 = vdwg.mxu0
        %5326 = vmatpush.bf16.msra.mxu0 0
        %5327 = vmatpush.bf16.msra.mxu0 0
        %5328 = vmatpush.bf16.msra.mxu0 0
        %5329 = vmatpush.bf16.msra.mxu0 0
        %5330 = vmatpush.bf16.msra.mxu0 0
        %5331 = vmatpush.bf16.msra.mxu0 0
        %5332 = vmatpush.bf16.msra.mxu0 %v2529
        %5333 = vmatpush.bf16.msra.mxu0 %v2321
        %5334 = vmatmul.bf16.gmra.mxu0 %v3452
        %v5335 = vpop.f32.mrf.mxu0
        %v5336 = vadd.f32 %v3179, %v5335
        %v5337 = vpop.f32.mrf.mxu0
        %5338 = vdwg.mxu0
        %5339 = vmatpush.bf16.msra.mxu0 0
        %5340 = vmatpush.bf16.msra.mxu0 0
        %5341 = vmatpush.bf16.msra.mxu0 0
        %5342 = vmatpush.bf16.msra.mxu0 0
        %5343 = vmatpush.bf16.msra.mxu0 0
        %5344 = vmatpush.bf16.msra.mxu0 0
        %5345 = vmatpush.bf16.msra.mxu0 %v2530
        %5346 = vmatpush.bf16.msra.mxu0 %v2322
        %5347 = vmatmul.bf16.gmra.mxu0 %v3452
        %v5348 = vpop.f32.mrf.mxu0
        %v5349 = vadd.f32 %v3180, %v5348
        %v5350 = vpop.f32.mrf.mxu0
        %5351 = vdwg.mxu0
        %5352 = vmatpush.bf16.msra.mxu0 0
        %5353 = vmatpush.bf16.msra.mxu0 0
        %5354 = vmatpush.bf16.msra.mxu0 0
        %5355 = vmatpush.bf16.msra.mxu0 0
        %5356 = vmatpush.bf16.msra.mxu0 0
        %5357 = vmatpush.bf16.msra.mxu0 0
        %5358 = vmatpush.bf16.msra.mxu0 %v2531
        %5359 = vmatpush.bf16.msra.mxu0 %v2323
        %5360 = vmatmul.bf16.gmra.mxu0 %v3452
        %v5361 = vpop.f32.mrf.mxu0
        %v5362 = vadd.f32 %v3181, %v5361
        %v5363 = vpop.f32.mrf.mxu0
        %5364 = vdwg.mxu0
        %5365 = vmatpush.bf16.msra.mxu0 0
        %5366 = vmatpush.bf16.msra.mxu0 0
        %5367 = vmatpush.bf16.msra.mxu0 0
        %5368 = vmatpush.bf16.msra.mxu0 0
        %5369 = vmatpush.bf16.msra.mxu0 0
        %5370 = vmatpush.bf16.msra.mxu0 0
        %5371 = vmatpush.bf16.msra.mxu0 %v2532
        %5372 = vmatpush.bf16.msra.mxu0 %v2324
        %5373 = vmatmul.bf16.gmra.mxu0 %v3452
        %v5374 = vpop.f32.mrf.mxu0
        %v5375 = vadd.f32 %v3182, %v5374
        %v5376 = vpop.f32.mrf.mxu0
        %5377 = vdwg.mxu0
        %5378 = vmatpush.bf16.msra.mxu0 0
        %5379 = vmatpush.bf16.msra.mxu0 0
        %5380 = vmatpush.bf16.msra.mxu0 0
        %5381 = vmatpush.bf16.msra.mxu0 0
        %5382 = vmatpush.bf16.msra.mxu0 0
        %5383 = vmatpush.bf16.msra.mxu0 0
        %5384 = vmatpush.bf16.msra.mxu0 %v2533
        %5385 = vmatpush.bf16.msra.mxu0 %v2325
        %5386 = vmatmul.bf16.gmra.mxu0 %v3452
        %v5387 = vpop.f32.mrf.mxu0
        %v5388 = vadd.f32 %v3183, %v5387
        %v5389 = vpop.f32.mrf.mxu0
        %5390 = vdwg.mxu0
        %5391 = vmatpush.bf16.msra.mxu0 0
        %5392 = vmatpush.bf16.msra.mxu0 0
        %5393 = vmatpush.bf16.msra.mxu0 0
        %5394 = vmatpush.bf16.msra.mxu0 0
        %5395 = vmatpush.bf16.msra.mxu0 0
        %5396 = vmatpush.bf16.msra.mxu0 0
        %5397 = vmatpush.bf16.msra.mxu0 %v2534
        %5398 = vmatpush.bf16.msra.mxu0 %v2326
        %5399 = vmatmul.bf16.gmra.mxu0 %v3452
        %v5400 = vpop.f32.mrf.mxu0
        %v5401 = vadd.f32 %v3184, %v5400
        %v5402 = vpop.f32.mrf.mxu0
        %5403 = vdwg.mxu0
        %5404 = vmatpush.bf16.msra.mxu0 0
        %5405 = vmatpush.bf16.msra.mxu0 0
        %5406 = vmatpush.bf16.msra.mxu0 0
        %5407 = vmatpush.bf16.msra.mxu0 0
        %5408 = vmatpush.bf16.msra.mxu0 0
        %5409 = vmatpush.bf16.msra.mxu0 0
        %5410 = vmatpush.bf16.msra.mxu0 %v2535
        %5411 = vmatpush.bf16.msra.mxu0 %v2327
        %5412 = vmatmul.bf16.gmra.mxu0 %v3452
        %v5413 = vpop.f32.mrf.mxu0
        %v5414 = vadd.f32 %v3185, %v5413
        %v5415 = vpop.f32.mrf.mxu0
        %5416 = vdwg.mxu0
        %5417 = vmatpush.bf16.msra.mxu0 0
        %5418 = vmatpush.bf16.msra.mxu0 0
        %5419 = vmatpush.bf16.msra.mxu0 0
        %5420 = vmatpush.bf16.msra.mxu0 0
        %5421 = vmatpush.bf16.msra.mxu0 0
        %5422 = vmatpush.bf16.msra.mxu0 0
        %5423 = vmatpush.bf16.msra.mxu0 %v2536
        %5424 = vmatpush.bf16.msra.mxu0 %v2328
        %5425 = vmatmul.bf16.gmra.mxu0 %v3452
        %v5426 = vpop.f32.mrf.mxu0
        %v5427 = vadd.f32 %v3186, %v5426
        %v5428 = vpop.f32.mrf.mxu0
        %5429 = vdwg.mxu0
        %5430 = vmatpush.bf16.msra.mxu0 0
        %5431 = vmatpush.bf16.msra.mxu0 0
        %5432 = vmatpush.bf16.msra.mxu0 0
        %5433 = vmatpush.bf16.msra.mxu0 0
        %5434 = vmatpush.bf16.msra.mxu0 0
        %5435 = vmatpush.bf16.msra.mxu0 0
        %5436 = vmatpush.bf16.msra.mxu0 %v2537
        %5437 = vmatpush.bf16.msra.mxu0 %v2329
        %5438 = vmatmul.bf16.gmra.mxu0 %v3452
        %v5439 = vpop.f32.mrf.mxu0
        %v5440 = vadd.f32 %v3187, %v5439
        %v5441 = vpop.f32.mrf.mxu0
        %5442 = vdwg.mxu0
        %5443 = vmatpush.bf16.msra.mxu0 0
        %5444 = vmatpush.bf16.msra.mxu0 0
        %5445 = vmatpush.bf16.msra.mxu0 0
        %5446 = vmatpush.bf16.msra.mxu0 0
        %5447 = vmatpush.bf16.msra.mxu0 0
        %5448 = vmatpush.bf16.msra.mxu0 0
        %5449 = vmatpush.bf16.msra.mxu0 %v2538
        %5450 = vmatpush.bf16.msra.mxu0 %v2330
        %5451 = vmatmul.bf16.gmra.mxu0 %v3452
        %v5452 = vpop.f32.mrf.mxu0
        %v5453 = vadd.f32 %v3188, %v5452
        %v5454 = vpop.f32.mrf.mxu0
        %5455 = vdwg.mxu0
        %5456 = vmatpush.bf16.msra.mxu0 0
        %5457 = vmatpush.bf16.msra.mxu0 0
        %5458 = vmatpush.bf16.msra.mxu0 0
        %5459 = vmatpush.bf16.msra.mxu0 0
        %5460 = vmatpush.bf16.msra.mxu0 0
        %5461 = vmatpush.bf16.msra.mxu0 0
        %5462 = vmatpush.bf16.msra.mxu0 %v2539
        %5463 = vmatpush.bf16.msra.mxu0 %v2331
        %5464 = vmatmul.bf16.gmra.mxu0 %v3452
        %v5465 = vpop.f32.mrf.mxu0
        %v5466 = vadd.f32 %v3189, %v5465
        %v5467 = vpop.f32.mrf.mxu0
        %5468 = vdwg.mxu0
        %5469 = vmatpush.bf16.msra.mxu0 0
        %5470 = vmatpush.bf16.msra.mxu0 0
        %5471 = vmatpush.bf16.msra.mxu0 0
        %5472 = vmatpush.bf16.msra.mxu0 0
        %5473 = vmatpush.bf16.msra.mxu0 0
        %5474 = vmatpush.bf16.msra.mxu0 0
        %5475 = vmatpush.bf16.msra.mxu0 %v2540
        %5476 = vmatpush.bf16.msra.mxu0 %v2332
        %5477 = vmatmul.bf16.gmra.mxu0 %v3452
        %v5478 = vpop.f32.mrf.mxu0
        %v5479 = vadd.f32 %v3190, %v5478
        %v5480 = vpop.f32.mrf.mxu0
        %5481 = vdwg.mxu0
        %5482 = vmatpush.bf16.msra.mxu0 0
        %5483 = vmatpush.bf16.msra.mxu0 0
        %5484 = vmatpush.bf16.msra.mxu0 0
        %5485 = vmatpush.bf16.msra.mxu0 0
        %5486 = vmatpush.bf16.msra.mxu0 0
        %5487 = vmatpush.bf16.msra.mxu0 0
        %5488 = vmatpush.bf16.msra.mxu0 %v2541
        %5489 = vmatpush.bf16.msra.mxu0 %v2333
        %5490 = vmatmul.bf16.gmra.mxu0 %v3452
        %v5491 = vpop.f32.mrf.mxu0
        %v5492 = vadd.f32 %v3191, %v5491
        %v5493 = vpop.f32.mrf.mxu0
        %5494 = vdwg.mxu0
        %5495 = vmatpush.bf16.msra.mxu0 0
        %5496 = vmatpush.bf16.msra.mxu0 0
        %5497 = vmatpush.bf16.msra.mxu0 0
        %5498 = vmatpush.bf16.msra.mxu0 0
        %5499 = vmatpush.bf16.msra.mxu0 0
        %5500 = vmatpush.bf16.msra.mxu0 0
        %5501 = vmatpush.bf16.msra.mxu0 %v2542
        %5502 = vmatpush.bf16.msra.mxu0 %v2334
        %5503 = vmatmul.bf16.gmra.mxu0 %v3452
        %v5504 = vpop.f32.mrf.mxu0
        %v5505 = vadd.f32 %v3192, %v5504
        %v5506 = vpop.f32.mrf.mxu0
        %5507 = vdwg.mxu0
        %5508 = vmatpush.bf16.msra.mxu0 0
        %5509 = vmatpush.bf16.msra.mxu0 0
        %5510 = vmatpush.bf16.msra.mxu0 0
        %5511 = vmatpush.bf16.msra.mxu0 0
        %5512 = vmatpush.bf16.msra.mxu0 0
        %5513 = vmatpush.bf16.msra.mxu0 0
        %5514 = vmatpush.bf16.msra.mxu0 %v2543
        %5515 = vmatpush.bf16.msra.mxu0 %v2335
        %5516 = vmatmul.bf16.gmra.mxu0 %v3452
        %v5517 = vpop.f32.mrf.mxu0
        %v5518 = vadd.f32 %v3193, %v5517
        %v5519 = vpop.f32.mrf.mxu0
        %5520 = vdwg.mxu0
        %5521 = vmatpush.bf16.msra.mxu0 0
        %5522 = vmatpush.bf16.msra.mxu0 0
        %5523 = vmatpush.bf16.msra.mxu0 0
        %5524 = vmatpush.bf16.msra.mxu0 0
        %5525 = vmatpush.bf16.msra.mxu0 0
        %5526 = vmatpush.bf16.msra.mxu0 0
        %5527 = vmatpush.bf16.msra.mxu0 %v2544
        %5528 = vmatpush.bf16.msra.mxu0 %v2336
        %5529 = vmatmul.bf16.gmra.mxu0 %v3452
        %v5530 = vpop.f32.mrf.mxu0
        %v5531 = vadd.f32 %v3194, %v5530
        %v5532 = vpop.f32.mrf.mxu0
        %5533 = vdwg.mxu0
        %5534 = vmatpush.bf16.msra.mxu0 0
        %5535 = vmatpush.bf16.msra.mxu0 0
        %5536 = vmatpush.bf16.msra.mxu0 0
        %5537 = vmatpush.bf16.msra.mxu0 0
        %5538 = vmatpush.bf16.msra.mxu0 0
        %5539 = vmatpush.bf16.msra.mxu0 0
        %5540 = vmatpush.bf16.msra.mxu0 %v2545
        %5541 = vmatpush.bf16.msra.mxu0 %v2337
        %5542 = vmatmul.bf16.gmra.mxu0 %v3452
        %v5543 = vpop.f32.mrf.mxu0
        %v5544 = vadd.f32 %v3195, %v5543
        %v5545 = vpop.f32.mrf.mxu0
        %5546 = vdwg.mxu0
        %5547 = vmatpush.bf16.msra.mxu0 0
        %5548 = vmatpush.bf16.msra.mxu0 0
        %5549 = vmatpush.bf16.msra.mxu0 0
        %5550 = vmatpush.bf16.msra.mxu0 0
        %5551 = vmatpush.bf16.msra.mxu0 0
        %5552 = vmatpush.bf16.msra.mxu0 0
        %5553 = vmatpush.bf16.msra.mxu0 %v2546
        %5554 = vmatpush.bf16.msra.mxu0 %v2338
        %5555 = vmatmul.bf16.gmra.mxu0 %v3452
        %v5556 = vpop.f32.mrf.mxu0
        %v5557 = vadd.f32 %v3196, %v5556
        %v5558 = vpop.f32.mrf.mxu0
        %5559 = vdwg.mxu0
        %5560 = vmatpush.bf16.msra.mxu0 0
        %5561 = vmatpush.bf16.msra.mxu0 0
        %5562 = vmatpush.bf16.msra.mxu0 0
        %5563 = vmatpush.bf16.msra.mxu0 0
        %5564 = vmatpush.bf16.msra.mxu0 0
        %5565 = vmatpush.bf16.msra.mxu0 0
        %5566 = vmatpush.bf16.msra.mxu0 %v2547
        %5567 = vmatpush.bf16.msra.mxu0 %v2339
        %5568 = vmatmul.bf16.gmra.mxu0 %v3452
        %v5569 = vpop.f32.mrf.mxu0
        %v5570 = vadd.f32 %v3197, %v5569
        %v5571 = vpop.f32.mrf.mxu0
        %5572 = vdwg.mxu0
        %5573 = vmatpush.bf16.msra.mxu0 0
        %5574 = vmatpush.bf16.msra.mxu0 0
        %5575 = vmatpush.bf16.msra.mxu0 0
        %5576 = vmatpush.bf16.msra.mxu0 0
        %5577 = vmatpush.bf16.msra.mxu0 0
        %5578 = vmatpush.bf16.msra.mxu0 0
        %5579 = vmatpush.bf16.msra.mxu0 %v2548
        %5580 = vmatpush.bf16.msra.mxu0 %v2340
        %5581 = vmatmul.bf16.gmra.mxu0 %v3452
        %v5582 = vpop.f32.mrf.mxu0
        %v5583 = vadd.f32 %v3198, %v5582
        %v5584 = vpop.f32.mrf.mxu0
        %5585 = vdwg.mxu0
        %5586 = vmatpush.bf16.msra.mxu0 0
        %5587 = vmatpush.bf16.msra.mxu0 0
        %5588 = vmatpush.bf16.msra.mxu0 0
        %5589 = vmatpush.bf16.msra.mxu0 0
        %5590 = vmatpush.bf16.msra.mxu0 0
        %5591 = vmatpush.bf16.msra.mxu0 0
        %5592 = vmatpush.bf16.msra.mxu0 %v2549
        %5593 = vmatpush.bf16.msra.mxu0 %v2341
        %5594 = vmatmul.bf16.gmra.mxu0 %v3452
        %v5595 = vpop.f32.mrf.mxu0
        %v5596 = vadd.f32 %v3199, %v5595
        %v5597 = vpop.f32.mrf.mxu0
        %5598 = vdwg.mxu0
        %5599 = vmatpush.bf16.msra.mxu0 0
        %5600 = vmatpush.bf16.msra.mxu0 0
        %5601 = vmatpush.bf16.msra.mxu0 0
        %5602 = vmatpush.bf16.msra.mxu0 0
        %5603 = vmatpush.bf16.msra.mxu0 0
        %5604 = vmatpush.bf16.msra.mxu0 0
        %5605 = vmatpush.bf16.msra.mxu0 %v2550
        %5606 = vmatpush.bf16.msra.mxu0 %v2342
        %5607 = vmatmul.bf16.gmra.mxu0 %v3452
        %v5608 = vpop.f32.mrf.mxu0
        %v5609 = vadd.f32 %v3200, %v5608
        %v5610 = vpop.f32.mrf.mxu0
        %5611 = vdwg.mxu0
        %5612 = vmatpush.bf16.msra.mxu0 0
        %5613 = vmatpush.bf16.msra.mxu0 0
        %5614 = vmatpush.bf16.msra.mxu0 0
        %5615 = vmatpush.bf16.msra.mxu0 0
        %5616 = vmatpush.bf16.msra.mxu0 0
        %5617 = vmatpush.bf16.msra.mxu0 0
        %5618 = vmatpush.bf16.msra.mxu0 %v2551
        %5619 = vmatpush.bf16.msra.mxu0 %v2343
        %5620 = vmatmul.bf16.gmra.mxu0 %v3452
        %v5621 = vpop.f32.mrf.mxu0
        %v5622 = vadd.f32 %v3201, %v5621
        %v5623 = vpop.f32.mrf.mxu0
        %5624 = vdwg.mxu0
        %5625 = vmatpush.bf16.msra.mxu0 0
        %5626 = vmatpush.bf16.msra.mxu0 0
        %5627 = vmatpush.bf16.msra.mxu0 0
        %5628 = vmatpush.bf16.msra.mxu0 0
        %5629 = vmatpush.bf16.msra.mxu0 0
        %5630 = vmatpush.bf16.msra.mxu0 0
        %5631 = vmatpush.bf16.msra.mxu0 %v2552
        %5632 = vmatpush.bf16.msra.mxu0 %v2344
        %5633 = vmatmul.bf16.gmra.mxu0 %v3452
        %v5634 = vpop.f32.mrf.mxu0
        %v5635 = vadd.f32 %v3202, %v5634
        %v5636 = vpop.f32.mrf.mxu0
        %5637 = vdwg.mxu0
        %5638 = vmatpush.bf16.msra.mxu0 0
        %5639 = vmatpush.bf16.msra.mxu0 0
        %5640 = vmatpush.bf16.msra.mxu0 0
        %5641 = vmatpush.bf16.msra.mxu0 0
        %5642 = vmatpush.bf16.msra.mxu0 0
        %5643 = vmatpush.bf16.msra.mxu0 0
        %5644 = vmatpush.bf16.msra.mxu0 %v2553
        %5645 = vmatpush.bf16.msra.mxu0 %v2345
        %5646 = vmatmul.bf16.gmra.mxu0 %v3452
        %v5647 = vpop.f32.mrf.mxu0
        %v5648 = vadd.f32 %v3203, %v5647
        %v5649 = vpop.f32.mrf.mxu0
        %5650 = vdwg.mxu0
        %5651 = vmatpush.bf16.msra.mxu0 0
        %5652 = vmatpush.bf16.msra.mxu0 0
        %5653 = vmatpush.bf16.msra.mxu0 0
        %5654 = vmatpush.bf16.msra.mxu0 0
        %5655 = vmatpush.bf16.msra.mxu0 0
        %5656 = vmatpush.bf16.msra.mxu0 0
        %5657 = vmatpush.bf16.msra.mxu0 %v2554
        %5658 = vmatpush.bf16.msra.mxu0 %v2346
        %5659 = vmatmul.bf16.gmra.mxu0 %v3452
        %v5660 = vpop.f32.mrf.mxu0
        %v5661 = vadd.f32 %v3204, %v5660
        %v5662 = vpop.f32.mrf.mxu0
        %5663 = vdwg.mxu0
        %5664 = vmatpush.bf16.msra.mxu0 0
        %5665 = vmatpush.bf16.msra.mxu0 0
        %5666 = vmatpush.bf16.msra.mxu0 0
        %5667 = vmatpush.bf16.msra.mxu0 0
        %5668 = vmatpush.bf16.msra.mxu0 0
        %5669 = vmatpush.bf16.msra.mxu0 0
        %5670 = vmatpush.bf16.msra.mxu0 %v2555
        %5671 = vmatpush.bf16.msra.mxu0 %v2347
        %5672 = vmatmul.bf16.gmra.mxu0 %v3452
        %v5673 = vpop.f32.mrf.mxu0
        %v5674 = vadd.f32 %v3205, %v5673
        %v5675 = vpop.f32.mrf.mxu0
        %5676 = vdwg.mxu0
        %5677 = vmatpush.bf16.msra.mxu0 0
        %5678 = vmatpush.bf16.msra.mxu0 0
        %5679 = vmatpush.bf16.msra.mxu0 0
        %5680 = vmatpush.bf16.msra.mxu0 0
        %5681 = vmatpush.bf16.msra.mxu0 0
        %5682 = vmatpush.bf16.msra.mxu0 0
        %5683 = vmatpush.bf16.msra.mxu0 %v2556
        %5684 = vmatpush.bf16.msra.mxu0 %v2348
        %5685 = vmatmul.bf16.gmra.mxu0 %v3452
        %v5686 = vpop.f32.mrf.mxu0
        %v5687 = vadd.f32 %v3206, %v5686
        %v5688 = vpop.f32.mrf.mxu0
        %5689 = vdwg.mxu0
        %5690 = vmatpush.bf16.msra.mxu0 0
        %5691 = vmatpush.bf16.msra.mxu0 0
        %5692 = vmatpush.bf16.msra.mxu0 0
        %5693 = vmatpush.bf16.msra.mxu0 0
        %5694 = vmatpush.bf16.msra.mxu0 0
        %5695 = vmatpush.bf16.msra.mxu0 0
        %5696 = vmatpush.bf16.msra.mxu0 %v2557
        %5697 = vmatpush.bf16.msra.mxu0 %v2349
        %5698 = vmatmul.bf16.gmra.mxu0 %v3452
        %v5699 = vpop.f32.mrf.mxu0
        %v5700 = vadd.f32 %v3207, %v5699
        %v5701 = vpop.f32.mrf.mxu0
        %5702 = vdwg.mxu0
        %5703 = vmatpush.bf16.msra.mxu0 0
        %5704 = vmatpush.bf16.msra.mxu0 0
        %5705 = vmatpush.bf16.msra.mxu0 0
        %5706 = vmatpush.bf16.msra.mxu0 0
        %5707 = vmatpush.bf16.msra.mxu0 0
        %5708 = vmatpush.bf16.msra.mxu0 0
        %5709 = vmatpush.bf16.msra.mxu0 %v2558
        %5710 = vmatpush.bf16.msra.mxu0 %v2350
        %5711 = vmatmul.bf16.gmra.mxu0 %v3452
        %v5712 = vpop.f32.mrf.mxu0
        %v5713 = vadd.f32 %v3208, %v5712
        %v5714 = vpop.f32.mrf.mxu0
        %5715 = vdwg.mxu0
        %5716 = vmatpush.bf16.msra.mxu0 0
        %5717 = vmatpush.bf16.msra.mxu0 0
        %5718 = vmatpush.bf16.msra.mxu0 0
        %5719 = vmatpush.bf16.msra.mxu0 0
        %5720 = vmatpush.bf16.msra.mxu0 0
        %5721 = vmatpush.bf16.msra.mxu0 0
        %5722 = vmatpush.bf16.msra.mxu0 %v2559
        %5723 = vmatpush.bf16.msra.mxu0 %v2351
        %5724 = vmatmul.bf16.gmra.mxu0 %v3452
        %v5725 = vpop.f32.mrf.mxu0
        %v5726 = vadd.f32 %v3209, %v5725
        %v5727 = vpop.f32.mrf.mxu0
        %5728 = vdwg.mxu0
        %5729 = vmatpush.bf16.msra.mxu0 0
        %5730 = vmatpush.bf16.msra.mxu0 0
        %5731 = vmatpush.bf16.msra.mxu0 0
        %5732 = vmatpush.bf16.msra.mxu0 0
        %5733 = vmatpush.bf16.msra.mxu0 0
        %5734 = vmatpush.bf16.msra.mxu0 0
        %5735 = vmatpush.bf16.msra.mxu0 %v2560
        %5736 = vmatpush.bf16.msra.mxu0 %v2352
        %5737 = vmatmul.bf16.gmra.mxu0 %v3452
        %v5738 = vpop.f32.mrf.mxu0
        %v5739 = vadd.f32 %v3210, %v5738
        %v5740 = vpop.f32.mrf.mxu0
        %5741 = vdwg.mxu0
        %5742 = vmatpush.bf16.msra.mxu0 0
        %5743 = vmatpush.bf16.msra.mxu0 0
        %5744 = vmatpush.bf16.msra.mxu0 0
        %5745 = vmatpush.bf16.msra.mxu0 0
        %5746 = vmatpush.bf16.msra.mxu0 0
        %5747 = vmatpush.bf16.msra.mxu0 0
        %5748 = vmatpush.bf16.msra.mxu0 %v2561
        %5749 = vmatpush.bf16.msra.mxu0 %v2353
        %5750 = vmatmul.bf16.gmra.mxu0 %v3452
        %v5751 = vpop.f32.mrf.mxu0
        %v5752 = vadd.f32 %v3211, %v5751
        %v5753 = vpop.f32.mrf.mxu0
        %5754 = vdwg.mxu0
        %5755 = vmatpush.bf16.msra.mxu0 0
        %5756 = vmatpush.bf16.msra.mxu0 0
        %5757 = vmatpush.bf16.msra.mxu0 0
        %5758 = vmatpush.bf16.msra.mxu0 0
        %5759 = vmatpush.bf16.msra.mxu0 0
        %5760 = vmatpush.bf16.msra.mxu0 0
        %5761 = vmatpush.bf16.msra.mxu0 %v2562
        %5762 = vmatpush.bf16.msra.mxu0 %v2354
        %5763 = vmatmul.bf16.gmra.mxu0 %v3452
        %v5764 = vpop.f32.mrf.mxu0
        %v5765 = vadd.f32 %v3212, %v5764
        %v5766 = vpop.f32.mrf.mxu0
        %5767 = vdwg.mxu0
        %5768 = vmatpush.bf16.msra.mxu0 0
        %5769 = vmatpush.bf16.msra.mxu0 0
        %5770 = vmatpush.bf16.msra.mxu0 0
        %5771 = vmatpush.bf16.msra.mxu0 0
        %5772 = vmatpush.bf16.msra.mxu0 0
        %5773 = vmatpush.bf16.msra.mxu0 0
        %5774 = vmatpush.bf16.msra.mxu0 %v2563
        %5775 = vmatpush.bf16.msra.mxu0 %v2355
        %5776 = vmatmul.bf16.gmra.mxu0 %v3452
        %v5777 = vpop.f32.mrf.mxu0
        %v5778 = vadd.f32 %v3213, %v5777
        %v5779 = vpop.f32.mrf.mxu0
        %5780 = vdwg.mxu0
        %5781 = vmatpush.bf16.msra.mxu0 0
        %5782 = vmatpush.bf16.msra.mxu0 0
        %5783 = vmatpush.bf16.msra.mxu0 0
        %5784 = vmatpush.bf16.msra.mxu0 0
        %5785 = vmatpush.bf16.msra.mxu0 0
        %5786 = vmatpush.bf16.msra.mxu0 0
        %5787 = vmatpush.bf16.msra.mxu0 %v2564
        %5788 = vmatpush.bf16.msra.mxu0 %v2356
        %5789 = vmatmul.bf16.gmra.mxu0 %v3452
        %v5790 = vpop.f32.mrf.mxu0
        %v5791 = vadd.f32 %v3214, %v5790
        %v5792 = vpop.f32.mrf.mxu0
        %5793 = vdwg.mxu0
        %5794 = vmatpush.bf16.msra.mxu0 0
        %5795 = vmatpush.bf16.msra.mxu0 0
        %5796 = vmatpush.bf16.msra.mxu0 0
        %5797 = vmatpush.bf16.msra.mxu0 0
        %5798 = vmatpush.bf16.msra.mxu0 0
        %5799 = vmatpush.bf16.msra.mxu0 0
        %5800 = vmatpush.bf16.msra.mxu0 %v2565
        %5801 = vmatpush.bf16.msra.mxu0 %v2357
        %5802 = vmatmul.bf16.gmra.mxu0 %v3452
        %v5803 = vpop.f32.mrf.mxu0
        %v5804 = vadd.f32 %v3215, %v5803
        %v5805 = vpop.f32.mrf.mxu0
        %5806 = vdwg.mxu0
        %5807 = vmatpush.bf16.msra.mxu0 0
        %5808 = vmatpush.bf16.msra.mxu0 0
        %5809 = vmatpush.bf16.msra.mxu0 0
        %5810 = vmatpush.bf16.msra.mxu0 0
        %5811 = vmatpush.bf16.msra.mxu0 0
        %5812 = vmatpush.bf16.msra.mxu0 0
        %5813 = vmatpush.bf16.msra.mxu0 %v2566
        %5814 = vmatpush.bf16.msra.mxu0 %v2358
        %5815 = vmatmul.bf16.gmra.mxu0 %v3452
        %v5816 = vpop.f32.mrf.mxu0
        %v5817 = vadd.f32 %v3216, %v5816
        %v5818 = vpop.f32.mrf.mxu0
        %5819 = vdwg.mxu0
        %5820 = vmatpush.bf16.msra.mxu0 0
        %5821 = vmatpush.bf16.msra.mxu0 0
        %5822 = vmatpush.bf16.msra.mxu0 0
        %5823 = vmatpush.bf16.msra.mxu0 0
        %5824 = vmatpush.bf16.msra.mxu0 0
        %5825 = vmatpush.bf16.msra.mxu0 0
        %5826 = vmatpush.bf16.msra.mxu0 %v2567
        %5827 = vmatpush.bf16.msra.mxu0 %v2359
        %5828 = vmatmul.bf16.gmra.mxu0 %v3452
        %v5829 = vpop.f32.mrf.mxu0
        %v5830 = vadd.f32 %v3217, %v5829
        %v5831 = vpop.f32.mrf.mxu0
        %5832 = vdwg.mxu0
        %5833 = vmatpush.bf16.msra.mxu0 0
        %5834 = vmatpush.bf16.msra.mxu0 0
        %5835 = vmatpush.bf16.msra.mxu0 0
        %5836 = vmatpush.bf16.msra.mxu0 0
        %5837 = vmatpush.bf16.msra.mxu0 0
        %5838 = vmatpush.bf16.msra.mxu0 0
        %5839 = vmatpush.bf16.msra.mxu0 %v2568
        %5840 = vmatpush.bf16.msra.mxu0 %v2360
        %5841 = vmatmul.bf16.gmra.mxu0 %v3452
        %v5842 = vpop.f32.mrf.mxu0
        %v5843 = vadd.f32 %v3218, %v5842
        %v5844 = vpop.f32.mrf.mxu0
        %5845 = vdwg.mxu0
        %5846 = vmatpush.bf16.msra.mxu0 0
        %5847 = vmatpush.bf16.msra.mxu0 0
        %5848 = vmatpush.bf16.msra.mxu0 0
        %5849 = vmatpush.bf16.msra.mxu0 0
        %5850 = vmatpush.bf16.msra.mxu0 0
        %5851 = vmatpush.bf16.msra.mxu0 0
        %5852 = vmatpush.bf16.msra.mxu0 %v2569
        %5853 = vmatpush.bf16.msra.mxu0 %v2361
        %5854 = vmatmul.bf16.gmra.mxu0 %v3452
        %v5855 = vpop.f32.mrf.mxu0
        %v5856 = vadd.f32 %v3219, %v5855
        %v5857 = vpop.f32.mrf.mxu0
        %5858 = vdwg.mxu0
        %5859 = vmatpush.bf16.msra.mxu0 0
        %5860 = vmatpush.bf16.msra.mxu0 0
        %5861 = vmatpush.bf16.msra.mxu0 0
        %5862 = vmatpush.bf16.msra.mxu0 0
        %5863 = vmatpush.bf16.msra.mxu0 0
        %5864 = vmatpush.bf16.msra.mxu0 0
        %5865 = vmatpush.bf16.msra.mxu0 %v2570
        %5866 = vmatpush.bf16.msra.mxu0 %v2362
        %5867 = vmatmul.bf16.gmra.mxu0 %v3452
        %v5868 = vpop.f32.mrf.mxu0
        %v5869 = vadd.f32 %v3220, %v5868
        %v5870 = vpop.f32.mrf.mxu0
        %5871 = vdwg.mxu0
        %5872 = vmatpush.bf16.msra.mxu0 0
        %5873 = vmatpush.bf16.msra.mxu0 0
        %5874 = vmatpush.bf16.msra.mxu0 0
        %5875 = vmatpush.bf16.msra.mxu0 0
        %5876 = vmatpush.bf16.msra.mxu0 0
        %5877 = vmatpush.bf16.msra.mxu0 0
        %5878 = vmatpush.bf16.msra.mxu0 %v2571
        %5879 = vmatpush.bf16.msra.mxu0 %v2363
        %5880 = vmatmul.bf16.gmra.mxu0 %v3452
        %v5881 = vpop.f32.mrf.mxu0
        %v5882 = vadd.f32 %v3221, %v5881
        %v5883 = vpop.f32.mrf.mxu0
        %5884 = vdwg.mxu0
        %5885 = vmatpush.bf16.msra.mxu0 0
        %5886 = vmatpush.bf16.msra.mxu0 0
        %5887 = vmatpush.bf16.msra.mxu0 0
        %5888 = vmatpush.bf16.msra.mxu0 0
        %5889 = vmatpush.bf16.msra.mxu0 0
        %5890 = vmatpush.bf16.msra.mxu0 0
        %5891 = vmatpush.bf16.msra.mxu0 %v2572
        %5892 = vmatpush.bf16.msra.mxu0 %v2364
        %5893 = vmatmul.bf16.gmra.mxu0 %v3452
        %v5894 = vpop.f32.mrf.mxu0
        %v5895 = vadd.f32 %v3222, %v5894
        %v5896 = vpop.f32.mrf.mxu0
        %5897 = vdwg.mxu0
        %5898 = vmatpush.bf16.msra.mxu0 0
        %5899 = vmatpush.bf16.msra.mxu0 0
        %5900 = vmatpush.bf16.msra.mxu0 0
        %5901 = vmatpush.bf16.msra.mxu0 0
        %5902 = vmatpush.bf16.msra.mxu0 0
        %5903 = vmatpush.bf16.msra.mxu0 0
        %5904 = vmatpush.bf16.msra.mxu0 %v2573
        %5905 = vmatpush.bf16.msra.mxu0 %v2365
        %5906 = vmatmul.bf16.gmra.mxu0 %v3452
        %v5907 = vpop.f32.mrf.mxu0
        %v5908 = vadd.f32 %v3223, %v5907
        %v5909 = vpop.f32.mrf.mxu0
        %5910 = vdwg.mxu0
        %5911 = vmatpush.bf16.msra.mxu0 0
        %5912 = vmatpush.bf16.msra.mxu0 0
        %5913 = vmatpush.bf16.msra.mxu0 0
        %5914 = vmatpush.bf16.msra.mxu0 0
        %5915 = vmatpush.bf16.msra.mxu0 0
        %5916 = vmatpush.bf16.msra.mxu0 0
        %5917 = vmatpush.bf16.msra.mxu0 %v2574
        %5918 = vmatpush.bf16.msra.mxu0 %v2366
        %5919 = vmatmul.bf16.gmra.mxu0 %v3452
        %v5920 = vpop.f32.mrf.mxu0
        %v5921 = vadd.f32 %v3224, %v5920
        %v5922 = vpop.f32.mrf.mxu0
        %5923 = vdwg.mxu0
        %5924 = vmatpush.bf16.msra.mxu0 0
        %5925 = vmatpush.bf16.msra.mxu0 0
        %5926 = vmatpush.bf16.msra.mxu0 0
        %5927 = vmatpush.bf16.msra.mxu0 0
        %5928 = vmatpush.bf16.msra.mxu0 0
        %5929 = vmatpush.bf16.msra.mxu0 0
        %5930 = vmatpush.bf16.msra.mxu0 %v2575
        %5931 = vmatpush.bf16.msra.mxu0 %v2367
        %5932 = vmatmul.bf16.gmra.mxu0 %v3452
        %v5933 = vpop.f32.mrf.mxu0
        %v5934 = vadd.f32 %v3225, %v5933
        %v5935 = vpop.f32.mrf.mxu0
        %5936 = vdwg.mxu0
        %5937 = vmatpush.bf16.msra.mxu0 0
        %5938 = vmatpush.bf16.msra.mxu0 0
        %5939 = vmatpush.bf16.msra.mxu0 0
        %5940 = vmatpush.bf16.msra.mxu0 0
        %5941 = vmatpush.bf16.msra.mxu0 0
        %5942 = vmatpush.bf16.msra.mxu0 0
        %5943 = vmatpush.bf16.msra.mxu0 %v2576
        %5944 = vmatpush.bf16.msra.mxu0 %v2368
        %5945 = vmatmul.bf16.gmra.mxu0 %v3452
        %v5946 = vpop.f32.mrf.mxu0
        %v5947 = vadd.f32 %v3226, %v5946
        %v5948 = vpop.f32.mrf.mxu0
        %5949 = vdwg.mxu0
        %5950 = vmatpush.bf16.msra.mxu0 0
        %5951 = vmatpush.bf16.msra.mxu0 0
        %5952 = vmatpush.bf16.msra.mxu0 0
        %5953 = vmatpush.bf16.msra.mxu0 0
        %5954 = vmatpush.bf16.msra.mxu0 0
        %5955 = vmatpush.bf16.msra.mxu0 0
        %5956 = vmatpush.bf16.msra.mxu0 %v2577
        %5957 = vmatpush.bf16.msra.mxu0 %v2369
        %5958 = vmatmul.bf16.gmra.mxu0 %v3452
        %v5959 = vpop.f32.mrf.mxu0
        %v5960 = vadd.f32 %v3227, %v5959
        %v5961 = vpop.f32.mrf.mxu0
        %5962 = vdwg.mxu0
        %5963 = vmatpush.bf16.msra.mxu0 0
        %5964 = vmatpush.bf16.msra.mxu0 0
        %5965 = vmatpush.bf16.msra.mxu0 0
        %5966 = vmatpush.bf16.msra.mxu0 0
        %5967 = vmatpush.bf16.msra.mxu0 0
        %5968 = vmatpush.bf16.msra.mxu0 0
        %5969 = vmatpush.bf16.msra.mxu0 %v2578
        %5970 = vmatpush.bf16.msra.mxu0 %v2370
        %5971 = vmatmul.bf16.gmra.mxu0 %v3452
        %v5972 = vpop.f32.mrf.mxu0
        %v5973 = vadd.f32 %v3228, %v5972
        %v5974 = vpop.f32.mrf.mxu0
        %5975 = vdwg.mxu0
        %5976 = vmatpush.bf16.msra.mxu0 0
        %5977 = vmatpush.bf16.msra.mxu0 0
        %5978 = vmatpush.bf16.msra.mxu0 0
        %5979 = vmatpush.bf16.msra.mxu0 0
        %5980 = vmatpush.bf16.msra.mxu0 0
        %5981 = vmatpush.bf16.msra.mxu0 0
        %5982 = vmatpush.bf16.msra.mxu0 %v2579
        %5983 = vmatpush.bf16.msra.mxu0 %v2371
        %5984 = vmatmul.bf16.gmra.mxu0 %v3452
        %v5985 = vpop.f32.mrf.mxu0
        %v5986 = vadd.f32 %v3229, %v5985
        %v5987 = vpop.f32.mrf.mxu0
        %5988 = vdwg.mxu0
        %5989 = vmatpush.bf16.msra.mxu0 0
        %5990 = vmatpush.bf16.msra.mxu0 0
        %5991 = vmatpush.bf16.msra.mxu0 0
        %5992 = vmatpush.bf16.msra.mxu0 0
        %5993 = vmatpush.bf16.msra.mxu0 0
        %5994 = vmatpush.bf16.msra.mxu0 0
        %5995 = vmatpush.bf16.msra.mxu0 %v2580
        %5996 = vmatpush.bf16.msra.mxu0 %v2372
        %5997 = vmatmul.bf16.gmra.mxu0 %v3452
        %v5998 = vpop.f32.mrf.mxu0
        %v5999 = vadd.f32 %v3230, %v5998
        %v6000 = vpop.f32.mrf.mxu0
        %6001 = vdwg.mxu0
        %6002 = vmatpush.bf16.msra.mxu0 0
        %6003 = vmatpush.bf16.msra.mxu0 0
        %6004 = vmatpush.bf16.msra.mxu0 0
        %6005 = vmatpush.bf16.msra.mxu0 0
        %6006 = vmatpush.bf16.msra.mxu0 0
        %6007 = vmatpush.bf16.msra.mxu0 0
        %6008 = vmatpush.bf16.msra.mxu0 %v2581
        %6009 = vmatpush.bf16.msra.mxu0 %v2373
        %6010 = vmatmul.bf16.gmra.mxu0 %v3452
        %v6011 = vpop.f32.mrf.mxu0
        %v6012 = vadd.f32 %v3231, %v6011
        %v6013 = vpop.f32.mrf.mxu0
        %6014 = vdwg.mxu0
        %6015 = vmatpush.bf16.msra.mxu0 0
        %6016 = vmatpush.bf16.msra.mxu0 0
        %6017 = vmatpush.bf16.msra.mxu0 0
        %6018 = vmatpush.bf16.msra.mxu0 0
        %6019 = vmatpush.bf16.msra.mxu0 0
        %6020 = vmatpush.bf16.msra.mxu0 0
        %6021 = vmatpush.bf16.msra.mxu0 %v2582
        %6022 = vmatpush.bf16.msra.mxu0 %v2374
        %6023 = vmatmul.bf16.gmra.mxu0 %v3452
        %v6024 = vpop.f32.mrf.mxu0
        %v6025 = vadd.f32 %v3232, %v6024
        %v6026 = vpop.f32.mrf.mxu0
        %6027 = vdwg.mxu0
        %6028 = vmatpush.bf16.msra.mxu0 0
        %6029 = vmatpush.bf16.msra.mxu0 0
        %6030 = vmatpush.bf16.msra.mxu0 0
        %6031 = vmatpush.bf16.msra.mxu0 0
        %6032 = vmatpush.bf16.msra.mxu0 0
        %6033 = vmatpush.bf16.msra.mxu0 0
        %6034 = vmatpush.bf16.msra.mxu0 %v2583
        %6035 = vmatpush.bf16.msra.mxu0 %v2375
        %6036 = vmatmul.bf16.gmra.mxu0 %v3452
        %v6037 = vpop.f32.mrf.mxu0
        %v6038 = vadd.f32 %v3233, %v6037
        %v6039 = vpop.f32.mrf.mxu0
        %6040 = vdwg.mxu0
        %6041 = vmatpush.bf16.msra.mxu0 0
        %6042 = vmatpush.bf16.msra.mxu0 0
        %6043 = vmatpush.bf16.msra.mxu0 0
        %6044 = vmatpush.bf16.msra.mxu0 0
        %6045 = vmatpush.bf16.msra.mxu0 0
        %6046 = vmatpush.bf16.msra.mxu0 0
        %6047 = vmatpush.bf16.msra.mxu0 %v2584
        %6048 = vmatpush.bf16.msra.mxu0 %v2376
        %6049 = vmatmul.bf16.gmra.mxu0 %v3452
        %v6050 = vpop.f32.mrf.mxu0
        %v6051 = vadd.f32 %v3234, %v6050
        %v6052 = vpop.f32.mrf.mxu0
        %6053 = vdwg.mxu0
        %6054 = vmatpush.bf16.msra.mxu0 0
        %6055 = vmatpush.bf16.msra.mxu0 0
        %6056 = vmatpush.bf16.msra.mxu0 0
        %6057 = vmatpush.bf16.msra.mxu0 0
        %6058 = vmatpush.bf16.msra.mxu0 0
        %6059 = vmatpush.bf16.msra.mxu0 0
        %6060 = vmatpush.bf16.msra.mxu0 %v2585
        %6061 = vmatpush.bf16.msra.mxu0 %v2377
        %6062 = vmatmul.bf16.gmra.mxu0 %v3452
        %v6063 = vpop.f32.mrf.mxu0
        %v6064 = vadd.f32 %v3235, %v6063
        %v6065 = vpop.f32.mrf.mxu0
        %6066 = vdwg.mxu0
        %6067 = vmatpush.bf16.msra.mxu0 0
        %6068 = vmatpush.bf16.msra.mxu0 0
        %6069 = vmatpush.bf16.msra.mxu0 0
        %6070 = vmatpush.bf16.msra.mxu0 0
        %6071 = vmatpush.bf16.msra.mxu0 0
        %6072 = vmatpush.bf16.msra.mxu0 0
        %6073 = vmatpush.bf16.msra.mxu0 %v2586
        %6074 = vmatpush.bf16.msra.mxu0 %v2378
        %6075 = vmatmul.bf16.gmra.mxu0 %v3452
        %v6076 = vpop.f32.mrf.mxu0
        %v6077 = vadd.f32 %v3236, %v6076
        %v6078 = vpop.f32.mrf.mxu0
        %6079 = vdwg.mxu0
        %6080 = vmatpush.bf16.msra.mxu0 0
        %6081 = vmatpush.bf16.msra.mxu0 0
        %6082 = vmatpush.bf16.msra.mxu0 0
        %6083 = vmatpush.bf16.msra.mxu0 0
        %6084 = vmatpush.bf16.msra.mxu0 0
        %6085 = vmatpush.bf16.msra.mxu0 0
        %6086 = vmatpush.bf16.msra.mxu0 %v2587
        %6087 = vmatpush.bf16.msra.mxu0 %v2379
        %6088 = vmatmul.bf16.gmra.mxu0 %v3452
        %v6089 = vpop.f32.mrf.mxu0
        %v6090 = vadd.f32 %v3237, %v6089
        %v6091 = vpop.f32.mrf.mxu0
        %6092 = vdwg.mxu0
        %6093 = vmatpush.bf16.msra.mxu0 0
        %6094 = vmatpush.bf16.msra.mxu0 0
        %6095 = vmatpush.bf16.msra.mxu0 0
        %6096 = vmatpush.bf16.msra.mxu0 0
        %6097 = vmatpush.bf16.msra.mxu0 0
        %6098 = vmatpush.bf16.msra.mxu0 0
        %6099 = vmatpush.bf16.msra.mxu0 %v2588
        %6100 = vmatpush.bf16.msra.mxu0 %v2380
        %6101 = vmatmul.bf16.gmra.mxu0 %v3452
        %v6102 = vpop.f32.mrf.mxu0
        %v6103 = vadd.f32 %v3238, %v6102
        %v6104 = vpop.f32.mrf.mxu0
        %6105 = vdwg.mxu0
        %6106 = vmatpush.bf16.msra.mxu0 0
        %6107 = vmatpush.bf16.msra.mxu0 0
        %6108 = vmatpush.bf16.msra.mxu0 0
        %6109 = vmatpush.bf16.msra.mxu0 0
        %6110 = vmatpush.bf16.msra.mxu0 0
        %6111 = vmatpush.bf16.msra.mxu0 0
        %6112 = vmatpush.bf16.msra.mxu0 %v2589
        %6113 = vmatpush.bf16.msra.mxu0 %v2381
        %6114 = vmatmul.bf16.gmra.mxu0 %v3452
        %v6115 = vpop.f32.mrf.mxu0
        %v6116 = vadd.f32 %v3239, %v6115
        %v6117 = vpop.f32.mrf.mxu0
        %6118 = vdwg.mxu0
        %6119 = vmatpush.bf16.msra.mxu0 0
        %6120 = vmatpush.bf16.msra.mxu0 0
        %6121 = vmatpush.bf16.msra.mxu0 0
        %6122 = vmatpush.bf16.msra.mxu0 0
        %6123 = vmatpush.bf16.msra.mxu0 0
        %6124 = vmatpush.bf16.msra.mxu0 0
        %6125 = vmatpush.bf16.msra.mxu0 %v2590
        %6126 = vmatpush.bf16.msra.mxu0 %v2382
        %6127 = vmatmul.bf16.gmra.mxu0 %v3452
        %v6128 = vpop.f32.mrf.mxu0
        %v6129 = vadd.f32 %v3240, %v6128
        %v6130 = vpop.f32.mrf.mxu0
        %6131 = vdwg.mxu0
        %6132 = vmatpush.bf16.msra.mxu0 0
        %6133 = vmatpush.bf16.msra.mxu0 0
        %6134 = vmatpush.bf16.msra.mxu0 0
        %6135 = vmatpush.bf16.msra.mxu0 0
        %6136 = vmatpush.bf16.msra.mxu0 0
        %6137 = vmatpush.bf16.msra.mxu0 0
        %6138 = vmatpush.bf16.msra.mxu0 %v2591
        %6139 = vmatpush.bf16.msra.mxu0 %v2383
        %6140 = vmatmul.bf16.gmra.mxu0 %v3452
        %v6141 = vpop.f32.mrf.mxu0
        %v6142 = vadd.f32 %v3241, %v6141
        %v6143 = vpop.f32.mrf.mxu0
        %6144 = vdwg.mxu0
        %6145 = vmatpush.bf16.msra.mxu0 0
        %6146 = vmatpush.bf16.msra.mxu0 0
        %6147 = vmatpush.bf16.msra.mxu0 0
        %6148 = vmatpush.bf16.msra.mxu0 0
        %6149 = vmatpush.bf16.msra.mxu0 0
        %6150 = vmatpush.bf16.msra.mxu0 0
        %6151 = vmatpush.bf16.msra.mxu0 %v2592
        %6152 = vmatpush.bf16.msra.mxu0 %v2384
        %6153 = vmatmul.bf16.gmra.mxu0 %v3452
        %v6154 = vpop.f32.mrf.mxu0
        %v6155 = vadd.f32 %v3242, %v6154
        %v6156 = vpop.f32.mrf.mxu0
        %6157 = vdwg.mxu0
        %v6366 = vrot.slane %v3477, 7
        %v6367 = vrot.slane %v3490, 6
        %v6368 = vrot.slane %v3503, 5
        %v6369 = vrot.slane %v3516, 4
        %v6370 = vrot.slane %v3529, 3
        %v6371 = vrot.slane %v3542, 2
        %v6372 = vrot.slane %v3555, 1
        %v6373 = vrot.slane %v3581, 7
        %v6374 = vrot.slane %v3594, 6
        %v6375 = vrot.slane %v3607, 5
        %v6376 = vrot.slane %v3620, 4
        %v6377 = vrot.slane %v3633, 3
        %v6378 = vrot.slane %v3646, 2
        %v6379 = vrot.slane %v3659, 1
        %v6380 = vrot.slane %v3685, 7
        %v6381 = vrot.slane %v3698, 6
        %v6382 = vrot.slane %v3711, 5
        %v6383 = vrot.slane %v3724, 4
        %v6384 = vrot.slane %v3737, 3
        %v6385 = vrot.slane %v3750, 2
        %v6386 = vrot.slane %v3763, 1
        %v6387 = vrot.slane %v3789, 7
        %v6388 = vrot.slane %v3802, 6
        %v6389 = vrot.slane %v3815, 5
        %v6390 = vrot.slane %v3828, 4
        %v6391 = vrot.slane %v3841, 3
        %v6392 = vrot.slane %v3854, 2
        %v6393 = vrot.slane %v3867, 1
        %v6394 = vrot.slane %v3893, 7
        %v6395 = vrot.slane %v3906, 6
        %v6396 = vrot.slane %v3919, 5
        %v6397 = vrot.slane %v3932, 4
        %v6398 = vrot.slane %v3945, 3
        %v6399 = vrot.slane %v3958, 2
        %v6400 = vrot.slane %v3971, 1
        %v6401 = vrot.slane %v3997, 7
        %v6402 = vrot.slane %v4010, 6
        %v6403 = vrot.slane %v4023, 5
        %v6404 = vrot.slane %v4036, 4
        %v6405 = vrot.slane %v4049, 3
        %v6406 = vrot.slane %v4062, 2
        %v6407 = vrot.slane %v4075, 1
        %v6408 = vrot.slane %v4101, 7
        %v6409 = vrot.slane %v4114, 6
        %v6410 = vrot.slane %v4127, 5
        %v6411 = vrot.slane %v4140, 4
        %v6412 = vrot.slane %v4153, 3
        %v6413 = vrot.slane %v4166, 2
        %v6414 = vrot.slane %v4179, 1
        %v6415 = vrot.slane %v4205, 7
        %v6416 = vrot.slane %v4218, 6
        %v6417 = vrot.slane %v4231, 5
        %v6418 = vrot.slane %v4244, 4
        %v6419 = vrot.slane %v4257, 3
        %v6420 = vrot.slane %v4270, 2
        %v6421 = vrot.slane %v4283, 1
        %v6422 = vrot.slane %v4309, 7
        %v6423 = vrot.slane %v4322, 6
        %v6424 = vrot.slane %v4335, 5
        %v6425 = vrot.slane %v4348, 4
        %v6426 = vrot.slane %v4361, 3
        %v6427 = vrot.slane %v4374, 2
        %v6428 = vrot.slane %v4387, 1
        %v6429 = vrot.slane %v4413, 7
        %v6430 = vrot.slane %v4426, 6
        %v6431 = vrot.slane %v4439, 5
        %v6432 = vrot.slane %v4452, 4
        %v6433 = vrot.slane %v4465, 3
        %v6434 = vrot.slane %v4478, 2
        %v6435 = vrot.slane %v4491, 1
        %v6436 = vrot.slane %v4517, 7
        %v6437 = vrot.slane %v4530, 6
        %v6438 = vrot.slane %v4543, 5
        %v6439 = vrot.slane %v4556, 4
        %v6440 = vrot.slane %v4569, 3
        %v6441 = vrot.slane %v4582, 2
        %v6442 = vrot.slane %v4595, 1
        %v6443 = vrot.slane %v4621, 7
        %v6444 = vrot.slane %v4634, 6
        %v6445 = vrot.slane %v4647, 5
        %v6446 = vrot.slane %v4660, 4
        %v6447 = vrot.slane %v4673, 3
        %v6448 = vrot.slane %v4686, 2
        %v6449 = vrot.slane %v4699, 1
        %v6450 = vrot.slane %v4725, 7
        %v6451 = vrot.slane %v4738, 6
        %v6452 = vrot.slane %v4751, 5
        %v6453 = vrot.slane %v4764, 4
        %v6454 = vrot.slane %v4777, 3
        %v6455 = vrot.slane %v4790, 2
        %v6456 = vrot.slane %v4803, 1
        %v6457 = vrot.slane %v4829, 7
        %v6458 = vrot.slane %v4842, 6
        %v6459 = vrot.slane %v4855, 5
        %v6460 = vrot.slane %v4868, 4
        %v6461 = vrot.slane %v4881, 3
        %v6462 = vrot.slane %v4894, 2
        %v6463 = vrot.slane %v4907, 1
        %v6464 = vrot.slane %v4933, 7
        %v6465 = vrot.slane %v4946, 6
        %v6466 = vrot.slane %v4959, 5
        %v6467 = vrot.slane %v4972, 4
        %v6468 = vrot.slane %v4985, 3
        %v6469 = vrot.slane %v4998, 2
        %v6470 = vrot.slane %v5011, 1
        %v6471 = vrot.slane %v5037, 7
        %v6472 = vrot.slane %v5050, 6
        %v6473 = vrot.slane %v5063, 5
        %v6474 = vrot.slane %v5076, 4
        %v6475 = vrot.slane %v5089, 3
        %v6476 = vrot.slane %v5102, 2
        %v6477 = vrot.slane %v5115, 1
        %v6478 = vrot.slane %v5141, 7
        %v6479 = vrot.slane %v5154, 6
        %v6480 = vrot.slane %v5167, 5
        %v6481 = vrot.slane %v5180, 4
        %v6482 = vrot.slane %v5193, 3
        %v6483 = vrot.slane %v5206, 2
        %v6484 = vrot.slane %v5219, 1
        %v6485 = vrot.slane %v5245, 7
        %v6486 = vrot.slane %v5258, 6
        %v6487 = vrot.slane %v5271, 5
        %v6488 = vrot.slane %v5284, 4
        %v6489 = vrot.slane %v5297, 3
        %v6490 = vrot.slane %v5310, 2
        %v6491 = vrot.slane %v5323, 1
        %v6492 = vrot.slane %v5349, 7
        %v6493 = vrot.slane %v5362, 6
        %v6494 = vrot.slane %v5375, 5
        %v6495 = vrot.slane %v5388, 4
        %v6496 = vrot.slane %v5401, 3
        %v6497 = vrot.slane %v5414, 2
        %v6498 = vrot.slane %v5427, 1
        %v6499 = vrot.slane %v5453, 7
        %v6500 = vrot.slane %v5466, 6
        %v6501 = vrot.slane %v5479, 5
        %v6502 = vrot.slane %v5492, 4
        %v6503 = vrot.slane %v5505, 3
        %v6504 = vrot.slane %v5518, 2
        %v6505 = vrot.slane %v5531, 1
        %v6506 = vrot.slane %v5557, 7
        %v6507 = vrot.slane %v5570, 6
        %v6508 = vrot.slane %v5583, 5
        %v6509 = vrot.slane %v5596, 4
        %v6510 = vrot.slane %v5609, 3
        %v6511 = vrot.slane %v5622, 2
        %v6512 = vrot.slane %v5635, 1
        %v6513 = vrot.slane %v5661, 7
        %v6514 = vrot.slane %v5674, 6
        %v6515 = vrot.slane %v5687, 5
        %v6516 = vrot.slane %v5700, 4
        %v6517 = vrot.slane %v5713, 3
        %v6518 = vrot.slane %v5726, 2
        %v6519 = vrot.slane %v5739, 1
        %v6520 = vrot.slane %v5765, 7
        %v6521 = vrot.slane %v5778, 6
        %v6522 = vrot.slane %v5791, 5
        %v6523 = vrot.slane %v5804, 4
        %v6524 = vrot.slane %v5817, 3
        %v6525 = vrot.slane %v5830, 2
        %v6526 = vrot.slane %v5843, 1
        %v6527 = vrot.slane %v5869, 7
        %v6528 = vrot.slane %v5882, 6
        %v6529 = vrot.slane %v5895, 5
        %v6530 = vrot.slane %v5908, 4
        %v6531 = vrot.slane %v5921, 3
        %v6532 = vrot.slane %v5934, 2
        %v6533 = vrot.slane %v5947, 1
        %v6534 = vrot.slane %v5973, 7
        %v6535 = vrot.slane %v5986, 6
        %v6536 = vrot.slane %v5999, 5
        %v6537 = vrot.slane %v6012, 4
        %v6538 = vrot.slane %v6025, 3
        %v6539 = vrot.slane %v6038, 2
        %v6540 = vrot.slane %v6051, 1
        %v6541 = vrot.slane %v6077, 7
        %v6542 = vrot.slane %v6090, 6
        %v6543 = vrot.slane %v6103, 5
        %v6544 = vrot.slane %v6116, 4
        %v6545 = vrot.slane %v6129, 3
        %v6546 = vrot.slane %v6142, 2
        %v6547 = vrot.slane %v6155, 1
        %vm6548 = vcmask 1040384
        %v6549 = vsel %vm6548, %v3464, %v6366
        %vm6550 = vcmask 1042434
        %v6551 = vsel %vm6550, %v6367, %v6368
        %vm6552 = vcmask 1041408
        %v6553 = vsel %vm6552, %v6549, %v6551
        %vm6554 = vcmask 1044484
        %v6555 = vsel %vm6554, %v6369, %v6370
        %vm6556 = vcmask 1046534
        %v6557 = vsel %vm6556, %v6371, %v6372
        %vm6558 = vcmask 1045508
        %v6559 = vsel %vm6558, %v6555, %v6557
        %vm6560 = vcmask 1043456
        %v6561 = vsel %vm6560, %v6553, %v6559
        %v6562 = vsel %vm6548, %v3568, %v6373
        %v6563 = vsel %vm6550, %v6374, %v6375
        %v6564 = vsel %vm6552, %v6562, %v6563
        %v6565 = vsel %vm6554, %v6376, %v6377
        %v6566 = vsel %vm6556, %v6378, %v6379
        %v6567 = vsel %vm6558, %v6565, %v6566
        %v6568 = vsel %vm6560, %v6564, %v6567
        %v6569 = vsel %vm6548, %v3672, %v6380
        %v6570 = vsel %vm6550, %v6381, %v6382
        %v6571 = vsel %vm6552, %v6569, %v6570
        %v6572 = vsel %vm6554, %v6383, %v6384
        %v6573 = vsel %vm6556, %v6385, %v6386
        %v6574 = vsel %vm6558, %v6572, %v6573
        %v6575 = vsel %vm6560, %v6571, %v6574
        %v6576 = vsel %vm6548, %v3776, %v6387
        %v6577 = vsel %vm6550, %v6388, %v6389
        %v6578 = vsel %vm6552, %v6576, %v6577
        %v6579 = vsel %vm6554, %v6390, %v6391
        %v6580 = vsel %vm6556, %v6392, %v6393
        %v6581 = vsel %vm6558, %v6579, %v6580
        %v6582 = vsel %vm6560, %v6578, %v6581
        %v6583 = vsel %vm6548, %v3880, %v6394
        %v6584 = vsel %vm6550, %v6395, %v6396
        %v6585 = vsel %vm6552, %v6583, %v6584
        %v6586 = vsel %vm6554, %v6397, %v6398
        %v6587 = vsel %vm6556, %v6399, %v6400
        %v6588 = vsel %vm6558, %v6586, %v6587
        %v6589 = vsel %vm6560, %v6585, %v6588
        %v6590 = vsel %vm6548, %v3984, %v6401
        %v6591 = vsel %vm6550, %v6402, %v6403
        %v6592 = vsel %vm6552, %v6590, %v6591
        %v6593 = vsel %vm6554, %v6404, %v6405
        %v6594 = vsel %vm6556, %v6406, %v6407
        %v6595 = vsel %vm6558, %v6593, %v6594
        %v6596 = vsel %vm6560, %v6592, %v6595
        %v6597 = vsel %vm6548, %v4088, %v6408
        %v6598 = vsel %vm6550, %v6409, %v6410
        %v6599 = vsel %vm6552, %v6597, %v6598
        %v6600 = vsel %vm6554, %v6411, %v6412
        %v6601 = vsel %vm6556, %v6413, %v6414
        %v6602 = vsel %vm6558, %v6600, %v6601
        %v6603 = vsel %vm6560, %v6599, %v6602
        %v6604 = vsel %vm6548, %v4192, %v6415
        %v6605 = vsel %vm6550, %v6416, %v6417
        %v6606 = vsel %vm6552, %v6604, %v6605
        %v6607 = vsel %vm6554, %v6418, %v6419
        %v6608 = vsel %vm6556, %v6420, %v6421
        %v6609 = vsel %vm6558, %v6607, %v6608
        %v6610 = vsel %vm6560, %v6606, %v6609
        %v6611 = vsel %vm6548, %v4296, %v6422
        %v6612 = vsel %vm6550, %v6423, %v6424
        %v6613 = vsel %vm6552, %v6611, %v6612
        %v6614 = vsel %vm6554, %v6425, %v6426
        %v6615 = vsel %vm6556, %v6427, %v6428
        %v6616 = vsel %vm6558, %v6614, %v6615
        %v6617 = vsel %vm6560, %v6613, %v6616
        %v6618 = vsel %vm6548, %v4400, %v6429
        %v6619 = vsel %vm6550, %v6430, %v6431
        %v6620 = vsel %vm6552, %v6618, %v6619
        %v6621 = vsel %vm6554, %v6432, %v6433
        %v6622 = vsel %vm6556, %v6434, %v6435
        %v6623 = vsel %vm6558, %v6621, %v6622
        %v6624 = vsel %vm6560, %v6620, %v6623
        %v6625 = vsel %vm6548, %v4504, %v6436
        %v6626 = vsel %vm6550, %v6437, %v6438
        %v6627 = vsel %vm6552, %v6625, %v6626
        %v6628 = vsel %vm6554, %v6439, %v6440
        %v6629 = vsel %vm6556, %v6441, %v6442
        %v6630 = vsel %vm6558, %v6628, %v6629
        %v6631 = vsel %vm6560, %v6627, %v6630
        %v6632 = vsel %vm6548, %v4608, %v6443
        %v6633 = vsel %vm6550, %v6444, %v6445
        %v6634 = vsel %vm6552, %v6632, %v6633
        %v6635 = vsel %vm6554, %v6446, %v6447
        %v6636 = vsel %vm6556, %v6448, %v6449
        %v6637 = vsel %vm6558, %v6635, %v6636
        %v6638 = vsel %vm6560, %v6634, %v6637
        %v6639 = vsel %vm6548, %v4712, %v6450
        %v6640 = vsel %vm6550, %v6451, %v6452
        %v6641 = vsel %vm6552, %v6639, %v6640
        %v6642 = vsel %vm6554, %v6453, %v6454
        %v6643 = vsel %vm6556, %v6455, %v6456
        %v6644 = vsel %vm6558, %v6642, %v6643
        %v6645 = vsel %vm6560, %v6641, %v6644
        %v6646 = vsel %vm6548, %v4816, %v6457
        %v6647 = vsel %vm6550, %v6458, %v6459
        %v6648 = vsel %vm6552, %v6646, %v6647
        %v6649 = vsel %vm6554, %v6460, %v6461
        %v6650 = vsel %vm6556, %v6462, %v6463
        %v6651 = vsel %vm6558, %v6649, %v6650
        %v6652 = vsel %vm6560, %v6648, %v6651
        %v6653 = vsel %vm6548, %v4920, %v6464
        %v6654 = vsel %vm6550, %v6465, %v6466
        %v6655 = vsel %vm6552, %v6653, %v6654
        %v6656 = vsel %vm6554, %v6467, %v6468
        %v6657 = vsel %vm6556, %v6469, %v6470
        %v6658 = vsel %vm6558, %v6656, %v6657
        %v6659 = vsel %vm6560, %v6655, %v6658
        %v6660 = vsel %vm6548, %v5024, %v6471
        %v6661 = vsel %vm6550, %v6472, %v6473
        %v6662 = vsel %vm6552, %v6660, %v6661
        %v6663 = vsel %vm6554, %v6474, %v6475
        %v6664 = vsel %vm6556, %v6476, %v6477
        %v6665 = vsel %vm6558, %v6663, %v6664
        %v6666 = vsel %vm6560, %v6662, %v6665
        %v6667 = vsel %vm6548, %v5128, %v6478
        %v6668 = vsel %vm6550, %v6479, %v6480
        %v6669 = vsel %vm6552, %v6667, %v6668
        %v6670 = vsel %vm6554, %v6481, %v6482
        %v6671 = vsel %vm6556, %v6483, %v6484
        %v6672 = vsel %vm6558, %v6670, %v6671
        %v6673 = vsel %vm6560, %v6669, %v6672
        %v6674 = vsel %vm6548, %v5232, %v6485
        %v6675 = vsel %vm6550, %v6486, %v6487
        %v6676 = vsel %vm6552, %v6674, %v6675
        %v6677 = vsel %vm6554, %v6488, %v6489
        %v6678 = vsel %vm6556, %v6490, %v6491
        %v6679 = vsel %vm6558, %v6677, %v6678
        %v6680 = vsel %vm6560, %v6676, %v6679
        %v6681 = vsel %vm6548, %v5336, %v6492
        %v6682 = vsel %vm6550, %v6493, %v6494
        %v6683 = vsel %vm6552, %v6681, %v6682
        %v6684 = vsel %vm6554, %v6495, %v6496
        %v6685 = vsel %vm6556, %v6497, %v6498
        %v6686 = vsel %vm6558, %v6684, %v6685
        %v6687 = vsel %vm6560, %v6683, %v6686
        %v6688 = vsel %vm6548, %v5440, %v6499
        %v6689 = vsel %vm6550, %v6500, %v6501
        %v6690 = vsel %vm6552, %v6688, %v6689
        %v6691 = vsel %vm6554, %v6502, %v6503
        %v6692 = vsel %vm6556, %v6504, %v6505
        %v6693 = vsel %vm6558, %v6691, %v6692
        %v6694 = vsel %vm6560, %v6690, %v6693
        %v6695 = vsel %vm6548, %v5544, %v6506
        %v6696 = vsel %vm6550, %v6507, %v6508
        %v6697 = vsel %vm6552, %v6695, %v6696
        %v6698 = vsel %vm6554, %v6509, %v6510
        %v6699 = vsel %vm6556, %v6511, %v6512
        %v6700 = vsel %vm6558, %v6698, %v6699
        %v6701 = vsel %vm6560, %v6697, %v6700
        %v6702 = vsel %vm6548, %v5648, %v6513
        %v6703 = vsel %vm6550, %v6514, %v6515
        %v6704 = vsel %vm6552, %v6702, %v6703
        %v6705 = vsel %vm6554, %v6516, %v6517
        %v6706 = vsel %vm6556, %v6518, %v6519
        %v6707 = vsel %vm6558, %v6705, %v6706
        %v6708 = vsel %vm6560, %v6704, %v6707
        %v6709 = vsel %vm6548, %v5752, %v6520
        %v6710 = vsel %vm6550, %v6521, %v6522
        %v6711 = vsel %vm6552, %v6709, %v6710
        %v6712 = vsel %vm6554, %v6523, %v6524
        %v6713 = vsel %vm6556, %v6525, %v6526
        %v6714 = vsel %vm6558, %v6712, %v6713
        %v6715 = vsel %vm6560, %v6711, %v6714
        %v6716 = vsel %vm6548, %v5856, %v6527
        %v6717 = vsel %vm6550, %v6528, %v6529
        %v6718 = vsel %vm6552, %v6716, %v6717
        %v6719 = vsel %vm6554, %v6530, %v6531
        %v6720 = vsel %vm6556, %v6532, %v6533
        %v6721 = vsel %vm6558, %v6719, %v6720
        %v6722 = vsel %vm6560, %v6718, %v6721
        %v6723 = vsel %vm6548, %v5960, %v6534
        %v6724 = vsel %vm6550, %v6535, %v6536
        %v6725 = vsel %vm6552, %v6723, %v6724
        %v6726 = vsel %vm6554, %v6537, %v6538
        %v6727 = vsel %vm6556, %v6539, %v6540
        %v6728 = vsel %vm6558, %v6726, %v6727
        %v6729 = vsel %vm6560, %v6725, %v6728
        %v6730 = vsel %vm6548, %v6064, %v6541
        %v6731 = vsel %vm6550, %v6542, %v6543
        %v6732 = vsel %vm6552, %v6730, %v6731
        %v6733 = vsel %vm6554, %v6544, %v6545
        %v6734 = vsel %vm6556, %v6546, %v6547
        %v6735 = vsel %vm6558, %v6733, %v6734
        %v6736 = vsel %vm6560, %v6732, %v6735
        %6763 = vst [vmem:[%s422] sm:$0xff] %v6561
        %6764 = vst [vmem:[%s422 + $0x8] sm:$0xff] %v6568
        %6765 = vst [vmem:[%s422 + $0x10] sm:$0xff] %v6575
        %6766 = vst [vmem:[%s422 + $0x18] sm:$0xff] %v6582
        %6767 = vst [vmem:[%s422 + $0x20] sm:$0xff] %v6589
        %6768 = vst [vmem:[%s422 + $0x28] sm:$0xff] %v6596
        %6769 = vst [vmem:[%s422 + $0x30] sm:$0xff] %v6603
        %6770 = vst [vmem:[%s422 + $0x38] sm:$0xff] %v6610
        %6771 = vst [vmem:[%s422 + $0x40] sm:$0xff] %v6617
        %6772 = vst [vmem:[%s422 + $0x48] sm:$0xff] %v6624
        %6773 = vst [vmem:[%s422 + $0x50] sm:$0xff] %v6631
        %6774 = vst [vmem:[%s422 + $0x58] sm:$0xff] %v6638
        %6775 = vst [vmem:[%s422 + $0x60] sm:$0xff] %v6645
        %6776 = vst [vmem:[%s422 + $0x68] sm:$0xff] %v6652
        %6777 = vst [vmem:[%s422 + $0x70] sm:$0xff] %v6659
        %6778 = vst [vmem:[%s422 + $0x78] sm:$0xff] %v6666
        %6779 = vst [vmem:[%s422 + $0x80] sm:$0xff] %v6673
        %6780 = vst [vmem:[%s422 + $0x88] sm:$0xff] %v6680
        %6781 = vst [vmem:[%s422 + $0x90] sm:$0xff] %v6687
        %6782 = vst [vmem:[%s422 + $0x98] sm:$0xff] %v6694
        %6783 = vst [vmem:[%s422 + $0xa0] sm:$0xff] %v6701
        %6784 = vst [vmem:[%s422 + $0xa8] sm:$0xff] %v6708
        %6785 = vst [vmem:[%s422 + $0xb0] sm:$0xff] %v6715
        %6786 = vst [vmem:[%s422 + $0xb8] sm:$0xff] %v6722
        %6787 = vst [vmem:[%s422 + $0xc0] sm:$0xff] %v6729
        %6788 = vst [vmem:[%s422 + $0xc8] sm:$0xff] %v6736
        %s6789 = sand.u32 %s201, 1
        %s6790 = scalar_lea.sflag [#allocation6], %s6789
        %s6791 = sand.u32 %s201, 1
        %s6792 = smul.addr %s6791, 208
        %s6793 = scalar_lea.vmem [#allocation16], %s6792
        // Predicated region
        $region77: #{tpu_custom_call.1} parent=47 // pred_check
          %p6794 = pneg %p211
        $region78: #{tpu_custom_call.1} parent=47 // pred_check_branch
          %6796 = sbr.rel (%p6794) target = $region80
        $region79: #{tpu_custom_call.1} parent=47 // pred_region
          %s6797 = smul.u32 208, %s29
          %6799 = vsyncadd %s6790, 0
          %s6800 = scalar_lea.hbm %s8, %s6797
          %s6802 = sshll.u32 %s6793, 4
          %s6803 = int_to_ptr.vmem [resolvable:$true] %s6802
          %s6804 = sshll.u32 %s6800, 4
          %s6805 = int_to_ptr.hbm [resolvable:$true] %s6804
          %6807 = dma.vmem_to_hbm [thread:$0]  %s6803, 3328, %s6805, %s6790
        $region80: #{tpu_custom_call.1} parent=47 // pred_fallthru
          _
      $region48: #{tpu_custom_call.1} parent=5 // pred_fallthru
        _
      %p6808 = scmp.le.s32.totalorder 2, %s24
      // Predicated region
      $region81: #{tpu_custom_call.1} parent=5 // pred_check
        %p6809 = pneg %p6808
      $region82: #{tpu_custom_call.1} parent=5 // pred_check_branch
        %6811 = sbr.rel (%p6809) target = $region84
      $region83: #{tpu_custom_call.1} parent=5 // pred_region
        %s6812 = ssub.s32 %s24, 2
        // Predicated region
        $region85: #{tpu_custom_call.1} parent=83 // pred_check
          %p6813 = pneg %p217
        $region86: #{tpu_custom_call.1} parent=83 // pred_check_branch
          %6815 = sbr.rel (%p6813) target = $region88
        $region87: #{tpu_custom_call.1} parent=83 // pred_region
          %s6816 = sand.u32 %s202, 1
          %s6817 = scalar_lea.sflag [#allocation6], %s6816
          %s6818 = sand.u32 %s202, 1
          %s6819 = smul.addr %s6818, 208
          %s6820 = scalar_lea.vmem [#allocation16], %s6819
          %6822 = dma.done %s6817, 3328
        $region88: #{tpu_custom_call.1} parent=83 // pred_fallthru
          _
      $region84: #{tpu_custom_call.1} parent=5 // pred_fallthru
        _
    $region6: #{tpu_custom_call.1} parent=1 // loop_footer
      %s28 = sadd.s32 1, %s24
    $region7: #{tpu_custom_call.1} parent=1 // loop_footer_branch
      %23 = sbr.rel target = $region3
    $region8: #{tpu_custom_call.1} parent=1 // loop_exit
      _
    %6823 = vsyncpa [#allocation5], 1
    %s6824 = scalar_lea.sflag [#allocation5], 1
    %6825 = vsyncpa %s6824, 1
    %6826 = vsyncpa [#allocation8], 1
    %6827 = vsyncpa [#allocation11], 1
    %6828 = vsyncpa [#allocation14], 1
    %s6829 = scalar_lea.sflag [#allocation14], 1
    %6830 = vsyncpa %s6829, 1
    %6831 = vsyncpa [#allocation6], 1
    %s6832 = scalar_lea.sflag [#allocation6], 1
    %6833 = vsyncpa %s6832, 1

</llo_original>
